<compile_context>
chip_gen: v6e
topology: v6e:2x2x1
jax: 0.10.0
libtpu: 0.0.40
codegen_flags: <defaults>
</compile_context>

<pallas_src>
import functools

import jax
import jax.numpy as jnp
from jax.experimental import pallas as pl
from jax.experimental.pallas import tpu as pltpu

D_LAYERS = 3
W = 256
INPUT_CH = 3
LATENT_DIM = 64
OUT_CH = 3
SKIPS = (1,)


def _cdiv(a, b):
    return (a + b - 1) // b


def _round_up(a, b):
    return _cdiv(a, b) * b


@functools.lru_cache(maxsize=None)
def _num_tensorcores():
    """Best-effort TensorCores-per-chip (v7x has 2). Falls back to 1 (v5e/v6e)."""
    try:
        info = pltpu.get_tpu_info()
        for name in ("num_cores", "num_tensorcores", "cores_per_chip",
                     "tensorcores_per_chip", "core_count"):
            v = getattr(info, name, None)
            if isinstance(v, int) and v >= 1:
                return v
    except Exception:
        pass
    return 1


def _pick_tile(n, tile_n, num_tc):
    """Row tile: always a multiple of 256 (safe for bf16 (16,128) / f32 (8,128)
    tiling), large enough to amortize the ~0.35us per-grid-step overhead, and
    split across TensorCores only when the chip actually has more than one."""
    tile = _round_up(max(256, min(tile_n, _round_up(n, 256))), 256)
    if num_tc > 1:
        while tile > 256 and _cdiv(n, tile) < num_tc:
            tile -= 256
    return tile


def _vmem_limit_bytes(tile):
    """Scoped-VMEM limit derived from actual need (v5e default 16 MiB is too
    small for tile>=1024; v7x only has 64 MiB physical, so cap at 56 MiB)."""
    w_bytes = 2 * (INPUT_CH * 2 * W + LATENT_DIM * W + 3 * W * W + W * OUT_CH)  # bf16 weights
    b_bytes = 4 * (5 * W + OUT_CH)                                              # f32 biases
    act = tile * W * 4                                                          # one (tile, W) f32 slab
    need = (2 * tile * (INPUT_CH + LATENT_DIM) * 4     # input double-buffers (f32)
            + 2 * tile * OUT_CH * 4                    # output double-buffers
            + 2 * (w_bytes + b_bytes)                  # weight/bias buffers
            + 10 * act)                                # activation slabs (generous)
    need = int(need * 1.25) + (4 << 20)
    return max(32 << 20, min(need, 56 << 20))


def _inverse_atlasnet_kernel(
    uvs_ref,                      # (TN, 3)   f32
    lat_ref,                      # (TN, 64)  f32
    wu_ref,                       # (3, 2W)   bf16  fused [w1 | w1_skip_uvs]
    wl_ref,                       # (64, W)   bf16
    b1_ref, bl_ref,               # (1, W)    f32
    w0_ref, b0_ref,               # (W, W) bf16, (1, W) f32
    w1h_ref, bL1_ref,             # (W, W) bf16, (1, W) f32
    w2_ref, b2_ref,               # (W, W) bf16, (1, W) f32
    wlast_ref, blast_ref,         # (W, 3) bf16, (1, 3) f32
    out_ref,                      # (TN, 3)
):
    bf16 = jnp.bfloat16
    relu = lambda x: jnp.maximum(x, 0.0)

    def mm(a, w_ref):
        # bf16 x bf16 MXU matmul with f32 accumulation.
        return jnp.dot(a.astype(bf16), w_ref[...],
                       preferred_element_type=jnp.float32)

    # One fused MXU sequence for everything derived from uvs:
    #   uv_pre[:, :W]  = uvs @ W1       (input layer pre-activation)
    #   uv_pre[:, W:]  = uvs @ W1_skip  (skip-layer uvs term, precomputed)
    uv_pre = mm(uvs_ref[...], wu_ref)                              # (TN, 2W) f32
    lat_f = relu(mm(lat_ref[...], wl_ref) + bl_ref[...])           # (TN, W)  f32

    h = relu(uv_pre[:, :W] + b1_ref[...]) + lat_f                   # linear1 + latent
    h = relu(mm(h, w0_ref) + b0_ref[...]) + lat_f                   # layer 0
    h = relu(mm(h, w1h_ref) + uv_pre[:, W:] + bL1_ref[...]) + lat_f  # layer 1 (skip)
    h = relu(mm(h, w2_ref) + b2_ref[...]) + lat_f                   # layer 2
    out_ref[...] = (mm(h, wlast_ref) + blast_ref[...]).astype(out_ref.dtype)


def init_params(key):
    """Deterministic synthetic f32 parameters (shapes match the PyTorch module)."""
    ks = jax.random.split(key, 6)

    def lin(k, fan_in, fan_out):
        kw, kb = jax.random.split(k)
        scale = 1.0 / jnp.sqrt(fan_in)
        w = jax.random.uniform(kw, (fan_in, fan_out), jnp.float32, -scale, scale)
        b = jax.random.uniform(kb, (1, fan_out), jnp.float32, -scale, scale)
        return w, b

    params = {}
    params["w1"], params["b1"] = lin(ks[0], INPUT_CH, W)                # linear1
    params["wl"], params["bl"] = lin(ks[1], LATENT_DIM, W)              # linear_latent
    params["w0"], params["b0"] = lin(ks[2], W, W)                       # linear_list[0]
    w1_full, params["bL1"] = lin(ks[3], W + INPUT_CH, W)                # linear_list[1] (skip)
    params["w1h"] = w1_full[:W]                                         # (W, W)   (h part)
    params["w1u"] = w1_full[W:]                                         # (3, W)   (uvs part)
    params["w2"], params["b2"] = lin(ks[4], W, W)                       # linear_list[2]
    params["wlast"], params["blast"] = lin(ks[5], W, OUT_CH)            # last_linear
    return params


def pack_params(params, compute_dtype=jnp.bfloat16):
    """Cast matmul weights to the MXU compute dtype.  The two uvs weights
    (linear1 and the skip-layer uvs slice) are fused along the output axis into
    one (3, 2W) weight so the kernel needs a single uvs MXU sequence.
    Biases stay f32 (added after the f32-accumulated dot)."""
    p = params
    cd = compute_dtype
    return {
        "wu": jnp.concatenate([p["w1"], p["w1u"]], axis=1).astype(cd),  # (3, 2W)
        "wl": p["wl"].astype(cd),                                       # (64, W)
        "w0": p["w0"].astype(cd),
        "w1h": p["w1h"].astype(cd),
        "w2": p["w2"].astype(cd),
        "wlast": p["wlast"].astype(cd),
        "b1": p["b1"], "bl": p["bl"], "b0": p["b0"],
        "bL1": p["bL1"], "b2": p["b2"], "blast": p["blast"],
    }


@functools.partial(jax.jit, static_argnames=("tile_n",))
def inverse_atlasnet(uvs, latent_code, packed_params, tile_n=2048):
    """uvs: (..., input_ch), latent_code: (..., latent_code_dim) -> (..., 3)."""
    lead_shape = uvs.shape[:-1]
    n = 1
    for s in lead_shape:
        n *= s
    uvs2 = uvs.reshape(n, INPUT_CH)
    lat2 = latent_code.reshape(n, LATENT_DIM)

    tile = _pick_tile(n, tile_n, _num_tensorcores())
    grid = _cdiv(n, tile)          # last block may be partial: Pallas pads the
    p = packed_params              # input reads and discards OOB output writes.

    full = lambda a: pl.BlockSpec(a.shape, lambda i: (0, 0))   # VMEM-resident weights

    out = pl.pallas_call(
        _inverse_atlasnet_kernel,
        out_shape=jax.ShapeDtypeStruct((n, OUT_CH), uvs.dtype),
        grid_spec=pltpu.PrefetchScalarGridSpec(
            num_scalar_prefetch=0,
            grid=(grid,),
            in_specs=[
                pl.BlockSpec((tile, INPUT_CH), lambda i: (i, 0)),    # uvs rows
                pl.BlockSpec((tile, LATENT_DIM), lambda i: (i, 0)),  # latent rows
                full(p["wu"]),
                full(p["wl"]),
                full(p["b1"]), full(p["bl"]),
                full(p["w0"]), full(p["b0"]),
                full(p["w1h"]), full(p["bL1"]),
                full(p["w2"]), full(p["b2"]),
                full(p["wlast"]), full(p["blast"]),
            ],
            # Lane-sparse (tile, 3) output kept on purpose: only 12 B/row of
            # HBM writes; padding to 128 lanes would be ~42x more traffic.
            out_specs=pl.BlockSpec((tile, OUT_CH), lambda i: (i, 0)),
        ),
        compiler_params=pltpu.CompilerParams(
            dimension_semantics=("parallel",),
            vmem_limit_bytes=_vmem_limit_bytes(tile),
        ),
    )(
        uvs2, lat2,
        p["wu"], p["wl"],
        p["b1"], p["bl"],
        p["w0"], p["b0"],
        p["w1h"], p["bL1"],
        p["w2"], p["b2"],
        p["wlast"], p["blast"],
    )
    return out.reshape(*lead_shape, OUT_CH)


def reference_forward(uvs, latent_code, p, compute_dtype=jnp.float32):
    """Pure-JAX reference mirroring the PyTorch module.  compute_dtype sets the
    matmul operand precision (f32 = exact module, bf16 = kernel numerics);
    accumulation is always f32."""
    cd = compute_dtype
    mm = lambda a, w: jnp.dot(a.astype(cd), w.astype(cd),
                              preferred_element_type=jnp.float32)
    relu = lambda x: jnp.maximum(x, 0.0)
    lat_f = relu(mm(latent_code, p["wl"]) + p["bl"])
    h = relu(mm(uvs, p["w1"]) + p["b1"]) + lat_f
    h = relu(mm(h, p["w0"]) + p["b0"]) + lat_f                                   # layer 0
    w1_full = jnp.concatenate([p["w1h"], p["w1u"]], axis=0)
    h = relu(mm(jnp.concatenate([h, uvs], -1), w1_full) + p["bL1"]) + lat_f      # layer 1 (skip)
    h = relu(mm(h, p["w2"]) + p["b2"]) + lat_f                                   # layer 2
    return mm(h, p["wlast"]) + p["blast"]


if __name__ == "__main__":
    key = jax.random.PRNGKey(0)
    k_par, k_uv, _ = jax.random.split(key, 3)

    params = init_params(k_par)
    packed = pack_params(params)

    def check(batch, npts):
        ku, kl = jax.random.split(jax.random.fold_in(k_uv, npts))
        uvs = jax.random.normal(ku, (batch, npts, INPUT_CH), jnp.float32)
        latent_code = jax.random.normal(kl, (batch, npts, LATENT_DIM), jnp.float32)

        xyz = jax.block_until_ready(inverse_atlasnet(uvs, latent_code, packed))
        assert xyz.shape == (batch, npts, OUT_CH)

        uvs2 = uvs.reshape(-1, INPUT_CH)
        lat2 = latent_code.reshape(-1, LATENT_DIM)
        ref_bf16 = reference_forward(uvs2, lat2, params, jnp.bfloat16
                                     ).reshape(batch, npts, OUT_CH)
        ref_f32 = reference_forward(uvs2, lat2, params, jnp.float32
                                    ).reshape(batch, npts, OUT_CH)
        # Same mixed precision as the kernel -> tight; vs. full-f32 module -> loose.
        assert jnp.allclose(xyz, ref_bf16, atol=5e-3, rtol=5e-3), "mismatch vs bf16 reference"
        assert jnp.allclose(xyz, ref_f32, atol=5e-2, rtol=5e-2), "mismatch vs f32 reference"

    check(2, 128)    # N=256: single full tile
    check(2, 640)    # N=1280: multi-step / core-split path
    check(1, 1000)   # N=1000: partial last block (OOB input pad / masked output write)

    print("KERNEL_OK")
</pallas_src>

<mosaic_0001>
module attributes {stable_mosaic.version = 11 : i64} {
  func.func @_inverse_atlasnet_kernel(%arg0: i32, %arg1: memref<256x3xf32, #tpu.memory_space<vmem>>, %arg2: memref<256x64xf32, #tpu.memory_space<vmem>>, %arg3: memref<3x512xbf16, #tpu.memory_space<vmem>>, %arg4: memref<64x256xbf16, #tpu.memory_space<vmem>>, %arg5: memref<1x256xf32, #tpu.memory_space<vmem>>, %arg6: memref<1x256xf32, #tpu.memory_space<vmem>>, %arg7: memref<256x256xbf16, #tpu.memory_space<vmem>>, %arg8: memref<1x256xf32, #tpu.memory_space<vmem>>, %arg9: memref<256x256xbf16, #tpu.memory_space<vmem>>, %arg10: memref<1x256xf32, #tpu.memory_space<vmem>>, %arg11: memref<256x256xbf16, #tpu.memory_space<vmem>>, %arg12: memref<1x256xf32, #tpu.memory_space<vmem>>, %arg13: memref<256x3xbf16, #tpu.memory_space<vmem>>, %arg14: memref<1x3xf32, #tpu.memory_space<vmem>>, %arg15: memref<256x3xf32, #tpu.memory_space<vmem>>) attributes {dimension_semantics = [#tpu.dimension_semantics<parallel>], iteration_bounds = array<i64: 1>, scalar_prefetch = 0 : i64, scratch_operands = 0 : i64, tpu.core_type = #tpu.core_type<tc>, window_params = [{transform_indices = @transform_0, window_bounds = array<i64: 256, 3>}, {transform_indices = @transform_1, window_bounds = array<i64: 256, 64>}, {pipeline_mode = #tpu.pipeline_mode<synchronous>, transform_indices = @transform_2, window_bounds = array<i64: 3, 512>}, {pipeline_mode = #tpu.pipeline_mode<synchronous>, transform_indices = @transform_3, window_bounds = array<i64: 64, 256>}, {pipeline_mode = #tpu.pipeline_mode<synchronous>, transform_indices = @transform_4, window_bounds = array<i64: 1, 256>}, {pipeline_mode = #tpu.pipeline_mode<synchronous>, transform_indices = @transform_5, window_bounds = array<i64: 1, 256>}, {pipeline_mode = #tpu.pipeline_mode<synchronous>, transform_indices = @transform_6, window_bounds = array<i64: 256, 256>}, {pipeline_mode = #tpu.pipeline_mode<synchronous>, transform_indices = @transform_7, window_bounds = array<i64: 1, 256>}, {pipeline_mode = #tpu.pipeline_mode<synchronous>, transform_indices = @transform_8, window_bounds = array<i64: 256, 256>}, {pipeline_mode = #tpu.pipeline_mode<synchronous>, transform_indices = @transform_9, window_bounds = array<i64: 1, 256>}, {pipeline_mode = #tpu.pipeline_mode<synchronous>, transform_indices = @transform_10, window_bounds = array<i64: 256, 256>}, {pipeline_mode = #tpu.pipeline_mode<synchronous>, transform_indices = @transform_11, window_bounds = array<i64: 1, 256>}, {pipeline_mode = #tpu.pipeline_mode<synchronous>, transform_indices = @transform_12, window_bounds = array<i64: 256, 3>}, {pipeline_mode = #tpu.pipeline_mode<synchronous>, transform_indices = @transform_13, window_bounds = array<i64: 1, 3>}, {transform_indices = @transform_14, window_bounds = array<i64: 256, 3>}]} {
    %c0 = arith.constant 0 : index
    %c0_0 = arith.constant 0 : index
    %0 = vector.load %arg1[%c0, %c0_0] : memref<256x3xf32, #tpu.memory_space<vmem>>, vector<256x3xf32>
    %1 = arith.truncf %0 : vector<256x3xf32> to vector<256x3xbf16>
    %c0_1 = arith.constant 0 : index
    %c0_2 = arith.constant 0 : index
    %2 = vector.load %arg3[%c0_1, %c0_2] : memref<3x512xbf16, #tpu.memory_space<vmem>>, vector<3x512xbf16>
    %cst = arith.constant dense<0.000000e+00> : vector<256x512xf32>
    %3 = tpu.matmul %1, %2, %cst {dimension_numbers = #tpu.dot_dimension_numbers<[1], [0], [0], [1], [0, 0, 1, 1], [], []>} : vector<256x3xbf16>, vector<3x512xbf16>, vector<256x512xf32> -> vector<256x512xf32>
    %c0_3 = arith.constant 0 : index
    %c0_4 = arith.constant 0 : index
    %4 = vector.load %arg2[%c0_3, %c0_4] : memref<256x64xf32, #tpu.memory_space<vmem>>, vector<256x64xf32>
    %5 = arith.truncf %4 : vector<256x64xf32> to vector<256x64xbf16>
    %c0_5 = arith.constant 0 : index
    %c0_6 = arith.constant 0 : index
    %6 = vector.load %arg4[%c0_5, %c0_6] : memref<64x256xbf16, #tpu.memory_space<vmem>>, vector<64x256xbf16>
    %cst_7 = arith.constant dense<0.000000e+00> : vector<256x256xf32>
    %7 = tpu.matmul %5, %6, %cst_7 {dimension_numbers = #tpu.dot_dimension_numbers<[1], [0], [0], [1], [0, 0, 1, 1], [], []>} : vector<256x64xbf16>, vector<64x256xbf16>, vector<256x256xf32> -> vector<256x256xf32>
    %c0_8 = arith.constant 0 : index
    %c0_9 = arith.constant 0 : index
    %8 = vector.load %arg6[%c0_8, %c0_9] : memref<1x256xf32, #tpu.memory_space<vmem>>, vector<1x256xf32>
    %9 = vector.broadcast %8 : vector<1x256xf32> to vector<256x256xf32>
    %10 = arith.addf %7, %9 : vector<256x256xf32>
    %cst_10 = arith.constant 0.000000e+00 : f32
    %11 = vector.broadcast %cst_10 : f32 to vector<256x256xf32>
    %12 = arith.maximumf %10, %11 : vector<256x256xf32>
    %13 = vector.extract_strided_slice %3 {offsets = [0, 0], sizes = [256, 256], strides = [1, 1]} : vector<256x512xf32> to vector<256x256xf32>
    %c0_11 = arith.constant 0 : index
    %c0_12 = arith.constant 0 : index
    %14 = vector.load %arg5[%c0_11, %c0_12] : memref<1x256xf32, #tpu.memory_space<vmem>>, vector<1x256xf32>
    %15 = vector.broadcast %14 : vector<1x256xf32> to vector<256x256xf32>
    %16 = arith.addf %13, %15 : vector<256x256xf32>
    %cst_13 = arith.constant 0.000000e+00 : f32
    %17 = vector.broadcast %cst_13 : f32 to vector<256x256xf32>
    %18 = arith.maximumf %16, %17 : vector<256x256xf32>
    %19 = arith.addf %18, %12 : vector<256x256xf32>
    %20 = arith.truncf %19 : vector<256x256xf32> to vector<256x256xbf16>
    %c0_14 = arith.constant 0 : index
    %c0_15 = arith.constant 0 : index
    %21 = vector.load %arg7[%c0_14, %c0_15] : memref<256x256xbf16, #tpu.memory_space<vmem>>, vector<256x256xbf16>
    %cst_16 = arith.constant dense<0.000000e+00> : vector<256x256xf32>
    %22 = tpu.matmul %20, %21, %cst_16 {dimension_numbers = #tpu.dot_dimension_numbers<[1], [0], [0], [1], [0, 0, 1, 1], [], []>} : vector<256x256xbf16>, vector<256x256xbf16>, vector<256x256xf32> -> vector<256x256xf32>
    %c0_17 = arith.constant 0 : index
    %c0_18 = arith.constant 0 : index
    %23 = vector.load %arg8[%c0_17, %c0_18] : memref<1x256xf32, #tpu.memory_space<vmem>>, vector<1x256xf32>
    %24 = vector.broadcast %23 : vector<1x256xf32> to vector<256x256xf32>
    %25 = arith.addf %22, %24 : vector<256x256xf32>
    %cst_19 = arith.constant 0.000000e+00 : f32
    %26 = vector.broadcast %cst_19 : f32 to vector<256x256xf32>
    %27 = arith.maximumf %25, %26 : vector<256x256xf32>
    %28 = arith.addf %27, %12 : vector<256x256xf32>
    %29 = arith.truncf %28 : vector<256x256xf32> to vector<256x256xbf16>
    %c0_20 = arith.constant 0 : index
    %c0_21 = arith.constant 0 : index
    %30 = vector.load %arg9[%c0_20, %c0_21] : memref<256x256xbf16, #tpu.memory_space<vmem>>, vector<256x256xbf16>
    %cst_22 = arith.constant dense<0.000000e+00> : vector<256x256xf32>
    %31 = tpu.matmul %29, %30, %cst_22 {dimension_numbers = #tpu.dot_dimension_numbers<[1], [0], [0], [1], [0, 0, 1, 1], [], []>} : vector<256x256xbf16>, vector<256x256xbf16>, vector<256x256xf32> -> vector<256x256xf32>
    %32 = vector.extract_strided_slice %3 {offsets = [0, 256], sizes = [256, 256], strides = [1, 1]} : vector<256x512xf32> to vector<256x256xf32>
    %33 = arith.addf %31, %32 : vector<256x256xf32>
    %c0_23 = arith.constant 0 : index
    %c0_24 = arith.constant 0 : index
    %34 = vector.load %arg10[%c0_23, %c0_24] : memref<1x256xf32, #tpu.memory_space<vmem>>, vector<1x256xf32>
    %35 = vector.broadcast %34 : vector<1x256xf32> to vector<256x256xf32>
    %36 = arith.addf %33, %35 : vector<256x256xf32>
    %cst_25 = arith.constant 0.000000e+00 : f32
    %37 = vector.broadcast %cst_25 : f32 to vector<256x256xf32>
    %38 = arith.maximumf %36, %37 : vector<256x256xf32>
    %39 = arith.addf %38, %12 : vector<256x256xf32>
    %40 = arith.truncf %39 : vector<256x256xf32> to vector<256x256xbf16>
    %c0_26 = arith.constant 0 : index
    %c0_27 = arith.constant 0 : index
    %41 = vector.load %arg11[%c0_26, %c0_27] : memref<256x256xbf16, #tpu.memory_space<vmem>>, vector<256x256xbf16>
    %cst_28 = arith.constant dense<0.000000e+00> : vector<256x256xf32>
    %42 = tpu.matmul %40, %41, %cst_28 {dimension_numbers = #tpu.dot_dimension_numbers<[1], [0], [0], [1], [0, 0, 1, 1], [], []>} : vector<256x256xbf16>, vector<256x256xbf16>, vector<256x256xf32> -> vector<256x256xf32>
    %c0_29 = arith.constant 0 : index
    %c0_30 = arith.constant 0 : index
    %43 = vector.load %arg12[%c0_29, %c0_30] : memref<1x256xf32, #tpu.memory_space<vmem>>, vector<1x256xf32>
    %44 = vector.broadcast %43 : vector<1x256xf32> to vector<256x256xf32>
    %45 = arith.addf %42, %44 : vector<256x256xf32>
    %cst_31 = arith.constant 0.000000e+00 : f32
    %46 = vector.broadcast %cst_31 : f32 to vector<256x256xf32>
    %47 = arith.maximumf %45, %46 : vector<256x256xf32>
    %48 = arith.addf %47, %12 : vector<256x256xf32>
    %49 = arith.truncf %48 : vector<256x256xf32> to vector<256x256xbf16>
    %c0_32 = arith.constant 0 : index
    %c0_33 = arith.constant 0 : index
    %50 = vector.load %arg13[%c0_32, %c0_33] : memref<256x3xbf16, #tpu.memory_space<vmem>>, vector<256x3xbf16>
    %cst_34 = arith.constant dense<0.000000e+00> : vector<256x3xf32>
    %51 = tpu.matmul %49, %50, %cst_34 {dimension_numbers = #tpu.dot_dimension_numbers<[1], [0], [0], [1], [0, 0, 1, 1], [], []>} : vector<256x256xbf16>, vector<256x3xbf16>, vector<256x3xf32> -> vector<256x3xf32>
    %c0_35 = arith.constant 0 : index
    %c0_36 = arith.constant 0 : index
    %52 = vector.load %arg14[%c0_35, %c0_36] : memref<1x3xf32, #tpu.memory_space<vmem>>, vector<1x3xf32>
    %53 = vector.broadcast %52 : vector<1x3xf32> to vector<256x3xf32>
    %54 = arith.addf %51, %53 : vector<256x3xf32>
    %c0_37 = arith.constant 0 : index
    %c0_38 = arith.constant 0 : index
    %55 = vector.load %arg15[%c0_37, %c0_38] : memref<256x3xf32, #tpu.memory_space<vmem>>, vector<256x3xf32>
    tpu.vector_store %arg15[%c0_37, %c0_38], %54 {strides = array<i32>} : memref<256x3xf32, #tpu.memory_space<vmem>>, vector<256x3xf32>,
    return
  }
  func.func @transform_0(%arg0: i32) -> (i32, i32) {
    %c0_i32 = arith.constant 0 : i32
    %c0_i32_0 = arith.constant 0 : i32
    return %arg0, %c0_i32 : i32, i32
  }
  func.func @transform_1(%arg0: i32) -> (i32, i32) {
    %c0_i32 = arith.constant 0 : i32
    %c0_i32_0 = arith.constant 0 : i32
    return %arg0, %c0_i32 : i32, i32
  }
  func.func @transform_2(%arg0: i32) -> (i32, i32) {
    %c0_i32 = arith.constant 0 : i32
    %c0_i32_0 = arith.constant 0 : i32
    %c0_i32_1 = arith.constant 0 : i32
    return %c0_i32, %c0_i32_0 : i32, i32
  }
  func.func @transform_3(%arg0: i32) -> (i32, i32) {
    %c0_i32 = arith.constant 0 : i32
    %c0_i32_0 = arith.constant 0 : i32
    %c0_i32_1 = arith.constant 0 : i32
    return %c0_i32, %c0_i32_0 : i32, i32
  }
  func.func @transform_4(%arg0: i32) -> (i32, i32) {
    %c0_i32 = arith.constant 0 : i32
    %c0_i32_0 = arith.constant 0 : i32
    %c0_i32_1 = arith.constant 0 : i32
    return %c0_i32, %c0_i32_0 : i32, i32
  }
  func.func @transform_5(%arg0: i32) -> (i32, i32) {
    %c0_i32 = arith.constant 0 : i32
    %c0_i32_0 = arith.constant 0 : i32
    %c0_i32_1 = arith.constant 0 : i32
    return %c0_i32, %c0_i32_0 : i32, i32
  }
  func.func @transform_6(%arg0: i32) -> (i32, i32) {
    %c0_i32 = arith.constant 0 : i32
    %c0_i32_0 = arith.constant 0 : i32
    %c0_i32_1 = arith.constant 0 : i32
    return %c0_i32, %c0_i32_0 : i32, i32
  }
  func.func @transform_7(%arg0: i32) -> (i32, i32) {
    %c0_i32 = arith.constant 0 : i32
    %c0_i32_0 = arith.constant 0 : i32
    %c0_i32_1 = arith.constant 0 : i32
    return %c0_i32, %c0_i32_0 : i32, i32
  }
  func.func @transform_8(%arg0: i32) -> (i32, i32) {
    %c0_i32 = arith.constant 0 : i32
    %c0_i32_0 = arith.constant 0 : i32
    %c0_i32_1 = arith.constant 0 : i32
    return %c0_i32, %c0_i32_0 : i32, i32
  }
  func.func @transform_9(%arg0: i32) -> (i32, i32) {
    %c0_i32 = arith.constant 0 : i32
    %c0_i32_0 = arith.constant 0 : i32
    %c0_i32_1 = arith.constant 0 : i32
    return %c0_i32, %c0_i32_0 : i32, i32
  }
  func.func @transform_10(%arg0: i32) -> (i32, i32) {
    %c0_i32 = arith.constant 0 : i32
    %c0_i32_0 = arith.constant 0 : i32
    %c0_i32_1 = arith.constant 0 : i32
    return %c0_i32, %c0_i32_0 : i32, i32
  }
  func.func @transform_11(%arg0: i32) -> (i32, i32) {
    %c0_i32 = arith.constant 0 : i32
    %c0_i32_0 = arith.constant 0 : i32
    %c0_i32_1 = arith.constant 0 : i32
    return %c0_i32, %c0_i32_0 : i32, i32
  }
  func.func @transform_12(%arg0: i32) -> (i32, i32) {
    %c0_i32 = arith.constant 0 : i32
    %c0_i32_0 = arith.constant 0 : i32
    %c0_i32_1 = arith.constant 0 : i32
    return %c0_i32, %c0_i32_0 : i32, i32
  }
  func.func @transform_13(%arg0: i32) -> (i32, i32) {
    %c0_i32 = arith.constant 0 : i32
    %c0_i32_0 = arith.constant 0 : i32
    %c0_i32_1 = arith.constant 0 : i32
    return %c0_i32, %c0_i32_0 : i32, i32
  }
  func.func @transform_14(%arg0: i32) -> (i32, i32) {
    %c0_i32 = arith.constant 0 : i32
    %c0_i32_0 = arith.constant 0 : i32
    return %arg0, %c0_i32 : i32, i32
  }
}

</mosaic_0001>

<llo_original>
// kernel: inverse_atlasnet.1
$region0: #{inverse_atlasnet.1}
  #allocation0 [shape = 'u32[]', space=smem, size = 0x4, offset = 0x4, fixed_abs, tag = 'smem constant byte address 0x4 - core index']
  #allocation1 [shape = 'u32[144,128]{1,0:T(1,128)}', space=vmem, size = 0x12000, scoped, tag = 'internal scratch']
  %s0 = inlined_call_operand.vmem [shape: f32[256,3], index: 0, kind: input, shape index: {}]
  %s1 = inlined_call_operand.vmem [shape: f32[256,64], index: 1, kind: input, shape index: {}]
  %s2 = inlined_call_operand.vmem [shape: bf16[3,512], index: 2, kind: input, shape index: {}]
  %s3 = inlined_call_operand.hbm [shape: bf16[64,256], index: 3, kind: input, shape index: {}]
  %s4 = inlined_call_operand.vmem [shape: f32[1,256], index: 4, kind: input, shape index: {}]
  %s5 = inlined_call_operand.vmem [shape: f32[1,256], index: 5, kind: input, shape index: {}]
  %s6 = inlined_call_operand.vmem [shape: bf16[256,256], index: 6, kind: input, shape index: {}]
  %s7 = inlined_call_operand.hbm [shape: f32[1,256], index: 7, kind: input, shape index: {}]
  %s8 = inlined_call_operand.vmem [shape: bf16[256,256], index: 8, kind: input, shape index: {}]
  %s9 = inlined_call_operand.vmem [shape: f32[1,256], index: 9, kind: input, shape index: {}]
  %s10 = inlined_call_operand.vmem [shape: bf16[256,256], index: 10, kind: input, shape index: {}]
  %s11 = inlined_call_operand.hbm [shape: f32[1,256], index: 11, kind: input, shape index: {}]
  %s12 = inlined_call_operand.vmem [shape: bf16[256,3], index: 12, kind: input, shape index: {}]
  %s13 = inlined_call_operand.vmem [shape: f32[1,3], index: 13, kind: input, shape index: {}]
  %s14 = inlined_call_operand.vmem [shape: f32[256,3], index: 14, kind: output, shape index: {}]
  %s15 = sld [smem:[#allocation0]]
  $region78: #{inverse_atlasnet.1} parent=0
    _
  %s17 = ssub.s32 1, %s15
  %s18 = scalar_select 0, %s17, %s15
  $region1: #{inverse_atlasnet.1} parent=0
    #allocation2 [shape = 'u8[32768]{0}', space=vmem, size = 0x8000, scoped, tag = 'input window, operand 3, single buffered']
    #allocation3 [shape = 's32[1]{0}', space=sflag, size = 0x4, scoped, tag = 'scoped memory for inverse_atlasnet.1']
    #allocation4 [shape = 'u8[1024]{0}', space=vmem, size = 0x400, scoped, tag = 'input window, operand 7, single buffered']
    #allocation5 [shape = 's32[1]{0}', space=sflag, size = 0x4, scoped, tag = 'scoped memory for inverse_atlasnet.1']
    #allocation6 [shape = 'u8[1024]{0}', space=vmem, size = 0x400, scoped, tag = 'input window, operand 11, single buffered']
    %19 = vsyncpa [#allocation3], 0
    %20 = vsyncpa [#allocation5], 0
    // Predicated region
    $region2: #{inverse_atlasnet.1} parent=1 // pred_check
      _
    $region3: #{inverse_atlasnet.1} parent=1 // pred_check_branch
      %22 = sbr.rel (0) target = $region5
    $region4: #{inverse_atlasnet.1} parent=1 // pred_region
      _
    $region5: #{inverse_atlasnet.1} parent=1 // pred_fallthru
      _
    // Predicated region
    $region6: #{inverse_atlasnet.1} parent=1 // pred_check
      _
    $region7: #{inverse_atlasnet.1} parent=1 // pred_check_branch
      %24 = sbr.rel (0) target = $region9
    $region8: #{inverse_atlasnet.1} parent=1 // pred_region
      _
    $region9: #{inverse_atlasnet.1} parent=1 // pred_fallthru
      _
    // Predicated region
    $region10: #{inverse_atlasnet.1} parent=1 // pred_check
      _
    $region11: #{inverse_atlasnet.1} parent=1 // pred_check_branch
      %26 = sbr.rel (0) target = $region13
    $region12: #{inverse_atlasnet.1} parent=1 // pred_region
      _
    $region13: #{inverse_atlasnet.1} parent=1 // pred_fallthru
      _
    // Predicated region
    $region14: #{inverse_atlasnet.1} parent=1 // pred_check
      _
    $region15: #{inverse_atlasnet.1} parent=1 // pred_check_branch
      %28 = sbr.rel (0) target = $region17
    $region16: #{inverse_atlasnet.1} parent=1 // pred_region
      %s30 = ssub.s32 1024, 1024
      %31 = vsyncadd [#allocation3], %s30
      %s32 = sshll.u32 [#allocation2], 4
      %s33 = int_to_ptr.vmem [resolvable:$true] %s32
      %38 = dma.hbm_to_vmem [thread:$0]  %s3, 1024, %s33, [#allocation3], 128, 128, 8
    $region17: #{inverse_atlasnet.1} parent=1 // pred_fallthru
      _
    // Predicated region
    $region18: #{inverse_atlasnet.1} parent=1 // pred_check
      _
    $region19: #{inverse_atlasnet.1} parent=1 // pred_check_branch
      %40 = sbr.rel (0) target = $region21
    $region20: #{inverse_atlasnet.1} parent=1 // pred_region
      _
    $region21: #{inverse_atlasnet.1} parent=1 // pred_fallthru
      _
    // Predicated region
    $region22: #{inverse_atlasnet.1} parent=1 // pred_check
      _
    $region23: #{inverse_atlasnet.1} parent=1 // pred_check_branch
      %42 = sbr.rel (0) target = $region25
    $region24: #{inverse_atlasnet.1} parent=1 // pred_region
      _
    $region25: #{inverse_atlasnet.1} parent=1 // pred_fallthru
      _
    // Predicated region
    $region26: #{inverse_atlasnet.1} parent=1 // pred_check
      _
    $region27: #{inverse_atlasnet.1} parent=1 // pred_check_branch
      %44 = sbr.rel (0) target = $region29
    $region28: #{inverse_atlasnet.1} parent=1 // pred_region
      _
    $region29: #{inverse_atlasnet.1} parent=1 // pred_fallthru
      _
    // Predicated region
    $region30: #{inverse_atlasnet.1} parent=1 // pred_check
      _
    $region31: #{inverse_atlasnet.1} parent=1 // pred_check_branch
      %46 = sbr.rel (0) target = $region33
    $region32: #{inverse_atlasnet.1} parent=1 // pred_region
      %s48 = ssub.s32 32, 32
      %49 = vsyncadd [#allocation5], %s48
      %s51 = sshll.u32 [#allocation4], 4
      %s52 = int_to_ptr.vmem [resolvable:$true] %s51
      %54 = dma.hbm_to_vmem [thread:$0]  %s7, 32, %s52, [#allocation5]
    $region33: #{inverse_atlasnet.1} parent=1 // pred_fallthru
      _
    // Predicated region
    $region34: #{inverse_atlasnet.1} parent=1 // pred_check
      _
    $region35: #{inverse_atlasnet.1} parent=1 // pred_check_branch
      %56 = sbr.rel (0) target = $region37
    $region36: #{inverse_atlasnet.1} parent=1 // pred_region
      _
    $region37: #{inverse_atlasnet.1} parent=1 // pred_fallthru
      _
    // Predicated region
    $region38: #{inverse_atlasnet.1} parent=1 // pred_check
      _
    $region39: #{inverse_atlasnet.1} parent=1 // pred_check_branch
      %58 = sbr.rel (0) target = $region41
    $region40: #{inverse_atlasnet.1} parent=1 // pred_region
      _
    $region41: #{inverse_atlasnet.1} parent=1 // pred_fallthru
      _
    // Predicated region
    $region42: #{inverse_atlasnet.1} parent=1 // pred_check
      _
    $region43: #{inverse_atlasnet.1} parent=1 // pred_check_branch
      %60 = sbr.rel (0) target = $region45
    $region44: #{inverse_atlasnet.1} parent=1 // pred_region
      _
    $region45: #{inverse_atlasnet.1} parent=1 // pred_fallthru
      _
    // Predicated region
    $region46: #{inverse_atlasnet.1} parent=1 // pred_check
      _
    $region47: #{inverse_atlasnet.1} parent=1 // pred_check_branch
      %62 = sbr.rel (0) target = $region49
    $region48: #{inverse_atlasnet.1} parent=1 // pred_region
      %s64 = ssub.s32 32, 32
      %65 = vsyncadd [#allocation5], %s64
      %s67 = sshll.u32 [#allocation6], 4
      %s68 = int_to_ptr.vmem [resolvable:$true] %s67
      %70 = dma.hbm_to_vmem [thread:$0]  %s11, 32, %s68, [#allocation5]
    $region49: #{inverse_atlasnet.1} parent=1 // pred_fallthru
      _
    // Predicated region
    $region50: #{inverse_atlasnet.1} parent=1 // pred_check
      _
    $region51: #{inverse_atlasnet.1} parent=1 // pred_check_branch
      %72 = sbr.rel (0) target = $region53
    $region52: #{inverse_atlasnet.1} parent=1 // pred_region
      _
    $region53: #{inverse_atlasnet.1} parent=1 // pred_fallthru
      _
    // Predicated region
    $region54: #{inverse_atlasnet.1} parent=1 // pred_check
      _
    $region55: #{inverse_atlasnet.1} parent=1 // pred_check_branch
      %74 = sbr.rel (0) target = $region57
    $region56: #{inverse_atlasnet.1} parent=1 // pred_region
      _
    $region57: #{inverse_atlasnet.1} parent=1 // pred_fallthru
      _
    // Predicated region
    $region58: #{inverse_atlasnet.1} parent=1 // pred_check
      _
    $region59: #{inverse_atlasnet.1} parent=1 // pred_check_branch
      %76 = sbr.rel (0) target = $region61
    $region60: #{inverse_atlasnet.1} parent=1 // pred_region
      %77 = dma.done [#allocation3], 1024
    $region61: #{inverse_atlasnet.1} parent=1 // pred_fallthru
      _
    // Predicated region
    $region62: #{inverse_atlasnet.1} parent=1 // pred_check
      _
    $region63: #{inverse_atlasnet.1} parent=1 // pred_check_branch
      %79 = sbr.rel (0) target = $region65
    $region64: #{inverse_atlasnet.1} parent=1 // pred_region
      %80 = dma.done [#allocation5], 32
    $region65: #{inverse_atlasnet.1} parent=1 // pred_fallthru
      _
    // Predicated region
    $region66: #{inverse_atlasnet.1} parent=1 // pred_check
      _
    $region67: #{inverse_atlasnet.1} parent=1 // pred_check_branch
      %82 = sbr.rel (0) target = $region69
    $region68: #{inverse_atlasnet.1} parent=1 // pred_region
      %83 = dma.done [#allocation5], 32
    $region69: #{inverse_atlasnet.1} parent=1 // pred_fallthru
      _
    %v85 = vld [vmem:[%s0] sm:$0xff]
    %v86 = vld [vmem:[%s0 + $0x8] sm:$0xff]
    %v87 = vld [vmem:[%s0 + $0x10] sm:$0xff]
    %v88 = vld [vmem:[%s0 + $0x18] sm:$0xff]
    %v89 = vld [vmem:[%s0 + $0x20] sm:$0xff]
    %v90 = vld [vmem:[%s0 + $0x28] sm:$0xff]
    %v91 = vld [vmem:[%s0 + $0x30] sm:$0xff]
    %v92 = vld [vmem:[%s0 + $0x38] sm:$0xff]
    %v93 = vld [vmem:[%s0 + $0x40] sm:$0xff]
    %v94 = vld [vmem:[%s0 + $0x48] sm:$0xff]
    %v95 = vld [vmem:[%s0 + $0x50] sm:$0xff]
    %v96 = vld [vmem:[%s0 + $0x58] sm:$0xff]
    %v97 = vld [vmem:[%s0 + $0x60] sm:$0xff]
    %v98 = vld [vmem:[%s0 + $0x68] sm:$0xff]
    %v99 = vld [vmem:[%s0 + $0x70] sm:$0xff]
    %v100 = vld [vmem:[%s0 + $0x78] sm:$0xff]
    %v101 = vld [vmem:[%s0 + $0x80] sm:$0xff]
    %v102 = vld [vmem:[%s0 + $0x88] sm:$0xff]
    %v103 = vld [vmem:[%s0 + $0x90] sm:$0xff]
    %v104 = vld [vmem:[%s0 + $0x98] sm:$0xff]
    %v105 = vld [vmem:[%s0 + $0xa0] sm:$0xff]
    %v106 = vld [vmem:[%s0 + $0xa8] sm:$0xff]
    %v107 = vld [vmem:[%s0 + $0xb0] sm:$0xff]
    %v108 = vld [vmem:[%s0 + $0xb8] sm:$0xff]
    %v109 = vld [vmem:[%s0 + $0xc0] sm:$0xff]
    %v110 = vld [vmem:[%s0 + $0xc8] sm:$0xff]
    %v111 = vld [vmem:[%s0 + $0xd0] sm:$0xff]
    %v112 = vld [vmem:[%s0 + $0xd8] sm:$0xff]
    %v113 = vld [vmem:[%s0 + $0xe0] sm:$0xff]
    %v114 = vld [vmem:[%s0 + $0xe8] sm:$0xff]
    %v115 = vld [vmem:[%s0 + $0xf0] sm:$0xff]
    %v116 = vld [vmem:[%s0 + $0xf8] sm:$0xff]
    %v117 = vpack.c.bf16 %v86, %v85
    %v118 = vpack.c.bf16 %v88, %v87
    %v119 = vpack.c.bf16 %v90, %v89
    %v120 = vpack.c.bf16 %v92, %v91
    %v121 = vpack.c.bf16 %v94, %v93
    %v122 = vpack.c.bf16 %v96, %v95
    %v123 = vpack.c.bf16 %v98, %v97
    %v124 = vpack.c.bf16 %v100, %v99
    %v125 = vpack.c.bf16 %v102, %v101
    %v126 = vpack.c.bf16 %v104, %v103
    %v127 = vpack.c.bf16 %v106, %v105
    %v128 = vpack.c.bf16 %v108, %v107
    %v129 = vpack.c.bf16 %v110, %v109
    %v130 = vpack.c.bf16 %v112, %v111
    %v131 = vpack.c.bf16 %v114, %v113
    %v132 = vpack.c.bf16 %v116, %v115
    %v133 = vld [vmem:[%s2] sm:$0xff]
    %v135 = vcombine.high %v133, %v133
    %v137 = vunpack.c.l.s4 1983009808
    %v138 = vunpack.c.0.s8 %v137
    %v139 = vlaneseq
    %v140 = vshrl.u32 %v139, 7
    %v141 = vsub.s32 %v138, %v140
    %v142 = vrot.slane %v133, %v141
    %v144 = vunpack.c.l.s4 1983009808
    %v145 = vunpack.c.0.s8 %v144
    %v146 = vlaneseq
    %v147 = vshrl.u32 %v146, 7
    %v148 = vsub.s32 %v145, %v147
    %v149 = vrot.slane %v135, %v148
    %v150 = vcombine.high %v142, %v142
    %v151 = vcombine.high %v149, %v149
    %vm152 = vcmask 23552
    %v154 = vsel %vm152, %v117, 0
    %v157 = vsel %vm152, %v118, 0
    %v160 = vsel %vm152, %v119, 0
    %v163 = vsel %vm152, %v120, 0
    %v166 = vsel %vm152, %v121, 0
    %v169 = vsel %vm152, %v122, 0
    %v172 = vsel %vm152, %v123, 0
    %v175 = vsel %vm152, %v124, 0
    %v178 = vsel %vm152, %v125, 0
    %v181 = vsel %vm152, %v126, 0
    %v184 = vsel %vm152, %v127, 0
    %v187 = vsel %vm152, %v128, 0
    %v190 = vsel %vm152, %v129, 0
    %v193 = vsel %vm152, %v130, 0
    %v196 = vsel %vm152, %v131, 0
    %v199 = vsel %vm152, %v132, 0
    %vm201 = vcmask 1040384
    %vm202 = vcmask 1041408
    %v203 = vsel %vm201, 4294967295, 65535
    %v204 = vsel %vm202, %v203, 0
    %v206 = vand.u32 %v142, %v204
    %v209 = vand.u32 %v150, %v204
    %v212 = vand.u32 %v149, %v204
    %v215 = vand.u32 %v151, %v204
    %217 = vmatprep.subr.bf16.mxu0 0
    %218 = vmatpush1.bf16.msra.mxu0 0
    %219 = vmatprep.subr.bf16.mxu0 0
    %220 = vmatpush1.bf16.msra.mxu0 0
    %221 = vmatprep.subr.bf16.mxu0 0
    %222 = vmatpush1.bf16.msra.mxu0 0
    %223 = vmatprep.subr.bf16.mxu0 0
    %224 = vmatpush1.bf16.msra.mxu0 0
    %225 = vmatprep.subr.bf16.mxu0 0
    %226 = vmatpush1.bf16.msra.mxu0 0
    %227 = vmatprep.subr.bf16.mxu0 0
    %228 = vmatpush1.bf16.msra.mxu0 0
    %229 = vmatprep.subr.bf16.mxu0 0
    %230 = vmatpush1.bf16.msra.mxu0 0
    %231 = vmatprep.subr.bf16.mxu0 %v209
    %232 = vmatpush1.bf16.msra.mxu0 %v206
    %233 = vmatprep.subr.bf16.mxu0 0
    %234 = vmatpush2.bf16.msra.mxu0 0
    %235 = vmatprep.subr.bf16.mxu0 0
    %236 = vmatpush2.bf16.msra.mxu0 0
    %237 = vmatprep.subr.bf16.mxu0 0
    %238 = vmatpush2.bf16.msra.mxu0 0
    %239 = vmatprep.subr.bf16.mxu0 0
    %240 = vmatpush2.bf16.msra.mxu0 0
    %241 = vmatprep.subr.bf16.mxu0 0
    %242 = vmatpush2.bf16.msra.mxu0 0
    %243 = vmatprep.subr.bf16.mxu0 0
    %244 = vmatpush2.bf16.msra.mxu0 0
    %245 = vmatprep.subr.bf16.mxu0 0
    %246 = vmatpush2.bf16.msra.mxu0 0
    %247 = vmatprep.subr.bf16.mxu0 0
    %248 = vmatpush2.bf16.msra.mxu0 0
    %249 = vmatprep.mubr.bf16.mxu0 0
    %250 = vmatmul.mubr.bf16.gmra.mxu0 %v154
    %v251 = vpop.f32.mrf.mxu0
    %v252 = vadd.f32 0.0, %v251
    %v253 = vpop.f32.mrf.mxu0
    %v254 = vadd.f32 0.0, %v253
    %v255 = vpop.f32.mrf.mxu0
    %v256 = vadd.f32 0.0, %v255
    %v257 = vpop.f32.mrf.mxu0
    %v258 = vadd.f32 0.0, %v257
    %259 = vmatprep.mubr.bf16.mxu0 0
    %260 = vmatmul.mubr.bf16.gmra.mxu0 %v157
    %v261 = vpop.f32.mrf.mxu0
    %v262 = vadd.f32 0.0, %v261
    %v263 = vpop.f32.mrf.mxu0
    %v264 = vadd.f32 0.0, %v263
    %v265 = vpop.f32.mrf.mxu0
    %v266 = vadd.f32 0.0, %v265
    %v267 = vpop.f32.mrf.mxu0
    %v268 = vadd.f32 0.0, %v267
    %269 = vmatprep.mubr.bf16.mxu0 0
    %270 = vmatmul.mubr.bf16.gmra.mxu0 %v160
    %v271 = vpop.f32.mrf.mxu0
    %v272 = vadd.f32 0.0, %v271
    %v273 = vpop.f32.mrf.mxu0
    %v274 = vadd.f32 0.0, %v273
    %v275 = vpop.f32.mrf.mxu0
    %v276 = vadd.f32 0.0, %v275
    %v277 = vpop.f32.mrf.mxu0
    %v278 = vadd.f32 0.0, %v277
    %279 = vmatprep.mubr.bf16.mxu0 0
    %280 = vmatmul.mubr.bf16.gmra.mxu0 %v163
    %v281 = vpop.f32.mrf.mxu0
    %v282 = vadd.f32 0.0, %v281
    %v283 = vpop.f32.mrf.mxu0
    %v284 = vadd.f32 0.0, %v283
    %v285 = vpop.f32.mrf.mxu0
    %v286 = vadd.f32 0.0, %v285
    %v287 = vpop.f32.mrf.mxu0
    %v288 = vadd.f32 0.0, %v287
    %289 = vmatprep.mubr.bf16.mxu0 0
    %290 = vmatmul.mubr.bf16.gmra.mxu0 %v166
    %v291 = vpop.f32.mrf.mxu0
    %v292 = vadd.f32 0.0, %v291
    %v293 = vpop.f32.mrf.mxu0
    %v294 = vadd.f32 0.0, %v293
    %v295 = vpop.f32.mrf.mxu0
    %v296 = vadd.f32 0.0, %v295
    %v297 = vpop.f32.mrf.mxu0
    %v298 = vadd.f32 0.0, %v297
    %299 = vmatprep.mubr.bf16.mxu0 0
    %300 = vmatmul.mubr.bf16.gmra.mxu0 %v169
    %v301 = vpop.f32.mrf.mxu0
    %v302 = vadd.f32 0.0, %v301
    %v303 = vpop.f32.mrf.mxu0
    %v304 = vadd.f32 0.0, %v303
    %v305 = vpop.f32.mrf.mxu0
    %v306 = vadd.f32 0.0, %v305
    %v307 = vpop.f32.mrf.mxu0
    %v308 = vadd.f32 0.0, %v307
    %309 = vmatprep.mubr.bf16.mxu0 0
    %310 = vmatmul.mubr.bf16.gmra.mxu0 %v172
    %v311 = vpop.f32.mrf.mxu0
    %v312 = vadd.f32 0.0, %v311
    %v313 = vpop.f32.mrf.mxu0
    %v314 = vadd.f32 0.0, %v313
    %v315 = vpop.f32.mrf.mxu0
    %v316 = vadd.f32 0.0, %v315
    %v317 = vpop.f32.mrf.mxu0
    %v318 = vadd.f32 0.0, %v317
    %319 = vmatprep.mubr.bf16.mxu0 0
    %320 = vmatmul.mubr.bf16.gmra.mxu0 %v175
    %v321 = vpop.f32.mrf.mxu0
    %v322 = vadd.f32 0.0, %v321
    %v323 = vpop.f32.mrf.mxu0
    %v324 = vadd.f32 0.0, %v323
    %v325 = vpop.f32.mrf.mxu0
    %v326 = vadd.f32 0.0, %v325
    %v327 = vpop.f32.mrf.mxu0
    %v328 = vadd.f32 0.0, %v327
    %329 = vmatprep.mubr.bf16.mxu0 0
    %330 = vmatmul.mubr.bf16.gmra.mxu0 %v178
    %v331 = vpop.f32.mrf.mxu0
    %v332 = vadd.f32 0.0, %v331
    %v333 = vpop.f32.mrf.mxu0
    %v334 = vadd.f32 0.0, %v333
    %v335 = vpop.f32.mrf.mxu0
    %v336 = vadd.f32 0.0, %v335
    %v337 = vpop.f32.mrf.mxu0
    %v338 = vadd.f32 0.0, %v337
    %339 = vmatprep.mubr.bf16.mxu0 0
    %340 = vmatmul.mubr.bf16.gmra.mxu0 %v181
    %v341 = vpop.f32.mrf.mxu0
    %v342 = vadd.f32 0.0, %v341
    %v343 = vpop.f32.mrf.mxu0
    %v344 = vadd.f32 0.0, %v343
    %v345 = vpop.f32.mrf.mxu0
    %v346 = vadd.f32 0.0, %v345
    %v347 = vpop.f32.mrf.mxu0
    %v348 = vadd.f32 0.0, %v347
    %349 = vmatprep.mubr.bf16.mxu0 0
    %350 = vmatmul.mubr.bf16.gmra.mxu0 %v184
    %v351 = vpop.f32.mrf.mxu0
    %v352 = vadd.f32 0.0, %v351
    %v353 = vpop.f32.mrf.mxu0
    %v354 = vadd.f32 0.0, %v353
    %v355 = vpop.f32.mrf.mxu0
    %v356 = vadd.f32 0.0, %v355
    %v357 = vpop.f32.mrf.mxu0
    %v358 = vadd.f32 0.0, %v357
    %359 = vmatprep.mubr.bf16.mxu0 0
    %360 = vmatmul.mubr.bf16.gmra.mxu0 %v187
    %v361 = vpop.f32.mrf.mxu0
    %v362 = vadd.f32 0.0, %v361
    %v363 = vpop.f32.mrf.mxu0
    %v364 = vadd.f32 0.0, %v363
    %v365 = vpop.f32.mrf.mxu0
    %v366 = vadd.f32 0.0, %v365
    %v367 = vpop.f32.mrf.mxu0
    %v368 = vadd.f32 0.0, %v367
    %369 = vmatprep.mubr.bf16.mxu0 0
    %370 = vmatmul.mubr.bf16.gmra.mxu0 %v190
    %v371 = vpop.f32.mrf.mxu0
    %v372 = vadd.f32 0.0, %v371
    %v373 = vpop.f32.mrf.mxu0
    %v374 = vadd.f32 0.0, %v373
    %v375 = vpop.f32.mrf.mxu0
    %v376 = vadd.f32 0.0, %v375
    %v377 = vpop.f32.mrf.mxu0
    %v378 = vadd.f32 0.0, %v377
    %379 = vmatprep.mubr.bf16.mxu0 0
    %380 = vmatmul.mubr.bf16.gmra.mxu0 %v193
    %v381 = vpop.f32.mrf.mxu0
    %v382 = vadd.f32 0.0, %v381
    %v383 = vpop.f32.mrf.mxu0
    %v384 = vadd.f32 0.0, %v383
    %v385 = vpop.f32.mrf.mxu0
    %v386 = vadd.f32 0.0, %v385
    %v387 = vpop.f32.mrf.mxu0
    %v388 = vadd.f32 0.0, %v387
    %389 = vmatprep.mubr.bf16.mxu0 0
    %390 = vmatmul.mubr.bf16.gmra.mxu0 %v196
    %v391 = vpop.f32.mrf.mxu0
    %v392 = vadd.f32 0.0, %v391
    %v393 = vpop.f32.mrf.mxu0
    %v394 = vadd.f32 0.0, %v393
    %v395 = vpop.f32.mrf.mxu0
    %v396 = vadd.f32 0.0, %v395
    %v397 = vpop.f32.mrf.mxu0
    %v398 = vadd.f32 0.0, %v397
    %399 = vmatprep.mubr.bf16.mxu0 0
    %400 = vmatmul.mubr.bf16.gmra.mxu0 %v199
    %v401 = vpop.f32.mrf.mxu0
    %v402 = vadd.f32 0.0, %v401
    %v403 = vpop.f32.mrf.mxu0
    %v404 = vadd.f32 0.0, %v403
    %v405 = vpop.f32.mrf.mxu0
    %v406 = vadd.f32 0.0, %v405
    %v407 = vpop.f32.mrf.mxu0
    %v408 = vadd.f32 0.0, %v407
    %409 = vdwg.mxu0
    %410 = vmatprep.subr.bf16.mxu0 0
    %411 = vmatpush1.bf16.msra.mxu0 0
    %412 = vmatprep.subr.bf16.mxu0 0
    %413 = vmatpush1.bf16.msra.mxu0 0
    %414 = vmatprep.subr.bf16.mxu0 0
    %415 = vmatpush1.bf16.msra.mxu0 0
    %416 = vmatprep.subr.bf16.mxu0 0
    %417 = vmatpush1.bf16.msra.mxu0 0
    %418 = vmatprep.subr.bf16.mxu0 0
    %419 = vmatpush1.bf16.msra.mxu0 0
    %420 = vmatprep.subr.bf16.mxu0 0
    %421 = vmatpush1.bf16.msra.mxu0 0
    %422 = vmatprep.subr.bf16.mxu0 0
    %423 = vmatpush1.bf16.msra.mxu0 0
    %424 = vmatprep.subr.bf16.mxu0 %v215
    %425 = vmatpush1.bf16.msra.mxu0 %v212
    %426 = vmatprep.subr.bf16.mxu0 0
    %427 = vmatpush2.bf16.msra.mxu0 0
    %428 = vmatprep.subr.bf16.mxu0 0
    %429 = vmatpush2.bf16.msra.mxu0 0
    %430 = vmatprep.subr.bf16.mxu0 0
    %431 = vmatpush2.bf16.msra.mxu0 0
    %432 = vmatprep.subr.bf16.mxu0 0
    %433 = vmatpush2.bf16.msra.mxu0 0
    %434 = vmatprep.subr.bf16.mxu0 0
    %435 = vmatpush2.bf16.msra.mxu0 0
    %436 = vmatprep.subr.bf16.mxu0 0
    %437 = vmatpush2.bf16.msra.mxu0 0
    %438 = vmatprep.subr.bf16.mxu0 0
    %439 = vmatpush2.bf16.msra.mxu0 0
    %440 = vmatprep.subr.bf16.mxu0 0
    %441 = vmatpush2.bf16.msra.mxu0 0
    %442 = vmatprep.mubr.bf16.mxu0 0
    %443 = vmatmul.mubr.bf16.gmra.mxu0 %v154
    %v444 = vpop.f32.mrf.mxu0
    %v445 = vadd.f32 0.0, %v444
    %v446 = vpop.f32.mrf.mxu0
    %v447 = vadd.f32 0.0, %v446
    %v448 = vpop.f32.mrf.mxu0
    %v449 = vadd.f32 0.0, %v448
    %v450 = vpop.f32.mrf.mxu0
    %v451 = vadd.f32 0.0, %v450
    %452 = vmatprep.mubr.bf16.mxu0 0
    %453 = vmatmul.mubr.bf16.gmra.mxu0 %v157
    %v454 = vpop.f32.mrf.mxu0
    %v455 = vadd.f32 0.0, %v454
    %v456 = vpop.f32.mrf.mxu0
    %v457 = vadd.f32 0.0, %v456
    %v458 = vpop.f32.mrf.mxu0
    %v459 = vadd.f32 0.0, %v458
    %v460 = vpop.f32.mrf.mxu0
    %v461 = vadd.f32 0.0, %v460
    %462 = vmatprep.mubr.bf16.mxu0 0
    %463 = vmatmul.mubr.bf16.gmra.mxu0 %v160
    %v464 = vpop.f32.mrf.mxu0
    %v465 = vadd.f32 0.0, %v464
    %v466 = vpop.f32.mrf.mxu0
    %v467 = vadd.f32 0.0, %v466
    %v468 = vpop.f32.mrf.mxu0
    %v469 = vadd.f32 0.0, %v468
    %v470 = vpop.f32.mrf.mxu0
    %v471 = vadd.f32 0.0, %v470
    %472 = vmatprep.mubr.bf16.mxu0 0
    %473 = vmatmul.mubr.bf16.gmra.mxu0 %v163
    %v474 = vpop.f32.mrf.mxu0
    %v475 = vadd.f32 0.0, %v474
    %v476 = vpop.f32.mrf.mxu0
    %v477 = vadd.f32 0.0, %v476
    %v478 = vpop.f32.mrf.mxu0
    %v479 = vadd.f32 0.0, %v478
    %v480 = vpop.f32.mrf.mxu0
    %v481 = vadd.f32 0.0, %v480
    %482 = vmatprep.mubr.bf16.mxu0 0
    %483 = vmatmul.mubr.bf16.gmra.mxu0 %v166
    %v484 = vpop.f32.mrf.mxu0
    %v485 = vadd.f32 0.0, %v484
    %v486 = vpop.f32.mrf.mxu0
    %v487 = vadd.f32 0.0, %v486
    %v488 = vpop.f32.mrf.mxu0
    %v489 = vadd.f32 0.0, %v488
    %v490 = vpop.f32.mrf.mxu0
    %v491 = vadd.f32 0.0, %v490
    %492 = vmatprep.mubr.bf16.mxu0 0
    %493 = vmatmul.mubr.bf16.gmra.mxu0 %v169
    %v494 = vpop.f32.mrf.mxu0
    %v495 = vadd.f32 0.0, %v494
    %v496 = vpop.f32.mrf.mxu0
    %v497 = vadd.f32 0.0, %v496
    %v498 = vpop.f32.mrf.mxu0
    %v499 = vadd.f32 0.0, %v498
    %v500 = vpop.f32.mrf.mxu0
    %v501 = vadd.f32 0.0, %v500
    %502 = vmatprep.mubr.bf16.mxu0 0
    %503 = vmatmul.mubr.bf16.gmra.mxu0 %v172
    %v504 = vpop.f32.mrf.mxu0
    %v505 = vadd.f32 0.0, %v504
    %v506 = vpop.f32.mrf.mxu0
    %v507 = vadd.f32 0.0, %v506
    %v508 = vpop.f32.mrf.mxu0
    %v509 = vadd.f32 0.0, %v508
    %v510 = vpop.f32.mrf.mxu0
    %v511 = vadd.f32 0.0, %v510
    %512 = vmatprep.mubr.bf16.mxu0 0
    %513 = vmatmul.mubr.bf16.gmra.mxu0 %v175
    %v514 = vpop.f32.mrf.mxu0
    %v515 = vadd.f32 0.0, %v514
    %v516 = vpop.f32.mrf.mxu0
    %v517 = vadd.f32 0.0, %v516
    %v518 = vpop.f32.mrf.mxu0
    %v519 = vadd.f32 0.0, %v518
    %v520 = vpop.f32.mrf.mxu0
    %v521 = vadd.f32 0.0, %v520
    %522 = vmatprep.mubr.bf16.mxu0 0
    %523 = vmatmul.mubr.bf16.gmra.mxu0 %v178
    %v524 = vpop.f32.mrf.mxu0
    %v525 = vadd.f32 0.0, %v524
    %v526 = vpop.f32.mrf.mxu0
    %v527 = vadd.f32 0.0, %v526
    %v528 = vpop.f32.mrf.mxu0
    %v529 = vadd.f32 0.0, %v528
    %v530 = vpop.f32.mrf.mxu0
    %v531 = vadd.f32 0.0, %v530
    %532 = vmatprep.mubr.bf16.mxu0 0
    %533 = vmatmul.mubr.bf16.gmra.mxu0 %v181
    %v534 = vpop.f32.mrf.mxu0
    %v535 = vadd.f32 0.0, %v534
    %v536 = vpop.f32.mrf.mxu0
    %v537 = vadd.f32 0.0, %v536
    %v538 = vpop.f32.mrf.mxu0
    %v539 = vadd.f32 0.0, %v538
    %v540 = vpop.f32.mrf.mxu0
    %v541 = vadd.f32 0.0, %v540
    %542 = vmatprep.mubr.bf16.mxu0 0
    %543 = vmatmul.mubr.bf16.gmra.mxu0 %v184
    %v544 = vpop.f32.mrf.mxu0
    %v545 = vadd.f32 0.0, %v544
    %v546 = vpop.f32.mrf.mxu0
    %v547 = vadd.f32 0.0, %v546
    %v548 = vpop.f32.mrf.mxu0
    %v549 = vadd.f32 0.0, %v548
    %v550 = vpop.f32.mrf.mxu0
    %v551 = vadd.f32 0.0, %v550
    %552 = vmatprep.mubr.bf16.mxu0 0
    %553 = vmatmul.mubr.bf16.gmra.mxu0 %v187
    %v554 = vpop.f32.mrf.mxu0
    %v555 = vadd.f32 0.0, %v554
    %v556 = vpop.f32.mrf.mxu0
    %v557 = vadd.f32 0.0, %v556
    %v558 = vpop.f32.mrf.mxu0
    %v559 = vadd.f32 0.0, %v558
    %v560 = vpop.f32.mrf.mxu0
    %v561 = vadd.f32 0.0, %v560
    %562 = vmatprep.mubr.bf16.mxu0 0
    %563 = vmatmul.mubr.bf16.gmra.mxu0 %v190
    %v564 = vpop.f32.mrf.mxu0
    %v565 = vadd.f32 0.0, %v564
    %v566 = vpop.f32.mrf.mxu0
    %v567 = vadd.f32 0.0, %v566
    %v568 = vpop.f32.mrf.mxu0
    %v569 = vadd.f32 0.0, %v568
    %v570 = vpop.f32.mrf.mxu0
    %v571 = vadd.f32 0.0, %v570
    %572 = vmatprep.mubr.bf16.mxu0 0
    %573 = vmatmul.mubr.bf16.gmra.mxu0 %v193
    %v574 = vpop.f32.mrf.mxu0
    %v575 = vadd.f32 0.0, %v574
    %v576 = vpop.f32.mrf.mxu0
    %v577 = vadd.f32 0.0, %v576
    %v578 = vpop.f32.mrf.mxu0
    %v579 = vadd.f32 0.0, %v578
    %v580 = vpop.f32.mrf.mxu0
    %v581 = vadd.f32 0.0, %v580
    %582 = vmatprep.mubr.bf16.mxu0 0
    %583 = vmatmul.mubr.bf16.gmra.mxu0 %v196
    %v584 = vpop.f32.mrf.mxu0
    %v585 = vadd.f32 0.0, %v584
    %v586 = vpop.f32.mrf.mxu0
    %v587 = vadd.f32 0.0, %v586
    %v588 = vpop.f32.mrf.mxu0
    %v589 = vadd.f32 0.0, %v588
    %v590 = vpop.f32.mrf.mxu0
    %v591 = vadd.f32 0.0, %v590
    %592 = vmatprep.mubr.bf16.mxu0 0
    %593 = vmatmul.mubr.bf16.gmra.mxu0 %v199
    %v594 = vpop.f32.mrf.mxu0
    %v595 = vadd.f32 0.0, %v594
    %v596 = vpop.f32.mrf.mxu0
    %v597 = vadd.f32 0.0, %v596
    %v598 = vpop.f32.mrf.mxu0
    %v599 = vadd.f32 0.0, %v598
    %v600 = vpop.f32.mrf.mxu0
    %v601 = vadd.f32 0.0, %v600
    %602 = vdwg.mxu0
    %v603 = vld [vmem:[%s1] sm:$0xff]
    %v604 = vld [vmem:[%s1 + $0x8] sm:$0xff]
    %v605 = vld [vmem:[%s1 + $0x10] sm:$0xff]
    %v606 = vld [vmem:[%s1 + $0x18] sm:$0xff]
    %v607 = vld [vmem:[%s1 + $0x20] sm:$0xff]
    %v608 = vld [vmem:[%s1 + $0x28] sm:$0xff]
    %v609 = vld [vmem:[%s1 + $0x30] sm:$0xff]
    %v610 = vld [vmem:[%s1 + $0x38] sm:$0xff]
    %v611 = vld [vmem:[%s1 + $0x40] sm:$0xff]
    %v612 = vld [vmem:[%s1 + $0x48] sm:$0xff]
    %v613 = vld [vmem:[%s1 + $0x50] sm:$0xff]
    %v614 = vld [vmem:[%s1 + $0x58] sm:$0xff]
    %v615 = vld [vmem:[%s1 + $0x60] sm:$0xff]
    %v616 = vld [vmem:[%s1 + $0x68] sm:$0xff]
    %v617 = vld [vmem:[%s1 + $0x70] sm:$0xff]
    %v618 = vld [vmem:[%s1 + $0x78] sm:$0xff]
    %v619 = vld [vmem:[%s1 + $0x80] sm:$0xff]
    %v620 = vld [vmem:[%s1 + $0x88] sm:$0xff]
    %v621 = vld [vmem:[%s1 + $0x90] sm:$0xff]
    %v622 = vld [vmem:[%s1 + $0x98] sm:$0xff]
    %v623 = vld [vmem:[%s1 + $0xa0] sm:$0xff]
    %v624 = vld [vmem:[%s1 + $0xa8] sm:$0xff]
    %v625 = vld [vmem:[%s1 + $0xb0] sm:$0xff]
    %v626 = vld [vmem:[%s1 + $0xb8] sm:$0xff]
    %v627 = vld [vmem:[%s1 + $0xc0] sm:$0xff]
    %v628 = vld [vmem:[%s1 + $0xc8] sm:$0xff]
    %v629 = vld [vmem:[%s1 + $0xd0] sm:$0xff]
    %v630 = vld [vmem:[%s1 + $0xd8] sm:$0xff]
    %v631 = vld [vmem:[%s1 + $0xe0] sm:$0xff]
    %v632 = vld [vmem:[%s1 + $0xe8] sm:$0xff]
    %v633 = vld [vmem:[%s1 + $0xf0] sm:$0xff]
    %v634 = vld [vmem:[%s1 + $0xf8] sm:$0xff]
    %v635 = vpack.c.bf16 %v604, %v603
    %v636 = vpack.c.bf16 %v606, %v605
    %v637 = vpack.c.bf16 %v608, %v607
    %v638 = vpack.c.bf16 %v610, %v609
    %v639 = vpack.c.bf16 %v612, %v611
    %v640 = vpack.c.bf16 %v614, %v613
    %v641 = vpack.c.bf16 %v616, %v615
    %v642 = vpack.c.bf16 %v618, %v617
    %v643 = vpack.c.bf16 %v620, %v619
    %v644 = vpack.c.bf16 %v622, %v621
    %v645 = vpack.c.bf16 %v624, %v623
    %v646 = vpack.c.bf16 %v626, %v625
    %v647 = vpack.c.bf16 %v628, %v627
    %v648 = vpack.c.bf16 %v630, %v629
    %v649 = vpack.c.bf16 %v632, %v631
    %v650 = vpack.c.bf16 %v634, %v633
    %v651 = vld [vmem:[#allocation2] sm:$0xff]
    %v652 = vld [vmem:[#allocation2 + $0x8] sm:$0xff]
    %v653 = vld [vmem:[#allocation2 + $0x10] sm:$0xff]
    %v654 = vld [vmem:[#allocation2 + $0x18] sm:$0xff]
    %v655 = vld [vmem:[#allocation2 + $0x20] sm:$0xff]
    %v656 = vld [vmem:[#allocation2 + $0x28] sm:$0xff]
    %v657 = vld [vmem:[#allocation2 + $0x30] sm:$0xff]
    %v658 = vld [vmem:[#allocation2 + $0x38] sm:$0xff]
    %v659 = vld [vmem:[%s5] sm:$0x3]
    %v661 = vlaneseq
    %v662 = vshrl.u32 %v661, 7
    %v663 = vsub.s32 0, %v662
    %v664 = vrot.slane %v659, %v663
    %v665 = vlaneseq
    %v666 = vshrl.u32 %v665, 7
    %v667 = vsub.s32 1, %v666
    %v668 = vrot.slane %v659, %v667
    %v679 = vunpack.c.l.b16 %v651
    %v680 = vunpack.c.h.b16 %v651
    %v681 = vunpack.c.l.b16 %v652
    %v682 = vunpack.c.h.b16 %v652
    %v683 = vunpack.c.l.b16 %v653
    %v684 = vunpack.c.h.b16 %v653
    %v685 = vunpack.c.l.b16 %v654
    %v686 = vunpack.c.h.b16 %v654
    %v687 = vunpack.c.l.b16 %v655
    %v688 = vunpack.c.h.b16 %v655
    %v689 = vunpack.c.l.b16 %v656
    %v690 = vunpack.c.h.b16 %v656
    %v691 = vunpack.c.l.b16 %v657
    %v692 = vunpack.c.h.b16 %v657
    %v693 = vunpack.c.l.b16 %v658
    %v694 = vunpack.c.h.b16 %v658
    %v695 = vpack.c.b16 %v681, %v679
    %v696 = vpack.c.b16 %v682, %v680
    %v697 = vpack.c.b16 %v685, %v683
    %v698 = vpack.c.b16 %v686, %v684
    %v699 = vpack.c.b16 %v689, %v687
    %v700 = vpack.c.b16 %v690, %v688
    %v701 = vpack.c.b16 %v693, %v691
    %v702 = vpack.c.b16 %v694, %v692
    %vm711 = vcmask 523264
    %v713 = vsel %vm711, %v635, 0
    %v716 = vsel %vm711, %v636, 0
    %v719 = vsel %vm711, %v637, 0
    %v722 = vsel %vm711, %v638, 0
    %v725 = vsel %vm711, %v639, 0
    %v728 = vsel %vm711, %v640, 0
    %v731 = vsel %vm711, %v641, 0
    %v734 = vsel %vm711, %v642, 0
    %v737 = vsel %vm711, %v643, 0
    %v740 = vsel %vm711, %v644, 0
    %v743 = vsel %vm711, %v645, 0
    %v746 = vsel %vm711, %v646, 0
    %v749 = vsel %vm711, %v647, 0
    %v752 = vsel %vm711, %v648, 0
    %v755 = vsel %vm711, %v649, 0
    %v758 = vsel %vm711, %v650, 0
    %760 = vmatprep.subr.bf16.mxu0 0
    %761 = vmatpush1.bf16.msra.mxu0 0
    %762 = vmatprep.subr.bf16.mxu0 0
    %763 = vmatpush1.bf16.msra.mxu0 0
    %764 = vmatprep.subr.bf16.mxu0 0
    %765 = vmatpush1.bf16.msra.mxu0 0
    %766 = vmatprep.subr.bf16.mxu0 0
    %767 = vmatpush1.bf16.msra.mxu0 0
    %768 = vmatprep.subr.bf16.mxu0 %v702
    %769 = vmatpush1.bf16.msra.mxu0 %v701
    %770 = vmatprep.subr.bf16.mxu0 %v700
    %771 = vmatpush1.bf16.msra.mxu0 %v699
    %772 = vmatprep.subr.bf16.mxu0 %v698
    %773 = vmatpush1.bf16.msra.mxu0 %v697
    %774 = vmatprep.subr.bf16.mxu0 %v696
    %775 = vmatpush1.bf16.msra.mxu0 %v695
    %776 = vmatprep.subr.bf16.mxu0 0
    %777 = vmatpush2.bf16.msra.mxu0 0
    %778 = vmatprep.subr.bf16.mxu0 0
    %779 = vmatpush2.bf16.msra.mxu0 0
    %780 = vmatprep.subr.bf16.mxu0 0
    %781 = vmatpush2.bf16.msra.mxu0 0
    %782 = vmatprep.subr.bf16.mxu0 0
    %783 = vmatpush2.bf16.msra.mxu0 0
    %784 = vmatprep.subr.bf16.mxu0 0
    %785 = vmatpush2.bf16.msra.mxu0 0
    %786 = vmatprep.subr.bf16.mxu0 0
    %787 = vmatpush2.bf16.msra.mxu0 0
    %788 = vmatprep.subr.bf16.mxu0 0
    %789 = vmatpush2.bf16.msra.mxu0 0
    %790 = vmatprep.subr.bf16.mxu0 0
    %791 = vmatpush2.bf16.msra.mxu0 0
    %792 = vmatprep.mubr.bf16.mxu0 0
    %793 = vmatmul.mubr.bf16.gmra.mxu0 %v713
    %v794 = vpop.f32.mrf.mxu0
    %v795 = vadd.f32 %v664, %v794
    %v796 = vpop.f32.mrf.mxu0
    %v797 = vadd.f32 %v668, %v796
    %v798 = vpop.f32.mrf.mxu0
    %v799 = vadd.f32 %v664, %v798
    %v800 = vpop.f32.mrf.mxu0
    %v801 = vadd.f32 %v668, %v800
    %802 = vmatprep.mubr.bf16.mxu0 0
    %803 = vmatmul.mubr.bf16.gmra.mxu0 %v716
    %v804 = vpop.f32.mrf.mxu0
    %v805 = vadd.f32 %v664, %v804
    %v806 = vpop.f32.mrf.mxu0
    %v807 = vadd.f32 %v668, %v806
    %v808 = vpop.f32.mrf.mxu0
    %v809 = vadd.f32 %v664, %v808
    %v810 = vpop.f32.mrf.mxu0
    %v811 = vadd.f32 %v668, %v810
    %812 = vmatprep.mubr.bf16.mxu0 0
    %813 = vmatmul.mubr.bf16.gmra.mxu0 %v719
    %v814 = vpop.f32.mrf.mxu0
    %v815 = vadd.f32 %v664, %v814
    %v816 = vpop.f32.mrf.mxu0
    %v817 = vadd.f32 %v668, %v816
    %v818 = vpop.f32.mrf.mxu0
    %v819 = vadd.f32 %v664, %v818
    %v820 = vpop.f32.mrf.mxu0
    %v821 = vadd.f32 %v668, %v820
    %822 = vmatprep.mubr.bf16.mxu0 0
    %823 = vmatmul.mubr.bf16.gmra.mxu0 %v722
    %v824 = vpop.f32.mrf.mxu0
    %v825 = vadd.f32 %v664, %v824
    %v826 = vpop.f32.mrf.mxu0
    %v827 = vadd.f32 %v668, %v826
    %v828 = vpop.f32.mrf.mxu0
    %v829 = vadd.f32 %v664, %v828
    %v830 = vpop.f32.mrf.mxu0
    %v831 = vadd.f32 %v668, %v830
    %832 = vmatprep.mubr.bf16.mxu0 0
    %833 = vmatmul.mubr.bf16.gmra.mxu0 %v725
    %v834 = vpop.f32.mrf.mxu0
    %v835 = vadd.f32 %v664, %v834
    %v836 = vpop.f32.mrf.mxu0
    %v837 = vadd.f32 %v668, %v836
    %v838 = vpop.f32.mrf.mxu0
    %v839 = vadd.f32 %v664, %v838
    %v840 = vpop.f32.mrf.mxu0
    %v841 = vadd.f32 %v668, %v840
    %842 = vmatprep.mubr.bf16.mxu0 0
    %843 = vmatmul.mubr.bf16.gmra.mxu0 %v728
    %v844 = vpop.f32.mrf.mxu0
    %v845 = vadd.f32 %v664, %v844
    %v846 = vpop.f32.mrf.mxu0
    %v847 = vadd.f32 %v668, %v846
    %v848 = vpop.f32.mrf.mxu0
    %v849 = vadd.f32 %v664, %v848
    %v850 = vpop.f32.mrf.mxu0
    %v851 = vadd.f32 %v668, %v850
    %852 = vmatprep.mubr.bf16.mxu0 0
    %853 = vmatmul.mubr.bf16.gmra.mxu0 %v731
    %v854 = vpop.f32.mrf.mxu0
    %v855 = vadd.f32 %v664, %v854
    %v856 = vpop.f32.mrf.mxu0
    %v857 = vadd.f32 %v668, %v856
    %v858 = vpop.f32.mrf.mxu0
    %v859 = vadd.f32 %v664, %v858
    %v860 = vpop.f32.mrf.mxu0
    %v861 = vadd.f32 %v668, %v860
    %862 = vmatprep.mubr.bf16.mxu0 0
    %863 = vmatmul.mubr.bf16.gmra.mxu0 %v734
    %v864 = vpop.f32.mrf.mxu0
    %v865 = vadd.f32 %v664, %v864
    %v866 = vpop.f32.mrf.mxu0
    %v867 = vadd.f32 %v668, %v866
    %v868 = vpop.f32.mrf.mxu0
    %v869 = vadd.f32 %v664, %v868
    %v870 = vpop.f32.mrf.mxu0
    %v871 = vadd.f32 %v668, %v870
    %872 = vmatprep.mubr.bf16.mxu0 0
    %873 = vmatmul.mubr.bf16.gmra.mxu0 %v737
    %v874 = vpop.f32.mrf.mxu0
    %v875 = vadd.f32 %v664, %v874
    %v876 = vpop.f32.mrf.mxu0
    %v877 = vadd.f32 %v668, %v876
    %v878 = vpop.f32.mrf.mxu0
    %v879 = vadd.f32 %v664, %v878
    %v880 = vpop.f32.mrf.mxu0
    %v881 = vadd.f32 %v668, %v880
    %882 = vmatprep.mubr.bf16.mxu0 0
    %883 = vmatmul.mubr.bf16.gmra.mxu0 %v740
    %v884 = vpop.f32.mrf.mxu0
    %v885 = vadd.f32 %v664, %v884
    %v886 = vpop.f32.mrf.mxu0
    %v887 = vadd.f32 %v668, %v886
    %v888 = vpop.f32.mrf.mxu0
    %v889 = vadd.f32 %v664, %v888
    %v890 = vpop.f32.mrf.mxu0
    %v891 = vadd.f32 %v668, %v890
    %892 = vmatprep.mubr.bf16.mxu0 0
    %893 = vmatmul.mubr.bf16.gmra.mxu0 %v743
    %v894 = vpop.f32.mrf.mxu0
    %v895 = vadd.f32 %v664, %v894
    %v896 = vpop.f32.mrf.mxu0
    %v897 = vadd.f32 %v668, %v896
    %v898 = vpop.f32.mrf.mxu0
    %v899 = vadd.f32 %v664, %v898
    %v900 = vpop.f32.mrf.mxu0
    %v901 = vadd.f32 %v668, %v900
    %902 = vmatprep.mubr.bf16.mxu0 0
    %903 = vmatmul.mubr.bf16.gmra.mxu0 %v746
    %v904 = vpop.f32.mrf.mxu0
    %v905 = vadd.f32 %v664, %v904
    %v906 = vpop.f32.mrf.mxu0
    %v907 = vadd.f32 %v668, %v906
    %v908 = vpop.f32.mrf.mxu0
    %v909 = vadd.f32 %v664, %v908
    %v910 = vpop.f32.mrf.mxu0
    %v911 = vadd.f32 %v668, %v910
    %912 = vmatprep.mubr.bf16.mxu0 0
    %913 = vmatmul.mubr.bf16.gmra.mxu0 %v749
    %v914 = vpop.f32.mrf.mxu0
    %v915 = vadd.f32 %v664, %v914
    %v916 = vpop.f32.mrf.mxu0
    %v917 = vadd.f32 %v668, %v916
    %v918 = vpop.f32.mrf.mxu0
    %v919 = vadd.f32 %v664, %v918
    %v920 = vpop.f32.mrf.mxu0
    %v921 = vadd.f32 %v668, %v920
    %922 = vmatprep.mubr.bf16.mxu0 0
    %923 = vmatmul.mubr.bf16.gmra.mxu0 %v752
    %v924 = vpop.f32.mrf.mxu0
    %v925 = vadd.f32 %v664, %v924
    %v926 = vpop.f32.mrf.mxu0
    %v927 = vadd.f32 %v668, %v926
    %v928 = vpop.f32.mrf.mxu0
    %v929 = vadd.f32 %v664, %v928
    %v930 = vpop.f32.mrf.mxu0
    %v931 = vadd.f32 %v668, %v930
    %932 = vmatprep.mubr.bf16.mxu0 0
    %933 = vmatmul.mubr.bf16.gmra.mxu0 %v755
    %v934 = vpop.f32.mrf.mxu0
    %v935 = vadd.f32 %v664, %v934
    %v936 = vpop.f32.mrf.mxu0
    %v937 = vadd.f32 %v668, %v936
    %v938 = vpop.f32.mrf.mxu0
    %v939 = vadd.f32 %v664, %v938
    %v940 = vpop.f32.mrf.mxu0
    %v941 = vadd.f32 %v668, %v940
    %942 = vmatprep.mubr.bf16.mxu0 0
    %943 = vmatmul.mubr.bf16.gmra.mxu0 %v758
    %v944 = vpop.f32.mrf.mxu0
    %v945 = vadd.f32 %v664, %v944
    %v946 = vpop.f32.mrf.mxu0
    %v947 = vadd.f32 %v668, %v946
    %v948 = vpop.f32.mrf.mxu0
    %v949 = vadd.f32 %v664, %v948
    %v950 = vpop.f32.mrf.mxu0
    %v951 = vadd.f32 %v668, %v950
    %952 = vdwg.mxu0
    %v953 = vmax.f32 %v795, 0.0
    %v954 = vmax.f32 %v797, 0.0
    %v955 = vmax.f32 %v799, 0.0
    %v956 = vmax.f32 %v801, 0.0
    %v957 = vmax.f32 %v805, 0.0
    %v958 = vmax.f32 %v807, 0.0
    %v959 = vmax.f32 %v809, 0.0
    %v960 = vmax.f32 %v811, 0.0
    %v961 = vmax.f32 %v815, 0.0
    %v962 = vmax.f32 %v817, 0.0
    %v963 = vmax.f32 %v819, 0.0
    %v964 = vmax.f32 %v821, 0.0
    %v965 = vmax.f32 %v825, 0.0
    %v966 = vmax.f32 %v827, 0.0
    %v967 = vmax.f32 %v829, 0.0
    %v968 = vmax.f32 %v831, 0.0
    %v969 = vmax.f32 %v835, 0.0
    %v970 = vmax.f32 %v837, 0.0
    %v971 = vmax.f32 %v839, 0.0
    %v972 = vmax.f32 %v841, 0.0
    %v973 = vmax.f32 %v845, 0.0
    %v974 = vmax.f32 %v847, 0.0
    %v975 = vmax.f32 %v849, 0.0
    %v976 = vmax.f32 %v851, 0.0
    %v977 = vmax.f32 %v855, 0.0
    %v978 = vmax.f32 %v857, 0.0
    %v979 = vmax.f32 %v859, 0.0
    %v980 = vmax.f32 %v861, 0.0
    %v981 = vmax.f32 %v865, 0.0
    %v982 = vmax.f32 %v867, 0.0
    %v983 = vmax.f32 %v869, 0.0
    %v984 = vmax.f32 %v871, 0.0
    %v985 = vmax.f32 %v875, 0.0
    %v986 = vmax.f32 %v877, 0.0
    %v987 = vmax.f32 %v879, 0.0
    %v988 = vmax.f32 %v881, 0.0
    %v989 = vmax.f32 %v885, 0.0
    %v990 = vmax.f32 %v887, 0.0
    %v991 = vmax.f32 %v889, 0.0
    %v992 = vmax.f32 %v891, 0.0
    %v993 = vmax.f32 %v895, 0.0
    %v994 = vmax.f32 %v897, 0.0
    %v995 = vmax.f32 %v899, 0.0
    %v996 = vmax.f32 %v901, 0.0
    %v997 = vmax.f32 %v905, 0.0
    %v998 = vmax.f32 %v907, 0.0
    %v999 = vmax.f32 %v909, 0.0
    %v1000 = vmax.f32 %v911, 0.0
    %v1001 = vmax.f32 %v915, 0.0
    %v1002 = vmax.f32 %v917, 0.0
    %v1003 = vmax.f32 %v919, 0.0
    %v1004 = vmax.f32 %v921, 0.0
    %v1005 = vmax.f32 %v925, 0.0
    %v1006 = vmax.f32 %v927, 0.0
    %v1007 = vmax.f32 %v929, 0.0
    %v1008 = vmax.f32 %v931, 0.0
    %v1009 = vmax.f32 %v935, 0.0
    %v1010 = vmax.f32 %v937, 0.0
    %v1011 = vmax.f32 %v939, 0.0
    %v1012 = vmax.f32 %v941, 0.0
    %v1013 = vmax.f32 %v945, 0.0
    %v1014 = vmax.f32 %v947, 0.0
    %v1015 = vmax.f32 %v949, 0.0
    %v1016 = vmax.f32 %v951, 0.0
    %v1017 = vld [vmem:[%s4] sm:$0x3]
    %v1019 = vlaneseq
    %v1020 = vshrl.u32 %v1019, 7
    %v1021 = vsub.s32 0, %v1020
    %v1022 = vrot.slane %v1017, %v1021
    %v1023 = vlaneseq
    %v1024 = vshrl.u32 %v1023, 7
    %v1025 = vsub.s32 1, %v1024
    %v1026 = vrot.slane %v1017, %v1025
    %v1029 = vadd.f32 %v252, %v1022
    %v1030 = vadd.f32 %v254, %v1026
    %v1031 = vadd.f32 %v256, %v1022
    %v1032 = vadd.f32 %v258, %v1026
    %v1033 = vadd.f32 %v262, %v1022
    %v1034 = vadd.f32 %v264, %v1026
    %v1035 = vadd.f32 %v266, %v1022
    %v1036 = vadd.f32 %v268, %v1026
    %v1037 = vadd.f32 %v272, %v1022
    %v1038 = vadd.f32 %v274, %v1026
    %v1039 = vadd.f32 %v276, %v1022
    %v1040 = vadd.f32 %v278, %v1026
    %v1041 = vadd.f32 %v282, %v1022
    %v1042 = vadd.f32 %v284, %v1026
    %v1043 = vadd.f32 %v286, %v1022
    %v1044 = vadd.f32 %v288, %v1026
    %v1045 = vadd.f32 %v292, %v1022
    %v1046 = vadd.f32 %v294, %v1026
    %v1047 = vadd.f32 %v296, %v1022
    %v1048 = vadd.f32 %v298, %v1026
    %v1049 = vadd.f32 %v302, %v1022
    %v1050 = vadd.f32 %v304, %v1026
    %v1051 = vadd.f32 %v306, %v1022
    %v1052 = vadd.f32 %v308, %v1026
    %v1053 = vadd.f32 %v312, %v1022
    %v1054 = vadd.f32 %v314, %v1026
    %v1055 = vadd.f32 %v316, %v1022
    %v1056 = vadd.f32 %v318, %v1026
    %v1057 = vadd.f32 %v322, %v1022
    %v1058 = vadd.f32 %v324, %v1026
    %v1059 = vadd.f32 %v326, %v1022
    %v1060 = vadd.f32 %v328, %v1026
    %v1061 = vadd.f32 %v332, %v1022
    %v1062 = vadd.f32 %v334, %v1026
    %v1063 = vadd.f32 %v336, %v1022
    %v1064 = vadd.f32 %v338, %v1026
    %v1065 = vadd.f32 %v342, %v1022
    %v1066 = vadd.f32 %v344, %v1026
    %v1067 = vadd.f32 %v346, %v1022
    %v1068 = vadd.f32 %v348, %v1026
    %v1069 = vadd.f32 %v352, %v1022
    %v1070 = vadd.f32 %v354, %v1026
    %v1071 = vadd.f32 %v356, %v1022
    %v1072 = vadd.f32 %v358, %v1026
    %v1073 = vadd.f32 %v362, %v1022
    %v1074 = vadd.f32 %v364, %v1026
    %v1075 = vadd.f32 %v366, %v1022
    %v1076 = vadd.f32 %v368, %v1026
    %v1077 = vadd.f32 %v372, %v1022
    %v1078 = vadd.f32 %v374, %v1026
    %v1079 = vadd.f32 %v376, %v1022
    %v1080 = vadd.f32 %v378, %v1026
    %v1081 = vadd.f32 %v382, %v1022
    %v1082 = vadd.f32 %v384, %v1026
    %v1083 = vadd.f32 %v386, %v1022
    %v1084 = vadd.f32 %v388, %v1026
    %v1085 = vadd.f32 %v392, %v1022
    %v1086 = vadd.f32 %v394, %v1026
    %v1087 = vadd.f32 %v396, %v1022
    %v1088 = vadd.f32 %v398, %v1026
    %v1089 = vadd.f32 %v402, %v1022
    %v1090 = vadd.f32 %v404, %v1026
    %v1091 = vadd.f32 %v406, %v1022
    %v1092 = vadd.f32 %v408, %v1026
    %v1093 = vmax.f32 %v1029, 0.0
    %v1094 = vmax.f32 %v1030, 0.0
    %v1095 = vmax.f32 %v1031, 0.0
    %v1096 = vmax.f32 %v1032, 0.0
    %v1097 = vmax.f32 %v1033, 0.0
    %v1098 = vmax.f32 %v1034, 0.0
    %v1099 = vmax.f32 %v1035, 0.0
    %v1100 = vmax.f32 %v1036, 0.0
    %v1101 = vmax.f32 %v1037, 0.0
    %v1102 = vmax.f32 %v1038, 0.0
    %v1103 = vmax.f32 %v1039, 0.0
    %v1104 = vmax.f32 %v1040, 0.0
    %v1105 = vmax.f32 %v1041, 0.0
    %v1106 = vmax.f32 %v1042, 0.0
    %v1107 = vmax.f32 %v1043, 0.0
    %v1108 = vmax.f32 %v1044, 0.0
    %v1109 = vmax.f32 %v1045, 0.0
    %v1110 = vmax.f32 %v1046, 0.0
    %v1111 = vmax.f32 %v1047, 0.0
    %v1112 = vmax.f32 %v1048, 0.0
    %v1113 = vmax.f32 %v1049, 0.0
    %v1114 = vmax.f32 %v1050, 0.0
    %v1115 = vmax.f32 %v1051, 0.0
    %v1116 = vmax.f32 %v1052, 0.0
    %v1117 = vmax.f32 %v1053, 0.0
    %v1118 = vmax.f32 %v1054, 0.0
    %v1119 = vmax.f32 %v1055, 0.0
    %v1120 = vmax.f32 %v1056, 0.0
    %v1121 = vmax.f32 %v1057, 0.0
    %v1122 = vmax.f32 %v1058, 0.0
    %v1123 = vmax.f32 %v1059, 0.0
    %v1124 = vmax.f32 %v1060, 0.0
    %v1125 = vmax.f32 %v1061, 0.0
    %v1126 = vmax.f32 %v1062, 0.0
    %v1127 = vmax.f32 %v1063, 0.0
    %v1128 = vmax.f32 %v1064, 0.0
    %v1129 = vmax.f32 %v1065, 0.0
    %v1130 = vmax.f32 %v1066, 0.0
    %v1131 = vmax.f32 %v1067, 0.0
    %v1132 = vmax.f32 %v1068, 0.0
    %v1133 = vmax.f32 %v1069, 0.0
    %v1134 = vmax.f32 %v1070, 0.0
    %v1135 = vmax.f32 %v1071, 0.0
    %v1136 = vmax.f32 %v1072, 0.0
    %v1137 = vmax.f32 %v1073, 0.0
    %v1138 = vmax.f32 %v1074, 0.0
    %v1139 = vmax.f32 %v1075, 0.0
    %v1140 = vmax.f32 %v1076, 0.0
    %v1141 = vmax.f32 %v1077, 0.0
    %v1142 = vmax.f32 %v1078, 0.0
    %v1143 = vmax.f32 %v1079, 0.0
    %v1144 = vmax.f32 %v1080, 0.0
    %v1145 = vmax.f32 %v1081, 0.0
    %v1146 = vmax.f32 %v1082, 0.0
    %v1147 = vmax.f32 %v1083, 0.0
    %v1148 = vmax.f32 %v1084, 0.0
    %v1149 = vmax.f32 %v1085, 0.0
    %v1150 = vmax.f32 %v1086, 0.0
    %v1151 = vmax.f32 %v1087, 0.0
    %v1152 = vmax.f32 %v1088, 0.0
    %v1153 = vmax.f32 %v1089, 0.0
    %v1154 = vmax.f32 %v1090, 0.0
    %v1155 = vmax.f32 %v1091, 0.0
    %v1156 = vmax.f32 %v1092, 0.0
    %v1157 = vadd.f32 %v1093, %v953
    %v1158 = vadd.f32 %v1094, %v954
    %v1159 = vadd.f32 %v1095, %v955
    %v1160 = vadd.f32 %v1096, %v956
    %v1161 = vadd.f32 %v1097, %v957
    %v1162 = vadd.f32 %v1098, %v958
    %v1163 = vadd.f32 %v1099, %v959
    %v1164 = vadd.f32 %v1100, %v960
    %v1165 = vadd.f32 %v1101, %v961
    %v1166 = vadd.f32 %v1102, %v962
    %v1167 = vadd.f32 %v1103, %v963
    %v1168 = vadd.f32 %v1104, %v964
    %v1169 = vadd.f32 %v1105, %v965
    %v1170 = vadd.f32 %v1106, %v966
    %v1171 = vadd.f32 %v1107, %v967
    %v1172 = vadd.f32 %v1108, %v968
    %v1173 = vadd.f32 %v1109, %v969
    %v1174 = vadd.f32 %v1110, %v970
    %v1175 = vadd.f32 %v1111, %v971
    %v1176 = vadd.f32 %v1112, %v972
    %v1177 = vadd.f32 %v1113, %v973
    %v1178 = vadd.f32 %v1114, %v974
    %v1179 = vadd.f32 %v1115, %v975
    %v1180 = vadd.f32 %v1116, %v976
    %v1181 = vadd.f32 %v1117, %v977
    %v1182 = vadd.f32 %v1118, %v978
    %v1183 = vadd.f32 %v1119, %v979
    %v1184 = vadd.f32 %v1120, %v980
    %v1185 = vadd.f32 %v1121, %v981
    %v1186 = vadd.f32 %v1122, %v982
    %v1187 = vadd.f32 %v1123, %v983
    %v1188 = vadd.f32 %v1124, %v984
    %v1189 = vadd.f32 %v1125, %v985
    %v1190 = vadd.f32 %v1126, %v986
    %v1191 = vadd.f32 %v1127, %v987
    %v1192 = vadd.f32 %v1128, %v988
    %v1193 = vadd.f32 %v1129, %v989
    %v1194 = vadd.f32 %v1130, %v990
    %v1195 = vadd.f32 %v1131, %v991
    %v1196 = vadd.f32 %v1132, %v992
    %v1197 = vadd.f32 %v1133, %v993
    %v1198 = vadd.f32 %v1134, %v994
    %v1199 = vadd.f32 %v1135, %v995
    %v1200 = vadd.f32 %v1136, %v996
    %v1201 = vadd.f32 %v1137, %v997
    %v1202 = vadd.f32 %v1138, %v998
    %v1203 = vadd.f32 %v1139, %v999
    %v1204 = vadd.f32 %v1140, %v1000
    %v1205 = vadd.f32 %v1141, %v1001
    %v1206 = vadd.f32 %v1142, %v1002
    %v1207 = vadd.f32 %v1143, %v1003
    %v1208 = vadd.f32 %v1144, %v1004
    %v1209 = vadd.f32 %v1145, %v1005
    %v1210 = vadd.f32 %v1146, %v1006
    %v1211 = vadd.f32 %v1147, %v1007
    %v1212 = vadd.f32 %v1148, %v1008
    %v1213 = vadd.f32 %v1149, %v1009
    %v1214 = vadd.f32 %v1150, %v1010
    %v1215 = vadd.f32 %v1151, %v1011
    %v1216 = vadd.f32 %v1152, %v1012
    %v1217 = vadd.f32 %v1153, %v1013
    %v1218 = vadd.f32 %v1154, %v1014
    %v1219 = vadd.f32 %v1155, %v1015
    %v1220 = vadd.f32 %v1156, %v1016
    %v1221 = vpack.c.bf16 %v1159, %v1157
    %v1222 = vpack.c.bf16 %v1160, %v1158
    %v1223 = vpack.c.bf16 %v1163, %v1161
    %v1224 = vpack.c.bf16 %v1164, %v1162
    %v1225 = vpack.c.bf16 %v1167, %v1165
    %v1226 = vpack.c.bf16 %v1168, %v1166
    %v1227 = vpack.c.bf16 %v1171, %v1169
    %v1228 = vpack.c.bf16 %v1172, %v1170
    %v1229 = vpack.c.bf16 %v1175, %v1173
    %v1230 = vpack.c.bf16 %v1176, %v1174
    %v1231 = vpack.c.bf16 %v1179, %v1177
    %v1232 = vpack.c.bf16 %v1180, %v1178
    %v1233 = vpack.c.bf16 %v1183, %v1181
    %v1234 = vpack.c.bf16 %v1184, %v1182
    %v1235 = vpack.c.bf16 %v1187, %v1185
    %v1236 = vpack.c.bf16 %v1188, %v1186
    %v1237 = vpack.c.bf16 %v1191, %v1189
    %v1238 = vpack.c.bf16 %v1192, %v1190
    %v1239 = vpack.c.bf16 %v1195, %v1193
    %v1240 = vpack.c.bf16 %v1196, %v1194
    %v1241 = vpack.c.bf16 %v1199, %v1197
    %v1242 = vpack.c.bf16 %v1200, %v1198
    %v1243 = vpack.c.bf16 %v1203, %v1201
    %v1244 = vpack.c.bf16 %v1204, %v1202
    %v1245 = vpack.c.bf16 %v1207, %v1205
    %v1246 = vpack.c.bf16 %v1208, %v1206
    %v1247 = vpack.c.bf16 %v1211, %v1209
    %v1248 = vpack.c.bf16 %v1212, %v1210
    %v1249 = vpack.c.bf16 %v1215, %v1213
    %v1250 = vpack.c.bf16 %v1216, %v1214
    %v1251 = vpack.c.bf16 %v1219, %v1217
    %v1252 = vpack.c.bf16 %v1220, %v1218
    %v1253 = vld [vmem:[%s6] sm:$0xff]
    %v1254 = vld [vmem:[%s6 + $0x8] sm:$0xff]
    %v1255 = vld [vmem:[%s6 + $0x10] sm:$0xff]
    %v1256 = vld [vmem:[%s6 + $0x18] sm:$0xff]
    %v1257 = vld [vmem:[%s6 + $0x20] sm:$0xff]
    %v1258 = vld [vmem:[%s6 + $0x28] sm:$0xff]
    %v1259 = vld [vmem:[%s6 + $0x30] sm:$0xff]
    %v1260 = vld [vmem:[%s6 + $0x38] sm:$0xff]
    %v1261 = vld [vmem:[%s6 + $0x40] sm:$0xff]
    %v1262 = vld [vmem:[%s6 + $0x48] sm:$0xff]
    %v1263 = vld [vmem:[%s6 + $0x50] sm:$0xff]
    %v1264 = vld [vmem:[%s6 + $0x58] sm:$0xff]
    %v1265 = vld [vmem:[%s6 + $0x60] sm:$0xff]
    %v1266 = vld [vmem:[%s6 + $0x68] sm:$0xff]
    %v1267 = vld [vmem:[%s6 + $0x70] sm:$0xff]
    %v1268 = vld [vmem:[%s6 + $0x78] sm:$0xff]
    %v1269 = vld [vmem:[%s6 + $0x80] sm:$0xff]
    %v1270 = vld [vmem:[%s6 + $0x88] sm:$0xff]
    %v1271 = vld [vmem:[%s6 + $0x90] sm:$0xff]
    %v1272 = vld [vmem:[%s6 + $0x98] sm:$0xff]
    %v1273 = vld [vmem:[%s6 + $0xa0] sm:$0xff]
    %v1274 = vld [vmem:[%s6 + $0xa8] sm:$0xff]
    %v1275 = vld [vmem:[%s6 + $0xb0] sm:$0xff]
    %v1276 = vld [vmem:[%s6 + $0xb8] sm:$0xff]
    %v1277 = vld [vmem:[%s6 + $0xc0] sm:$0xff]
    %v1278 = vld [vmem:[%s6 + $0xc8] sm:$0xff]
    %v1279 = vld [vmem:[%s6 + $0xd0] sm:$0xff]
    %v1280 = vld [vmem:[%s6 + $0xd8] sm:$0xff]
    %v1281 = vld [vmem:[%s6 + $0xe0] sm:$0xff]
    %v1282 = vld [vmem:[%s6 + $0xe8] sm:$0xff]
    %v1283 = vld [vmem:[%s6 + $0xf0] sm:$0xff]
    %v1284 = vld [vmem:[%s6 + $0xf8] sm:$0xff]
    %v1285 = vld [vmem:[#allocation4] sm:$0x3]
    %v1287 = vlaneseq
    %v1288 = vshrl.u32 %v1287, 7
    %v1289 = vsub.s32 0, %v1288
    %v1290 = vrot.slane %v1285, %v1289
    %v1291 = vlaneseq
    %v1292 = vshrl.u32 %v1291, 7
    %v1293 = vsub.s32 1, %v1292
    %v1294 = vrot.slane %v1285, %v1293
    %v1329 = vunpack.c.l.b16 %v1253
    %v1330 = vunpack.c.h.b16 %v1253
    %v1331 = vunpack.c.l.b16 %v1254
    %v1332 = vunpack.c.h.b16 %v1254
    %v1333 = vunpack.c.l.b16 %v1255
    %v1334 = vunpack.c.h.b16 %v1255
    %v1335 = vunpack.c.l.b16 %v1256
    %v1336 = vunpack.c.h.b16 %v1256
    %v1337 = vunpack.c.l.b16 %v1257
    %v1338 = vunpack.c.h.b16 %v1257
    %v1339 = vunpack.c.l.b16 %v1258
    %v1340 = vunpack.c.h.b16 %v1258
    %v1341 = vunpack.c.l.b16 %v1259
    %v1342 = vunpack.c.h.b16 %v1259
    %v1343 = vunpack.c.l.b16 %v1260
    %v1344 = vunpack.c.h.b16 %v1260
    %v1345 = vunpack.c.l.b16 %v1261
    %v1346 = vunpack.c.h.b16 %v1261
    %v1347 = vunpack.c.l.b16 %v1262
    %v1348 = vunpack.c.h.b16 %v1262
    %v1349 = vunpack.c.l.b16 %v1263
    %v1350 = vunpack.c.h.b16 %v1263
    %v1351 = vunpack.c.l.b16 %v1264
    %v1352 = vunpack.c.h.b16 %v1264
    %v1353 = vunpack.c.l.b16 %v1265
    %v1354 = vunpack.c.h.b16 %v1265
    %v1355 = vunpack.c.l.b16 %v1266
    %v1356 = vunpack.c.h.b16 %v1266
    %v1357 = vunpack.c.l.b16 %v1267
    %v1358 = vunpack.c.h.b16 %v1267
    %v1359 = vunpack.c.l.b16 %v1268
    %v1360 = vunpack.c.h.b16 %v1268
    %v1361 = vunpack.c.l.b16 %v1269
    %v1362 = vunpack.c.h.b16 %v1269
    %v1363 = vunpack.c.l.b16 %v1270
    %v1364 = vunpack.c.h.b16 %v1270
    %v1365 = vunpack.c.l.b16 %v1271
    %v1366 = vunpack.c.h.b16 %v1271
    %v1367 = vunpack.c.l.b16 %v1272
    %v1368 = vunpack.c.h.b16 %v1272
    %v1369 = vunpack.c.l.b16 %v1273
    %v1370 = vunpack.c.h.b16 %v1273
    %v1371 = vunpack.c.l.b16 %v1274
    %v1372 = vunpack.c.h.b16 %v1274
    %v1373 = vunpack.c.l.b16 %v1275
    %v1374 = vunpack.c.h.b16 %v1275
    %v1375 = vunpack.c.l.b16 %v1276
    %v1376 = vunpack.c.h.b16 %v1276
    %v1377 = vunpack.c.l.b16 %v1277
    %v1378 = vunpack.c.h.b16 %v1277
    %v1379 = vunpack.c.l.b16 %v1278
    %v1380 = vunpack.c.h.b16 %v1278
    %v1381 = vunpack.c.l.b16 %v1279
    %v1382 = vunpack.c.h.b16 %v1279
    %v1383 = vunpack.c.l.b16 %v1280
    %v1384 = vunpack.c.h.b16 %v1280
    %v1385 = vunpack.c.l.b16 %v1281
    %v1386 = vunpack.c.h.b16 %v1281
    %v1387 = vunpack.c.l.b16 %v1282
    %v1388 = vunpack.c.h.b16 %v1282
    %v1389 = vunpack.c.l.b16 %v1283
    %v1390 = vunpack.c.h.b16 %v1283
    %v1391 = vunpack.c.l.b16 %v1284
    %v1392 = vunpack.c.h.b16 %v1284
    %v1393 = vpack.c.b16 %v1331, %v1329
    %v1394 = vpack.c.b16 %v1332, %v1330
    %v1395 = vpack.c.b16 %v1335, %v1333
    %v1396 = vpack.c.b16 %v1336, %v1334
    %v1397 = vpack.c.b16 %v1339, %v1337
    %v1398 = vpack.c.b16 %v1340, %v1338
    %v1399 = vpack.c.b16 %v1343, %v1341
    %v1400 = vpack.c.b16 %v1344, %v1342
    %v1401 = vpack.c.b16 %v1347, %v1345
    %v1402 = vpack.c.b16 %v1348, %v1346
    %v1403 = vpack.c.b16 %v1351, %v1349
    %v1404 = vpack.c.b16 %v1352, %v1350
    %v1405 = vpack.c.b16 %v1355, %v1353
    %v1406 = vpack.c.b16 %v1356, %v1354
    %v1407 = vpack.c.b16 %v1359, %v1357
    %v1408 = vpack.c.b16 %v1360, %v1358
    %v1409 = vpack.c.b16 %v1363, %v1361
    %v1410 = vpack.c.b16 %v1364, %v1362
    %v1411 = vpack.c.b16 %v1367, %v1365
    %v1412 = vpack.c.b16 %v1368, %v1366
    %v1413 = vpack.c.b16 %v1371, %v1369
    %v1414 = vpack.c.b16 %v1372, %v1370
    %v1415 = vpack.c.b16 %v1375, %v1373
    %v1416 = vpack.c.b16 %v1376, %v1374
    %v1417 = vpack.c.b16 %v1379, %v1377
    %v1418 = vpack.c.b16 %v1380, %v1378
    %v1419 = vpack.c.b16 %v1383, %v1381
    %v1420 = vpack.c.b16 %v1384, %v1382
    %v1421 = vpack.c.b16 %v1387, %v1385
    %v1422 = vpack.c.b16 %v1388, %v1386
    %v1423 = vpack.c.b16 %v1391, %v1389
    %v1424 = vpack.c.b16 %v1392, %v1390
    %1457 = vmatprep.subr.bf16.mxu0 %v1408
    %1458 = vmatpush1.bf16.msra.mxu0 %v1407
    %1459 = vmatprep.subr.bf16.mxu0 %v1406
    %1460 = vmatpush1.bf16.msra.mxu0 %v1405
    %1461 = vmatprep.subr.bf16.mxu0 %v1404
    %1462 = vmatpush1.bf16.msra.mxu0 %v1403
    %1463 = vmatprep.subr.bf16.mxu0 %v1402
    %1464 = vmatpush1.bf16.msra.mxu0 %v1401
    %1465 = vmatprep.subr.bf16.mxu0 %v1400
    %1466 = vmatpush1.bf16.msra.mxu0 %v1399
    %1467 = vmatprep.subr.bf16.mxu0 %v1398
    %1468 = vmatpush1.bf16.msra.mxu0 %v1397
    %1469 = vmatprep.subr.bf16.mxu0 %v1396
    %1470 = vmatpush1.bf16.msra.mxu0 %v1395
    %1471 = vmatprep.subr.bf16.mxu0 %v1394
    %1472 = vmatpush1.bf16.msra.mxu0 %v1393
    %1473 = vmatprep.subr.bf16.mxu0 %v1424
    %1474 = vmatpush2.bf16.msra.mxu0 %v1423
    %1475 = vmatprep.subr.bf16.mxu0 %v1422
    %1476 = vmatpush2.bf16.msra.mxu0 %v1421
    %1477 = vmatprep.subr.bf16.mxu0 %v1420
    %1478 = vmatpush2.bf16.msra.mxu0 %v1419
    %1479 = vmatprep.subr.bf16.mxu0 %v1418
    %1480 = vmatpush2.bf16.msra.mxu0 %v1417
    %1481 = vmatprep.subr.bf16.mxu0 %v1416
    %1482 = vmatpush2.bf16.msra.mxu0 %v1415
    %1483 = vmatprep.subr.bf16.mxu0 %v1414
    %1484 = vmatpush2.bf16.msra.mxu0 %v1413
    %1485 = vmatprep.subr.bf16.mxu0 %v1412
    %1486 = vmatpush2.bf16.msra.mxu0 %v1411
    %1487 = vmatprep.subr.bf16.mxu0 %v1410
    %1488 = vmatpush2.bf16.msra.mxu0 %v1409
    %1489 = vmatprep.mubr.bf16.mxu0 %v1222
    %1490 = vmatmul.mubr.bf16.gmra.mxu0 %v1221
    %v1491 = vpop.f32.mrf.mxu0
    %v1492 = vadd.f32 %v1290, %v1491
    %v1493 = vpop.f32.mrf.mxu0
    %v1494 = vadd.f32 %v1294, %v1493
    %v1495 = vpop.f32.mrf.mxu0
    %v1496 = vadd.f32 %v1290, %v1495
    %v1497 = vpop.f32.mrf.mxu0
    %v1498 = vadd.f32 %v1294, %v1497
    %1499 = vmatprep.mubr.bf16.mxu0 %v1224
    %1500 = vmatmul.mubr.bf16.gmra.mxu0 %v1223
    %v1501 = vpop.f32.mrf.mxu0
    %v1502 = vadd.f32 %v1290, %v1501
    %v1503 = vpop.f32.mrf.mxu0
    %v1504 = vadd.f32 %v1294, %v1503
    %v1505 = vpop.f32.mrf.mxu0
    %v1506 = vadd.f32 %v1290, %v1505
    %v1507 = vpop.f32.mrf.mxu0
    %v1508 = vadd.f32 %v1294, %v1507
    %1509 = vmatprep.mubr.bf16.mxu0 %v1226
    %1510 = vmatmul.mubr.bf16.gmra.mxu0 %v1225
    %v1511 = vpop.f32.mrf.mxu0
    %v1512 = vadd.f32 %v1290, %v1511
    %v1513 = vpop.f32.mrf.mxu0
    %v1514 = vadd.f32 %v1294, %v1513
    %v1515 = vpop.f32.mrf.mxu0
    %v1516 = vadd.f32 %v1290, %v1515
    %v1517 = vpop.f32.mrf.mxu0
    %v1518 = vadd.f32 %v1294, %v1517
    %1519 = vmatprep.mubr.bf16.mxu0 %v1228
    %1520 = vmatmul.mubr.bf16.gmra.mxu0 %v1227
    %v1521 = vpop.f32.mrf.mxu0
    %v1522 = vadd.f32 %v1290, %v1521
    %v1523 = vpop.f32.mrf.mxu0
    %v1524 = vadd.f32 %v1294, %v1523
    %v1525 = vpop.f32.mrf.mxu0
    %v1526 = vadd.f32 %v1290, %v1525
    %v1527 = vpop.f32.mrf.mxu0
    %v1528 = vadd.f32 %v1294, %v1527
    %1529 = vmatprep.mubr.bf16.mxu0 %v1230
    %1530 = vmatmul.mubr.bf16.gmra.mxu0 %v1229
    %v1531 = vpop.f32.mrf.mxu0
    %v1532 = vadd.f32 %v1290, %v1531
    %v1533 = vpop.f32.mrf.mxu0
    %v1534 = vadd.f32 %v1294, %v1533
    %v1535 = vpop.f32.mrf.mxu0
    %v1536 = vadd.f32 %v1290, %v1535
    %v1537 = vpop.f32.mrf.mxu0
    %v1538 = vadd.f32 %v1294, %v1537
    %1539 = vmatprep.mubr.bf16.mxu0 %v1232
    %1540 = vmatmul.mubr.bf16.gmra.mxu0 %v1231
    %v1541 = vpop.f32.mrf.mxu0
    %v1542 = vadd.f32 %v1290, %v1541
    %v1543 = vpop.f32.mrf.mxu0
    %v1544 = vadd.f32 %v1294, %v1543
    %v1545 = vpop.f32.mrf.mxu0
    %v1546 = vadd.f32 %v1290, %v1545
    %v1547 = vpop.f32.mrf.mxu0
    %v1548 = vadd.f32 %v1294, %v1547
    %1549 = vmatprep.mubr.bf16.mxu0 %v1234
    %1550 = vmatmul.mubr.bf16.gmra.mxu0 %v1233
    %v1551 = vpop.f32.mrf.mxu0
    %v1552 = vadd.f32 %v1290, %v1551
    %v1553 = vpop.f32.mrf.mxu0
    %v1554 = vadd.f32 %v1294, %v1553
    %v1555 = vpop.f32.mrf.mxu0
    %v1556 = vadd.f32 %v1290, %v1555
    %v1557 = vpop.f32.mrf.mxu0
    %v1558 = vadd.f32 %v1294, %v1557
    %1559 = vmatprep.mubr.bf16.mxu0 %v1236
    %1560 = vmatmul.mubr.bf16.gmra.mxu0 %v1235
    %v1561 = vpop.f32.mrf.mxu0
    %v1562 = vadd.f32 %v1290, %v1561
    %v1563 = vpop.f32.mrf.mxu0
    %v1564 = vadd.f32 %v1294, %v1563
    %v1565 = vpop.f32.mrf.mxu0
    %v1566 = vadd.f32 %v1290, %v1565
    %v1567 = vpop.f32.mrf.mxu0
    %v1568 = vadd.f32 %v1294, %v1567
    %1569 = vmatprep.mubr.bf16.mxu0 %v1238
    %1570 = vmatmul.mubr.bf16.gmra.mxu0 %v1237
    %v1571 = vpop.f32.mrf.mxu0
    %v1572 = vadd.f32 %v1290, %v1571
    %v1573 = vpop.f32.mrf.mxu0
    %v1574 = vadd.f32 %v1294, %v1573
    %v1575 = vpop.f32.mrf.mxu0
    %v1576 = vadd.f32 %v1290, %v1575
    %v1577 = vpop.f32.mrf.mxu0
    %v1578 = vadd.f32 %v1294, %v1577
    %1579 = vmatprep.mubr.bf16.mxu0 %v1240
    %1580 = vmatmul.mubr.bf16.gmra.mxu0 %v1239
    %v1581 = vpop.f32.mrf.mxu0
    %v1582 = vadd.f32 %v1290, %v1581
    %v1583 = vpop.f32.mrf.mxu0
    %v1584 = vadd.f32 %v1294, %v1583
    %v1585 = vpop.f32.mrf.mxu0
    %v1586 = vadd.f32 %v1290, %v1585
    %v1587 = vpop.f32.mrf.mxu0
    %v1588 = vadd.f32 %v1294, %v1587
    %1589 = vmatprep.mubr.bf16.mxu0 %v1242
    %1590 = vmatmul.mubr.bf16.gmra.mxu0 %v1241
    %v1591 = vpop.f32.mrf.mxu0
    %v1592 = vadd.f32 %v1290, %v1591
    %v1593 = vpop.f32.mrf.mxu0
    %v1594 = vadd.f32 %v1294, %v1593
    %v1595 = vpop.f32.mrf.mxu0
    %v1596 = vadd.f32 %v1290, %v1595
    %v1597 = vpop.f32.mrf.mxu0
    %v1598 = vadd.f32 %v1294, %v1597
    %1599 = vmatprep.mubr.bf16.mxu0 %v1244
    %1600 = vmatmul.mubr.bf16.gmra.mxu0 %v1243
    %v1601 = vpop.f32.mrf.mxu0
    %v1602 = vadd.f32 %v1290, %v1601
    %v1603 = vpop.f32.mrf.mxu0
    %v1604 = vadd.f32 %v1294, %v1603
    %v1605 = vpop.f32.mrf.mxu0
    %v1606 = vadd.f32 %v1290, %v1605
    %v1607 = vpop.f32.mrf.mxu0
    %v1608 = vadd.f32 %v1294, %v1607
    %1609 = vmatprep.mubr.bf16.mxu0 %v1246
    %1610 = vmatmul.mubr.bf16.gmra.mxu0 %v1245
    %v1611 = vpop.f32.mrf.mxu0
    %v1612 = vadd.f32 %v1290, %v1611
    %v1613 = vpop.f32.mrf.mxu0
    %v1614 = vadd.f32 %v1294, %v1613
    %v1615 = vpop.f32.mrf.mxu0
    %v1616 = vadd.f32 %v1290, %v1615
    %v1617 = vpop.f32.mrf.mxu0
    %v1618 = vadd.f32 %v1294, %v1617
    %1619 = vmatprep.mubr.bf16.mxu0 %v1248
    %1620 = vmatmul.mubr.bf16.gmra.mxu0 %v1247
    %v1621 = vpop.f32.mrf.mxu0
    %v1622 = vadd.f32 %v1290, %v1621
    %v1623 = vpop.f32.mrf.mxu0
    %v1624 = vadd.f32 %v1294, %v1623
    %v1625 = vpop.f32.mrf.mxu0
    %v1626 = vadd.f32 %v1290, %v1625
    %v1627 = vpop.f32.mrf.mxu0
    %v1628 = vadd.f32 %v1294, %v1627
    %1629 = vmatprep.mubr.bf16.mxu0 %v1250
    %1630 = vmatmul.mubr.bf16.gmra.mxu0 %v1249
    %v1631 = vpop.f32.mrf.mxu0
    %v1632 = vadd.f32 %v1290, %v1631
    %v1633 = vpop.f32.mrf.mxu0
    %v1634 = vadd.f32 %v1294, %v1633
    %v1635 = vpop.f32.mrf.mxu0
    %v1636 = vadd.f32 %v1290, %v1635
    %v1637 = vpop.f32.mrf.mxu0
    %v1638 = vadd.f32 %v1294, %v1637
    %1639 = vmatprep.mubr.bf16.mxu0 %v1252
    %1640 = vmatmul.mubr.bf16.gmra.mxu0 %v1251
    %v1641 = vpop.f32.mrf.mxu0
    %v1642 = vadd.f32 %v1290, %v1641
    %v1643 = vpop.f32.mrf.mxu0
    %v1644 = vadd.f32 %v1294, %v1643
    %v1645 = vpop.f32.mrf.mxu0
    %v1646 = vadd.f32 %v1290, %v1645
    %v1647 = vpop.f32.mrf.mxu0
    %v1648 = vadd.f32 %v1294, %v1647
    %1649 = vdwg.mxu0
    %v1650 = vmax.f32 %v1492, 0.0
    %v1651 = vmax.f32 %v1494, 0.0
    %v1652 = vmax.f32 %v1496, 0.0
    %v1653 = vmax.f32 %v1498, 0.0
    %v1654 = vmax.f32 %v1502, 0.0
    %v1655 = vmax.f32 %v1504, 0.0
    %v1656 = vmax.f32 %v1506, 0.0
    %v1657 = vmax.f32 %v1508, 0.0
    %v1658 = vmax.f32 %v1512, 0.0
    %v1659 = vmax.f32 %v1514, 0.0
    %v1660 = vmax.f32 %v1516, 0.0
    %v1661 = vmax.f32 %v1518, 0.0
    %v1662 = vmax.f32 %v1522, 0.0
    %v1663 = vmax.f32 %v1524, 0.0
    %v1664 = vmax.f32 %v1526, 0.0
    %v1665 = vmax.f32 %v1528, 0.0
    %v1666 = vmax.f32 %v1532, 0.0
    %v1667 = vmax.f32 %v1534, 0.0
    %v1668 = vmax.f32 %v1536, 0.0
    %v1669 = vmax.f32 %v1538, 0.0
    %v1670 = vmax.f32 %v1542, 0.0
    %v1671 = vmax.f32 %v1544, 0.0
    %v1672 = vmax.f32 %v1546, 0.0
    %v1673 = vmax.f32 %v1548, 0.0
    %v1674 = vmax.f32 %v1552, 0.0
    %v1675 = vmax.f32 %v1554, 0.0
    %v1676 = vmax.f32 %v1556, 0.0
    %v1677 = vmax.f32 %v1558, 0.0
    %v1678 = vmax.f32 %v1562, 0.0
    %v1679 = vmax.f32 %v1564, 0.0
    %v1680 = vmax.f32 %v1566, 0.0
    %v1681 = vmax.f32 %v1568, 0.0
    %v1682 = vmax.f32 %v1572, 0.0
    %v1683 = vmax.f32 %v1574, 0.0
    %v1684 = vmax.f32 %v1576, 0.0
    %v1685 = vmax.f32 %v1578, 0.0
    %v1686 = vmax.f32 %v1582, 0.0
    %v1687 = vmax.f32 %v1584, 0.0
    %v1688 = vmax.f32 %v1586, 0.0
    %v1689 = vmax.f32 %v1588, 0.0
    %v1690 = vmax.f32 %v1592, 0.0
    %v1691 = vmax.f32 %v1594, 0.0
    %v1692 = vmax.f32 %v1596, 0.0
    %v1693 = vmax.f32 %v1598, 0.0
    %v1694 = vmax.f32 %v1602, 0.0
    %v1695 = vmax.f32 %v1604, 0.0
    %v1696 = vmax.f32 %v1606, 0.0
    %v1697 = vmax.f32 %v1608, 0.0
    %v1698 = vmax.f32 %v1612, 0.0
    %v1699 = vmax.f32 %v1614, 0.0
    %v1700 = vmax.f32 %v1616, 0.0
    %v1701 = vmax.f32 %v1618, 0.0
    %v1702 = vmax.f32 %v1622, 0.0
    %v1703 = vmax.f32 %v1624, 0.0
    %v1704 = vmax.f32 %v1626, 0.0
    %v1705 = vmax.f32 %v1628, 0.0
    %v1706 = vmax.f32 %v1632, 0.0
    %v1707 = vmax.f32 %v1634, 0.0
    %v1708 = vmax.f32 %v1636, 0.0
    %v1709 = vmax.f32 %v1638, 0.0
    %v1710 = vmax.f32 %v1642, 0.0
    %v1711 = vmax.f32 %v1644, 0.0
    %v1712 = vmax.f32 %v1646, 0.0
    %v1713 = vmax.f32 %v1648, 0.0
    %v1714 = vadd.f32 %v1650, %v953
    %v1715 = vadd.f32 %v1651, %v954
    %v1716 = vadd.f32 %v1652, %v955
    %v1717 = vadd.f32 %v1653, %v956
    %v1718 = vadd.f32 %v1654, %v957
    %v1719 = vadd.f32 %v1655, %v958
    %v1720 = vadd.f32 %v1656, %v959
    %v1721 = vadd.f32 %v1657, %v960
    %v1722 = vadd.f32 %v1658, %v961
    %v1723 = vadd.f32 %v1659, %v962
    %v1724 = vadd.f32 %v1660, %v963
    %v1725 = vadd.f32 %v1661, %v964
    %v1726 = vadd.f32 %v1662, %v965
    %v1727 = vadd.f32 %v1663, %v966
    %v1728 = vadd.f32 %v1664, %v967
    %v1729 = vadd.f32 %v1665, %v968
    %v1730 = vadd.f32 %v1666, %v969
    %v1731 = vadd.f32 %v1667, %v970
    %v1732 = vadd.f32 %v1668, %v971
    %v1733 = vadd.f32 %v1669, %v972
    %v1734 = vadd.f32 %v1670, %v973
    %v1735 = vadd.f32 %v1671, %v974
    %v1736 = vadd.f32 %v1672, %v975
    %v1737 = vadd.f32 %v1673, %v976
    %v1738 = vadd.f32 %v1674, %v977
    %v1739 = vadd.f32 %v1675, %v978
    %v1740 = vadd.f32 %v1676, %v979
    %v1741 = vadd.f32 %v1677, %v980
    %v1742 = vadd.f32 %v1678, %v981
    %v1743 = vadd.f32 %v1679, %v982
    %v1744 = vadd.f32 %v1680, %v983
    %v1745 = vadd.f32 %v1681, %v984
    %v1746 = vadd.f32 %v1682, %v985
    %v1747 = vadd.f32 %v1683, %v986
    %v1748 = vadd.f32 %v1684, %v987
    %v1749 = vadd.f32 %v1685, %v988
    %v1750 = vadd.f32 %v1686, %v989
    %v1751 = vadd.f32 %v1687, %v990
    %v1752 = vadd.f32 %v1688, %v991
    %v1753 = vadd.f32 %v1689, %v992
    %v1754 = vadd.f32 %v1690, %v993
    %v1755 = vadd.f32 %v1691, %v994
    %v1756 = vadd.f32 %v1692, %v995
    %v1757 = vadd.f32 %v1693, %v996
    %v1758 = vadd.f32 %v1694, %v997
    %v1759 = vadd.f32 %v1695, %v998
    %v1760 = vadd.f32 %v1696, %v999
    %v1761 = vadd.f32 %v1697, %v1000
    %v1762 = vadd.f32 %v1698, %v1001
    %v1763 = vadd.f32 %v1699, %v1002
    %v1764 = vadd.f32 %v1700, %v1003
    %v1765 = vadd.f32 %v1701, %v1004
    %v1766 = vadd.f32 %v1702, %v1005
    %v1767 = vadd.f32 %v1703, %v1006
    %v1768 = vadd.f32 %v1704, %v1007
    %v1769 = vadd.f32 %v1705, %v1008
    %v1770 = vadd.f32 %v1706, %v1009
    %v1771 = vadd.f32 %v1707, %v1010
    %v1772 = vadd.f32 %v1708, %v1011
    %v1773 = vadd.f32 %v1709, %v1012
    %v1774 = vadd.f32 %v1710, %v1013
    %v1775 = vadd.f32 %v1711, %v1014
    %v1776 = vadd.f32 %v1712, %v1015
    %v1777 = vadd.f32 %v1713, %v1016
    %v1778 = vpack.c.bf16 %v1716, %v1714
    %v1779 = vpack.c.bf16 %v1717, %v1715
    %v1780 = vpack.c.bf16 %v1720, %v1718
    %v1781 = vpack.c.bf16 %v1721, %v1719
    %v1782 = vpack.c.bf16 %v1724, %v1722
    %v1783 = vpack.c.bf16 %v1725, %v1723
    %v1784 = vpack.c.bf16 %v1728, %v1726
    %v1785 = vpack.c.bf16 %v1729, %v1727
    %v1786 = vpack.c.bf16 %v1732, %v1730
    %v1787 = vpack.c.bf16 %v1733, %v1731
    %v1788 = vpack.c.bf16 %v1736, %v1734
    %v1789 = vpack.c.bf16 %v1737, %v1735
    %v1790 = vpack.c.bf16 %v1740, %v1738
    %v1791 = vpack.c.bf16 %v1741, %v1739
    %v1792 = vpack.c.bf16 %v1744, %v1742
    %v1793 = vpack.c.bf16 %v1745, %v1743
    %v1794 = vpack.c.bf16 %v1748, %v1746
    %v1795 = vpack.c.bf16 %v1749, %v1747
    %v1796 = vpack.c.bf16 %v1752, %v1750
    %v1797 = vpack.c.bf16 %v1753, %v1751
    %v1798 = vpack.c.bf16 %v1756, %v1754
    %v1799 = vpack.c.bf16 %v1757, %v1755
    %v1800 = vpack.c.bf16 %v1760, %v1758
    %v1801 = vpack.c.bf16 %v1761, %v1759
    %v1802 = vpack.c.bf16 %v1764, %v1762
    %v1803 = vpack.c.bf16 %v1765, %v1763
    %v1804 = vpack.c.bf16 %v1768, %v1766
    %v1805 = vpack.c.bf16 %v1769, %v1767
    %v1806 = vpack.c.bf16 %v1772, %v1770
    %v1807 = vpack.c.bf16 %v1773, %v1771
    %v1808 = vpack.c.bf16 %v1776, %v1774
    %v1809 = vpack.c.bf16 %v1777, %v1775
    %v1810 = vld [vmem:[%s8] sm:$0xff]
    %v1811 = vld [vmem:[%s8 + $0x8] sm:$0xff]
    %v1812 = vld [vmem:[%s8 + $0x10] sm:$0xff]
    %v1813 = vld [vmem:[%s8 + $0x18] sm:$0xff]
    %v1814 = vld [vmem:[%s8 + $0x20] sm:$0xff]
    %v1815 = vld [vmem:[%s8 + $0x28] sm:$0xff]
    %v1816 = vld [vmem:[%s8 + $0x30] sm:$0xff]
    %v1817 = vld [vmem:[%s8 + $0x38] sm:$0xff]
    %v1818 = vld [vmem:[%s8 + $0x40] sm:$0xff]
    %v1819 = vld [vmem:[%s8 + $0x48] sm:$0xff]
    %v1820 = vld [vmem:[%s8 + $0x50] sm:$0xff]
    %v1821 = vld [vmem:[%s8 + $0x58] sm:$0xff]
    %v1822 = vld [vmem:[%s8 + $0x60] sm:$0xff]
    %v1823 = vld [vmem:[%s8 + $0x68] sm:$0xff]
    %v1824 = vld [vmem:[%s8 + $0x70] sm:$0xff]
    %v1825 = vld [vmem:[%s8 + $0x78] sm:$0xff]
    %v1826 = vld [vmem:[%s8 + $0x80] sm:$0xff]
    %v1827 = vld [vmem:[%s8 + $0x88] sm:$0xff]
    %v1828 = vld [vmem:[%s8 + $0x90] sm:$0xff]
    %v1829 = vld [vmem:[%s8 + $0x98] sm:$0xff]
    %v1830 = vld [vmem:[%s8 + $0xa0] sm:$0xff]
    %v1831 = vld [vmem:[%s8 + $0xa8] sm:$0xff]
    %v1832 = vld [vmem:[%s8 + $0xb0] sm:$0xff]
    %v1833 = vld [vmem:[%s8 + $0xb8] sm:$0xff]
    %v1834 = vld [vmem:[%s8 + $0xc0] sm:$0xff]
    %v1835 = vld [vmem:[%s8 + $0xc8] sm:$0xff]
    %v1836 = vld [vmem:[%s8 + $0xd0] sm:$0xff]
    %v1837 = vld [vmem:[%s8 + $0xd8] sm:$0xff]
    %v1838 = vld [vmem:[%s8 + $0xe0] sm:$0xff]
    %v1839 = vld [vmem:[%s8 + $0xe8] sm:$0xff]
    %v1840 = vld [vmem:[%s8 + $0xf0] sm:$0xff]
    %v1841 = vld [vmem:[%s8 + $0xf8] sm:$0xff]
    %v1874 = vunpack.c.l.b16 %v1810
    %v1875 = vunpack.c.h.b16 %v1810
    %v1876 = vunpack.c.l.b16 %v1811
    %v1877 = vunpack.c.h.b16 %v1811
    %v1878 = vunpack.c.l.b16 %v1812
    %v1879 = vunpack.c.h.b16 %v1812
    %v1880 = vunpack.c.l.b16 %v1813
    %v1881 = vunpack.c.h.b16 %v1813
    %v1882 = vunpack.c.l.b16 %v1814
    %v1883 = vunpack.c.h.b16 %v1814
    %v1884 = vunpack.c.l.b16 %v1815
    %v1885 = vunpack.c.h.b16 %v1815
    %v1886 = vunpack.c.l.b16 %v1816
    %v1887 = vunpack.c.h.b16 %v1816
    %v1888 = vunpack.c.l.b16 %v1817
    %v1889 = vunpack.c.h.b16 %v1817
    %v1890 = vunpack.c.l.b16 %v1818
    %v1891 = vunpack.c.h.b16 %v1818
    %v1892 = vunpack.c.l.b16 %v1819
    %v1893 = vunpack.c.h.b16 %v1819
    %v1894 = vunpack.c.l.b16 %v1820
    %v1895 = vunpack.c.h.b16 %v1820
    %v1896 = vunpack.c.l.b16 %v1821
    %v1897 = vunpack.c.h.b16 %v1821
    %v1898 = vunpack.c.l.b16 %v1822
    %v1899 = vunpack.c.h.b16 %v1822
    %v1900 = vunpack.c.l.b16 %v1823
    %v1901 = vunpack.c.h.b16 %v1823
    %v1902 = vunpack.c.l.b16 %v1824
    %v1903 = vunpack.c.h.b16 %v1824
    %v1904 = vunpack.c.l.b16 %v1825
    %v1905 = vunpack.c.h.b16 %v1825
    %v1906 = vunpack.c.l.b16 %v1826
    %v1907 = vunpack.c.h.b16 %v1826
    %v1908 = vunpack.c.l.b16 %v1827
    %v1909 = vunpack.c.h.b16 %v1827
    %v1910 = vunpack.c.l.b16 %v1828
    %v1911 = vunpack.c.h.b16 %v1828
    %v1912 = vunpack.c.l.b16 %v1829
    %v1913 = vunpack.c.h.b16 %v1829
    %v1914 = vunpack.c.l.b16 %v1830
    %v1915 = vunpack.c.h.b16 %v1830
    %v1916 = vunpack.c.l.b16 %v1831
    %v1917 = vunpack.c.h.b16 %v1831
    %v1918 = vunpack.c.l.b16 %v1832
    %v1919 = vunpack.c.h.b16 %v1832
    %v1920 = vunpack.c.l.b16 %v1833
    %v1921 = vunpack.c.h.b16 %v1833
    %v1922 = vunpack.c.l.b16 %v1834
    %v1923 = vunpack.c.h.b16 %v1834
    %v1924 = vunpack.c.l.b16 %v1835
    %v1925 = vunpack.c.h.b16 %v1835
    %v1926 = vunpack.c.l.b16 %v1836
    %v1927 = vunpack.c.h.b16 %v1836
    %v1928 = vunpack.c.l.b16 %v1837
    %v1929 = vunpack.c.h.b16 %v1837
    %v1930 = vunpack.c.l.b16 %v1838
    %v1931 = vunpack.c.h.b16 %v1838
    %v1932 = vunpack.c.l.b16 %v1839
    %v1933 = vunpack.c.h.b16 %v1839
    %v1934 = vunpack.c.l.b16 %v1840
    %v1935 = vunpack.c.h.b16 %v1840
    %v1936 = vunpack.c.l.b16 %v1841
    %v1937 = vunpack.c.h.b16 %v1841
    %v1938 = vpack.c.b16 %v1876, %v1874
    %v1939 = vpack.c.b16 %v1877, %v1875
    %v1940 = vpack.c.b16 %v1880, %v1878
    %v1941 = vpack.c.b16 %v1881, %v1879
    %v1942 = vpack.c.b16 %v1884, %v1882
    %v1943 = vpack.c.b16 %v1885, %v1883
    %v1944 = vpack.c.b16 %v1888, %v1886
    %v1945 = vpack.c.b16 %v1889, %v1887
    %v1946 = vpack.c.b16 %v1892, %v1890
    %v1947 = vpack.c.b16 %v1893, %v1891
    %v1948 = vpack.c.b16 %v1896, %v1894
    %v1949 = vpack.c.b16 %v1897, %v1895
    %v1950 = vpack.c.b16 %v1900, %v1898
    %v1951 = vpack.c.b16 %v1901, %v1899
    %v1952 = vpack.c.b16 %v1904, %v1902
    %v1953 = vpack.c.b16 %v1905, %v1903
    %v1954 = vpack.c.b16 %v1908, %v1906
    %v1955 = vpack.c.b16 %v1909, %v1907
    %v1956 = vpack.c.b16 %v1912, %v1910
    %v1957 = vpack.c.b16 %v1913, %v1911
    %v1958 = vpack.c.b16 %v1916, %v1914
    %v1959 = vpack.c.b16 %v1917, %v1915
    %v1960 = vpack.c.b16 %v1920, %v1918
    %v1961 = vpack.c.b16 %v1921, %v1919
    %v1962 = vpack.c.b16 %v1924, %v1922
    %v1963 = vpack.c.b16 %v1925, %v1923
    %v1964 = vpack.c.b16 %v1928, %v1926
    %v1965 = vpack.c.b16 %v1929, %v1927
    %v1966 = vpack.c.b16 %v1932, %v1930
    %v1967 = vpack.c.b16 %v1933, %v1931
    %v1968 = vpack.c.b16 %v1936, %v1934
    %v1969 = vpack.c.b16 %v1937, %v1935
    %2002 = vmatprep.subr.bf16.mxu0 %v1953
    %2003 = vmatpush1.bf16.msra.mxu0 %v1952
    %2004 = vmatprep.subr.bf16.mxu0 %v1951
    %2005 = vmatpush1.bf16.msra.mxu0 %v1950
    %2006 = vmatprep.subr.bf16.mxu0 %v1949
    %2007 = vmatpush1.bf16.msra.mxu0 %v1948
    %2008 = vmatprep.subr.bf16.mxu0 %v1947
    %2009 = vmatpush1.bf16.msra.mxu0 %v1946
    %2010 = vmatprep.subr.bf16.mxu0 %v1945
    %2011 = vmatpush1.bf16.msra.mxu0 %v1944
    %2012 = vmatprep.subr.bf16.mxu0 %v1943
    %2013 = vmatpush1.bf16.msra.mxu0 %v1942
    %2014 = vmatprep.subr.bf16.mxu0 %v1941
    %2015 = vmatpush1.bf16.msra.mxu0 %v1940
    %2016 = vmatprep.subr.bf16.mxu0 %v1939
    %2017 = vmatpush1.bf16.msra.mxu0 %v1938
    %2018 = vmatprep.subr.bf16.mxu0 %v1969
    %2019 = vmatpush2.bf16.msra.mxu0 %v1968
    %2020 = vmatprep.subr.bf16.mxu0 %v1967
    %2021 = vmatpush2.bf16.msra.mxu0 %v1966
    %2022 = vmatprep.subr.bf16.mxu0 %v1965
    %2023 = vmatpush2.bf16.msra.mxu0 %v1964
    %2024 = vmatprep.subr.bf16.mxu0 %v1963
    %2025 = vmatpush2.bf16.msra.mxu0 %v1962
    %2026 = vmatprep.subr.bf16.mxu0 %v1961
    %2027 = vmatpush2.bf16.msra.mxu0 %v1960
    %2028 = vmatprep.subr.bf16.mxu0 %v1959
    %2029 = vmatpush2.bf16.msra.mxu0 %v1958
    %2030 = vmatprep.subr.bf16.mxu0 %v1957
    %2031 = vmatpush2.bf16.msra.mxu0 %v1956
    %2032 = vmatprep.subr.bf16.mxu0 %v1955
    %2033 = vmatpush2.bf16.msra.mxu0 %v1954
    %2034 = vmatprep.mubr.bf16.mxu0 %v1779
    %2035 = vmatmul.mubr.bf16.gmra.mxu0 %v1778
    %v2036 = vpop.f32.mrf.mxu0
    %v2037 = vadd.f32 %v445, %v2036
    %v2038 = vpop.f32.mrf.mxu0
    %v2039 = vadd.f32 %v447, %v2038
    %v2040 = vpop.f32.mrf.mxu0
    %v2041 = vadd.f32 %v449, %v2040
    %v2042 = vpop.f32.mrf.mxu0
    %v2043 = vadd.f32 %v451, %v2042
    %2044 = vmatprep.mubr.bf16.mxu0 %v1781
    %2045 = vmatmul.mubr.bf16.gmra.mxu0 %v1780
    %v2046 = vpop.f32.mrf.mxu0
    %v2047 = vadd.f32 %v455, %v2046
    %v2048 = vpop.f32.mrf.mxu0
    %v2049 = vadd.f32 %v457, %v2048
    %v2050 = vpop.f32.mrf.mxu0
    %v2051 = vadd.f32 %v459, %v2050
    %v2052 = vpop.f32.mrf.mxu0
    %v2053 = vadd.f32 %v461, %v2052
    %2054 = vmatprep.mubr.bf16.mxu0 %v1783
    %2055 = vmatmul.mubr.bf16.gmra.mxu0 %v1782
    %v2056 = vpop.f32.mrf.mxu0
    %v2057 = vadd.f32 %v465, %v2056
    %v2058 = vpop.f32.mrf.mxu0
    %v2059 = vadd.f32 %v467, %v2058
    %v2060 = vpop.f32.mrf.mxu0
    %v2061 = vadd.f32 %v469, %v2060
    %v2062 = vpop.f32.mrf.mxu0
    %v2063 = vadd.f32 %v471, %v2062
    %2064 = vmatprep.mubr.bf16.mxu0 %v1785
    %2065 = vmatmul.mubr.bf16.gmra.mxu0 %v1784
    %v2066 = vpop.f32.mrf.mxu0
    %v2067 = vadd.f32 %v475, %v2066
    %v2068 = vpop.f32.mrf.mxu0
    %v2069 = vadd.f32 %v477, %v2068
    %v2070 = vpop.f32.mrf.mxu0
    %v2071 = vadd.f32 %v479, %v2070
    %v2072 = vpop.f32.mrf.mxu0
    %v2073 = vadd.f32 %v481, %v2072
    %2074 = vmatprep.mubr.bf16.mxu0 %v1787
    %2075 = vmatmul.mubr.bf16.gmra.mxu0 %v1786
    %v2076 = vpop.f32.mrf.mxu0
    %v2077 = vadd.f32 %v485, %v2076
    %v2078 = vpop.f32.mrf.mxu0
    %v2079 = vadd.f32 %v487, %v2078
    %v2080 = vpop.f32.mrf.mxu0
    %v2081 = vadd.f32 %v489, %v2080
    %v2082 = vpop.f32.mrf.mxu0
    %v2083 = vadd.f32 %v491, %v2082
    %2084 = vmatprep.mubr.bf16.mxu0 %v1789
    %2085 = vmatmul.mubr.bf16.gmra.mxu0 %v1788
    %v2086 = vpop.f32.mrf.mxu0
    %v2087 = vadd.f32 %v495, %v2086
    %v2088 = vpop.f32.mrf.mxu0
    %v2089 = vadd.f32 %v497, %v2088
    %v2090 = vpop.f32.mrf.mxu0
    %v2091 = vadd.f32 %v499, %v2090
    %v2092 = vpop.f32.mrf.mxu0
    %v2093 = vadd.f32 %v501, %v2092
    %2094 = vmatprep.mubr.bf16.mxu0 %v1791
    %2095 = vmatmul.mubr.bf16.gmra.mxu0 %v1790
    %v2096 = vpop.f32.mrf.mxu0
    %v2097 = vadd.f32 %v505, %v2096
    %v2098 = vpop.f32.mrf.mxu0
    %v2099 = vadd.f32 %v507, %v2098
    %v2100 = vpop.f32.mrf.mxu0
    %v2101 = vadd.f32 %v509, %v2100
    %v2102 = vpop.f32.mrf.mxu0
    %v2103 = vadd.f32 %v511, %v2102
    %2104 = vmatprep.mubr.bf16.mxu0 %v1793
    %2105 = vmatmul.mubr.bf16.gmra.mxu0 %v1792
    %v2106 = vpop.f32.mrf.mxu0
    %v2107 = vadd.f32 %v515, %v2106
    %v2108 = vpop.f32.mrf.mxu0
    %v2109 = vadd.f32 %v517, %v2108
    %v2110 = vpop.f32.mrf.mxu0
    %v2111 = vadd.f32 %v519, %v2110
    %v2112 = vpop.f32.mrf.mxu0
    %v2113 = vadd.f32 %v521, %v2112
    %2114 = vmatprep.mubr.bf16.mxu0 %v1795
    %2115 = vmatmul.mubr.bf16.gmra.mxu0 %v1794
    %v2116 = vpop.f32.mrf.mxu0
    %v2117 = vadd.f32 %v525, %v2116
    %v2118 = vpop.f32.mrf.mxu0
    %v2119 = vadd.f32 %v527, %v2118
    %v2120 = vpop.f32.mrf.mxu0
    %v2121 = vadd.f32 %v529, %v2120
    %v2122 = vpop.f32.mrf.mxu0
    %v2123 = vadd.f32 %v531, %v2122
    %2124 = vmatprep.mubr.bf16.mxu0 %v1797
    %2125 = vmatmul.mubr.bf16.gmra.mxu0 %v1796
    %v2126 = vpop.f32.mrf.mxu0
    %v2127 = vadd.f32 %v535, %v2126
    %v2128 = vpop.f32.mrf.mxu0
    %v2129 = vadd.f32 %v537, %v2128
    %v2130 = vpop.f32.mrf.mxu0
    %v2131 = vadd.f32 %v539, %v2130
    %v2132 = vpop.f32.mrf.mxu0
    %v2133 = vadd.f32 %v541, %v2132
    %2134 = vmatprep.mubr.bf16.mxu0 %v1799
    %2135 = vmatmul.mubr.bf16.gmra.mxu0 %v1798
    %v2136 = vpop.f32.mrf.mxu0
    %v2137 = vadd.f32 %v545, %v2136
    %v2138 = vpop.f32.mrf.mxu0
    %v2139 = vadd.f32 %v547, %v2138
    %v2140 = vpop.f32.mrf.mxu0
    %v2141 = vadd.f32 %v549, %v2140
    %v2142 = vpop.f32.mrf.mxu0
    %v2143 = vadd.f32 %v551, %v2142
    %2144 = vmatprep.mubr.bf16.mxu0 %v1801
    %2145 = vmatmul.mubr.bf16.gmra.mxu0 %v1800
    %v2146 = vpop.f32.mrf.mxu0
    %v2147 = vadd.f32 %v555, %v2146
    %v2148 = vpop.f32.mrf.mxu0
    %v2149 = vadd.f32 %v557, %v2148
    %v2150 = vpop.f32.mrf.mxu0
    %v2151 = vadd.f32 %v559, %v2150
    %v2152 = vpop.f32.mrf.mxu0
    %v2153 = vadd.f32 %v561, %v2152
    %2154 = vmatprep.mubr.bf16.mxu0 %v1803
    %2155 = vmatmul.mubr.bf16.gmra.mxu0 %v1802
    %v2156 = vpop.f32.mrf.mxu0
    %v2157 = vadd.f32 %v565, %v2156
    %v2158 = vpop.f32.mrf.mxu0
    %v2159 = vadd.f32 %v567, %v2158
    %v2160 = vpop.f32.mrf.mxu0
    %v2161 = vadd.f32 %v569, %v2160
    %v2162 = vpop.f32.mrf.mxu0
    %v2163 = vadd.f32 %v571, %v2162
    %2164 = vmatprep.mubr.bf16.mxu0 %v1805
    %2165 = vmatmul.mubr.bf16.gmra.mxu0 %v1804
    %v2166 = vpop.f32.mrf.mxu0
    %v2167 = vadd.f32 %v575, %v2166
    %v2168 = vpop.f32.mrf.mxu0
    %v2169 = vadd.f32 %v577, %v2168
    %v2170 = vpop.f32.mrf.mxu0
    %v2171 = vadd.f32 %v579, %v2170
    %v2172 = vpop.f32.mrf.mxu0
    %v2173 = vadd.f32 %v581, %v2172
    %2174 = vmatprep.mubr.bf16.mxu0 %v1807
    %2175 = vmatmul.mubr.bf16.gmra.mxu0 %v1806
    %v2176 = vpop.f32.mrf.mxu0
    %v2177 = vadd.f32 %v585, %v2176
    %v2178 = vpop.f32.mrf.mxu0
    %v2179 = vadd.f32 %v587, %v2178
    %v2180 = vpop.f32.mrf.mxu0
    %v2181 = vadd.f32 %v589, %v2180
    %v2182 = vpop.f32.mrf.mxu0
    %v2183 = vadd.f32 %v591, %v2182
    %2184 = vmatprep.mubr.bf16.mxu0 %v1809
    %2185 = vmatmul.mubr.bf16.gmra.mxu0 %v1808
    %v2186 = vpop.f32.mrf.mxu0
    %v2187 = vadd.f32 %v595, %v2186
    %v2188 = vpop.f32.mrf.mxu0
    %v2189 = vadd.f32 %v597, %v2188
    %v2190 = vpop.f32.mrf.mxu0
    %v2191 = vadd.f32 %v599, %v2190
    %v2192 = vpop.f32.mrf.mxu0
    %v2193 = vadd.f32 %v601, %v2192
    %2194 = vdwg.mxu0
    %v2195 = vld [vmem:[%s9] sm:$0x3]
    %v2197 = vlaneseq
    %v2198 = vshrl.u32 %v2197, 7
    %v2199 = vsub.s32 0, %v2198
    %v2200 = vrot.slane %v2195, %v2199
    %v2201 = vlaneseq
    %v2202 = vshrl.u32 %v2201, 7
    %v2203 = vsub.s32 1, %v2202
    %v2204 = vrot.slane %v2195, %v2203
    %v2207 = vadd.f32 %v2037, %v2200
    %v2208 = vadd.f32 %v2039, %v2204
    %v2209 = vadd.f32 %v2041, %v2200
    %v2210 = vadd.f32 %v2043, %v2204
    %v2211 = vadd.f32 %v2047, %v2200
    %v2212 = vadd.f32 %v2049, %v2204
    %v2213 = vadd.f32 %v2051, %v2200
    %v2214 = vadd.f32 %v2053, %v2204
    %v2215 = vadd.f32 %v2057, %v2200
    %v2216 = vadd.f32 %v2059, %v2204
    %v2217 = vadd.f32 %v2061, %v2200
    %v2218 = vadd.f32 %v2063, %v2204
    %v2219 = vadd.f32 %v2067, %v2200
    %v2220 = vadd.f32 %v2069, %v2204
    %v2221 = vadd.f32 %v2071, %v2200
    %v2222 = vadd.f32 %v2073, %v2204
    %v2223 = vadd.f32 %v2077, %v2200
    %v2224 = vadd.f32 %v2079, %v2204
    %v2225 = vadd.f32 %v2081, %v2200
    %v2226 = vadd.f32 %v2083, %v2204
    %v2227 = vadd.f32 %v2087, %v2200
    %v2228 = vadd.f32 %v2089, %v2204
    %v2229 = vadd.f32 %v2091, %v2200
    %v2230 = vadd.f32 %v2093, %v2204
    %v2231 = vadd.f32 %v2097, %v2200
    %v2232 = vadd.f32 %v2099, %v2204
    %v2233 = vadd.f32 %v2101, %v2200
    %v2234 = vadd.f32 %v2103, %v2204
    %v2235 = vadd.f32 %v2107, %v2200
    %v2236 = vadd.f32 %v2109, %v2204
    %v2237 = vadd.f32 %v2111, %v2200
    %v2238 = vadd.f32 %v2113, %v2204
    %v2239 = vadd.f32 %v2117, %v2200
    %v2240 = vadd.f32 %v2119, %v2204
    %v2241 = vadd.f32 %v2121, %v2200
    %v2242 = vadd.f32 %v2123, %v2204
    %v2243 = vadd.f32 %v2127, %v2200
    %v2244 = vadd.f32 %v2129, %v2204
    %v2245 = vadd.f32 %v2131, %v2200
    %v2246 = vadd.f32 %v2133, %v2204
    %v2247 = vadd.f32 %v2137, %v2200
    %v2248 = vadd.f32 %v2139, %v2204
    %v2249 = vadd.f32 %v2141, %v2200
    %v2250 = vadd.f32 %v2143, %v2204
    %v2251 = vadd.f32 %v2147, %v2200
    %v2252 = vadd.f32 %v2149, %v2204
    %v2253 = vadd.f32 %v2151, %v2200
    %v2254 = vadd.f32 %v2153, %v2204
    %v2255 = vadd.f32 %v2157, %v2200
    %v2256 = vadd.f32 %v2159, %v2204
    %v2257 = vadd.f32 %v2161, %v2200
    %v2258 = vadd.f32 %v2163, %v2204
    %v2259 = vadd.f32 %v2167, %v2200
    %v2260 = vadd.f32 %v2169, %v2204
    %v2261 = vadd.f32 %v2171, %v2200
    %v2262 = vadd.f32 %v2173, %v2204
    %v2263 = vadd.f32 %v2177, %v2200
    %v2264 = vadd.f32 %v2179, %v2204
    %v2265 = vadd.f32 %v2181, %v2200
    %v2266 = vadd.f32 %v2183, %v2204
    %v2267 = vadd.f32 %v2187, %v2200
    %v2268 = vadd.f32 %v2189, %v2204
    %v2269 = vadd.f32 %v2191, %v2200
    %v2270 = vadd.f32 %v2193, %v2204
    %v2271 = vmax.f32 %v2207, 0.0
    %v2272 = vmax.f32 %v2208, 0.0
    %v2273 = vmax.f32 %v2209, 0.0
    %v2274 = vmax.f32 %v2210, 0.0
    %v2275 = vmax.f32 %v2211, 0.0
    %v2276 = vmax.f32 %v2212, 0.0
    %v2277 = vmax.f32 %v2213, 0.0
    %v2278 = vmax.f32 %v2214, 0.0
    %v2279 = vmax.f32 %v2215, 0.0
    %v2280 = vmax.f32 %v2216, 0.0
    %v2281 = vmax.f32 %v2217, 0.0
    %v2282 = vmax.f32 %v2218, 0.0
    %v2283 = vmax.f32 %v2219, 0.0
    %v2284 = vmax.f32 %v2220, 0.0
    %v2285 = vmax.f32 %v2221, 0.0
    %v2286 = vmax.f32 %v2222, 0.0
    %v2287 = vmax.f32 %v2223, 0.0
    %v2288 = vmax.f32 %v2224, 0.0
    %v2289 = vmax.f32 %v2225, 0.0
    %v2290 = vmax.f32 %v2226, 0.0
    %v2291 = vmax.f32 %v2227, 0.0
    %v2292 = vmax.f32 %v2228, 0.0
    %v2293 = vmax.f32 %v2229, 0.0
    %v2294 = vmax.f32 %v2230, 0.0
    %v2295 = vmax.f32 %v2231, 0.0
    %v2296 = vmax.f32 %v2232, 0.0
    %v2297 = vmax.f32 %v2233, 0.0
    %v2298 = vmax.f32 %v2234, 0.0
    %v2299 = vmax.f32 %v2235, 0.0
    %v2300 = vmax.f32 %v2236, 0.0
    %v2301 = vmax.f32 %v2237, 0.0
    %v2302 = vmax.f32 %v2238, 0.0
    %v2303 = vmax.f32 %v2239, 0.0
    %v2304 = vmax.f32 %v2240, 0.0
    %v2305 = vmax.f32 %v2241, 0.0
    %v2306 = vmax.f32 %v2242, 0.0
    %v2307 = vmax.f32 %v2243, 0.0
    %v2308 = vmax.f32 %v2244, 0.0
    %v2309 = vmax.f32 %v2245, 0.0
    %v2310 = vmax.f32 %v2246, 0.0
    %v2311 = vmax.f32 %v2247, 0.0
    %v2312 = vmax.f32 %v2248, 0.0
    %v2313 = vmax.f32 %v2249, 0.0
    %v2314 = vmax.f32 %v2250, 0.0
    %v2315 = vmax.f32 %v2251, 0.0
    %v2316 = vmax.f32 %v2252, 0.0
    %v2317 = vmax.f32 %v2253, 0.0
    %v2318 = vmax.f32 %v2254, 0.0
    %v2319 = vmax.f32 %v2255, 0.0
    %v2320 = vmax.f32 %v2256, 0.0
    %v2321 = vmax.f32 %v2257, 0.0
    %v2322 = vmax.f32 %v2258, 0.0
    %v2323 = vmax.f32 %v2259, 0.0
    %v2324 = vmax.f32 %v2260, 0.0
    %v2325 = vmax.f32 %v2261, 0.0
    %v2326 = vmax.f32 %v2262, 0.0
    %v2327 = vmax.f32 %v2263, 0.0
    %v2328 = vmax.f32 %v2264, 0.0
    %v2329 = vmax.f32 %v2265, 0.0
    %v2330 = vmax.f32 %v2266, 0.0
    %v2331 = vmax.f32 %v2267, 0.0
    %v2332 = vmax.f32 %v2268, 0.0
    %v2333 = vmax.f32 %v2269, 0.0
    %v2334 = vmax.f32 %v2270, 0.0
    %v2335 = vadd.f32 %v2271, %v953
    %v2336 = vadd.f32 %v2272, %v954
    %v2337 = vadd.f32 %v2273, %v955
    %v2338 = vadd.f32 %v2274, %v956
    %v2339 = vadd.f32 %v2275, %v957
    %v2340 = vadd.f32 %v2276, %v958
    %v2341 = vadd.f32 %v2277, %v959
    %v2342 = vadd.f32 %v2278, %v960
    %v2343 = vadd.f32 %v2279, %v961
    %v2344 = vadd.f32 %v2280, %v962
    %v2345 = vadd.f32 %v2281, %v963
    %v2346 = vadd.f32 %v2282, %v964
    %v2347 = vadd.f32 %v2283, %v965
    %v2348 = vadd.f32 %v2284, %v966
    %v2349 = vadd.f32 %v2285, %v967
    %v2350 = vadd.f32 %v2286, %v968
    %v2351 = vadd.f32 %v2287, %v969
    %v2352 = vadd.f32 %v2288, %v970
    %v2353 = vadd.f32 %v2289, %v971
    %v2354 = vadd.f32 %v2290, %v972
    %v2355 = vadd.f32 %v2291, %v973
    %v2356 = vadd.f32 %v2292, %v974
    %v2357 = vadd.f32 %v2293, %v975
    %v2358 = vadd.f32 %v2294, %v976
    %v2359 = vadd.f32 %v2295, %v977
    %v2360 = vadd.f32 %v2296, %v978
    %v2361 = vadd.f32 %v2297, %v979
    %v2362 = vadd.f32 %v2298, %v980
    %v2363 = vadd.f32 %v2299, %v981
    %v2364 = vadd.f32 %v2300, %v982
    %v2365 = vadd.f32 %v2301, %v983
    %v2366 = vadd.f32 %v2302, %v984
    %v2367 = vadd.f32 %v2303, %v985
    %v2368 = vadd.f32 %v2304, %v986
    %v2369 = vadd.f32 %v2305, %v987
    %v2370 = vadd.f32 %v2306, %v988
    %v2371 = vadd.f32 %v2307, %v989
    %v2372 = vadd.f32 %v2308, %v990
    %v2373 = vadd.f32 %v2309, %v991
    %v2374 = vadd.f32 %v2310, %v992
    %v2375 = vadd.f32 %v2311, %v993
    %v2376 = vadd.f32 %v2312, %v994
    %v2377 = vadd.f32 %v2313, %v995
    %v2378 = vadd.f32 %v2314, %v996
    %v2379 = vadd.f32 %v2315, %v997
    %v2380 = vadd.f32 %v2316, %v998
    %v2381 = vadd.f32 %v2317, %v999
    %v2382 = vadd.f32 %v2318, %v1000
    %v2383 = vadd.f32 %v2319, %v1001
    %v2384 = vadd.f32 %v2320, %v1002
    %v2385 = vadd.f32 %v2321, %v1003
    %v2386 = vadd.f32 %v2322, %v1004
    %v2387 = vadd.f32 %v2323, %v1005
    %v2388 = vadd.f32 %v2324, %v1006
    %v2389 = vadd.f32 %v2325, %v1007
    %v2390 = vadd.f32 %v2326, %v1008
    %v2391 = vadd.f32 %v2327, %v1009
    %v2392 = vadd.f32 %v2328, %v1010
    %v2393 = vadd.f32 %v2329, %v1011
    %v2394 = vadd.f32 %v2330, %v1012
    %v2395 = vadd.f32 %v2331, %v1013
    %v2396 = vadd.f32 %v2332, %v1014
    %v2397 = vadd.f32 %v2333, %v1015
    %v2398 = vadd.f32 %v2334, %v1016
    %v2399 = vpack.c.bf16 %v2337, %v2335
    %v2400 = vpack.c.bf16 %v2338, %v2336
    %v2401 = vpack.c.bf16 %v2341, %v2339
    %v2402 = vpack.c.bf16 %v2342, %v2340
    %v2403 = vpack.c.bf16 %v2345, %v2343
    %v2404 = vpack.c.bf16 %v2346, %v2344
    %v2405 = vpack.c.bf16 %v2349, %v2347
    %v2406 = vpack.c.bf16 %v2350, %v2348
    %v2407 = vpack.c.bf16 %v2353, %v2351
    %v2408 = vpack.c.bf16 %v2354, %v2352
    %v2409 = vpack.c.bf16 %v2357, %v2355
    %v2410 = vpack.c.bf16 %v2358, %v2356
    %v2411 = vpack.c.bf16 %v2361, %v2359
    %v2412 = vpack.c.bf16 %v2362, %v2360
    %v2413 = vpack.c.bf16 %v2365, %v2363
    %v2414 = vpack.c.bf16 %v2366, %v2364
    %v2415 = vpack.c.bf16 %v2369, %v2367
    %v2416 = vpack.c.bf16 %v2370, %v2368
    %v2417 = vpack.c.bf16 %v2373, %v2371
    %v2418 = vpack.c.bf16 %v2374, %v2372
    %v2419 = vpack.c.bf16 %v2377, %v2375
    %v2420 = vpack.c.bf16 %v2378, %v2376
    %v2421 = vpack.c.bf16 %v2381, %v2379
    %v2422 = vpack.c.bf16 %v2382, %v2380
    %v2423 = vpack.c.bf16 %v2385, %v2383
    %v2424 = vpack.c.bf16 %v2386, %v2384
    %v2425 = vpack.c.bf16 %v2389, %v2387
    %v2426 = vpack.c.bf16 %v2390, %v2388
    %v2427 = vpack.c.bf16 %v2393, %v2391
    %v2428 = vpack.c.bf16 %v2394, %v2392
    %v2429 = vpack.c.bf16 %v2397, %v2395
    %v2430 = vpack.c.bf16 %v2398, %v2396
    %v2431 = vld [vmem:[%s10] sm:$0xff]
    %v2432 = vld [vmem:[%s10 + $0x8] sm:$0xff]
    %v2433 = vld [vmem:[%s10 + $0x10] sm:$0xff]
    %v2434 = vld [vmem:[%s10 + $0x18] sm:$0xff]
    %v2435 = vld [vmem:[%s10 + $0x20] sm:$0xff]
    %v2436 = vld [vmem:[%s10 + $0x28] sm:$0xff]
    %v2437 = vld [vmem:[%s10 + $0x30] sm:$0xff]
    %v2438 = vld [vmem:[%s10 + $0x38] sm:$0xff]
    %v2439 = vld [vmem:[%s10 + $0x40] sm:$0xff]
    %v2440 = vld [vmem:[%s10 + $0x48] sm:$0xff]
    %v2441 = vld [vmem:[%s10 + $0x50] sm:$0xff]
    %v2442 = vld [vmem:[%s10 + $0x58] sm:$0xff]
    %v2443 = vld [vmem:[%s10 + $0x60] sm:$0xff]
    %v2444 = vld [vmem:[%s10 + $0x68] sm:$0xff]
    %v2445 = vld [vmem:[%s10 + $0x70] sm:$0xff]
    %v2446 = vld [vmem:[%s10 + $0x78] sm:$0xff]
    %v2447 = vld [vmem:[%s10 + $0x80] sm:$0xff]
    %v2448 = vld [vmem:[%s10 + $0x88] sm:$0xff]
    %v2449 = vld [vmem:[%s10 + $0x90] sm:$0xff]
    %v2450 = vld [vmem:[%s10 + $0x98] sm:$0xff]
    %v2451 = vld [vmem:[%s10 + $0xa0] sm:$0xff]
    %v2452 = vld [vmem:[%s10 + $0xa8] sm:$0xff]
    %v2453 = vld [vmem:[%s10 + $0xb0] sm:$0xff]
    %v2454 = vld [vmem:[%s10 + $0xb8] sm:$0xff]
    %v2455 = vld [vmem:[%s10 + $0xc0] sm:$0xff]
    %v2456 = vld [vmem:[%s10 + $0xc8] sm:$0xff]
    %v2457 = vld [vmem:[%s10 + $0xd0] sm:$0xff]
    %v2458 = vld [vmem:[%s10 + $0xd8] sm:$0xff]
    %v2459 = vld [vmem:[%s10 + $0xe0] sm:$0xff]
    %v2460 = vld [vmem:[%s10 + $0xe8] sm:$0xff]
    %v2461 = vld [vmem:[%s10 + $0xf0] sm:$0xff]
    %v2462 = vld [vmem:[%s10 + $0xf8] sm:$0xff]
    %v2463 = vld [vmem:[#allocation6] sm:$0x3]
    %v2465 = vlaneseq
    %v2466 = vshrl.u32 %v2465, 7
    %v2467 = vsub.s32 0, %v2466
    %v2468 = vrot.slane %v2463, %v2467
    %v2469 = vlaneseq
    %v2470 = vshrl.u32 %v2469, 7
    %v2471 = vsub.s32 1, %v2470
    %v2472 = vrot.slane %v2463, %v2471
    %v2507 = vunpack.c.l.b16 %v2431
    %v2508 = vunpack.c.h.b16 %v2431
    %v2509 = vunpack.c.l.b16 %v2432
    %v2510 = vunpack.c.h.b16 %v2432
    %v2511 = vunpack.c.l.b16 %v2433
    %v2512 = vunpack.c.h.b16 %v2433
    %v2513 = vunpack.c.l.b16 %v2434
    %v2514 = vunpack.c.h.b16 %v2434
    %v2515 = vunpack.c.l.b16 %v2435
    %v2516 = vunpack.c.h.b16 %v2435
    %v2517 = vunpack.c.l.b16 %v2436
    %v2518 = vunpack.c.h.b16 %v2436
    %v2519 = vunpack.c.l.b16 %v2437
    %v2520 = vunpack.c.h.b16 %v2437
    %v2521 = vunpack.c.l.b16 %v2438
    %v2522 = vunpack.c.h.b16 %v2438
    %v2523 = vunpack.c.l.b16 %v2439
    %v2524 = vunpack.c.h.b16 %v2439
    %v2525 = vunpack.c.l.b16 %v2440
    %v2526 = vunpack.c.h.b16 %v2440
    %v2527 = vunpack.c.l.b16 %v2441
    %v2528 = vunpack.c.h.b16 %v2441
    %v2529 = vunpack.c.l.b16 %v2442
    %v2530 = vunpack.c.h.b16 %v2442
    %v2531 = vunpack.c.l.b16 %v2443
    %v2532 = vunpack.c.h.b16 %v2443
    %v2533 = vunpack.c.l.b16 %v2444
    %v2534 = vunpack.c.h.b16 %v2444
    %v2535 = vunpack.c.l.b16 %v2445
    %v2536 = vunpack.c.h.b16 %v2445
    %v2537 = vunpack.c.l.b16 %v2446
    %v2538 = vunpack.c.h.b16 %v2446
    %v2539 = vunpack.c.l.b16 %v2447
    %v2540 = vunpack.c.h.b16 %v2447
    %v2541 = vunpack.c.l.b16 %v2448
    %v2542 = vunpack.c.h.b16 %v2448
    %v2543 = vunpack.c.l.b16 %v2449
    %v2544 = vunpack.c.h.b16 %v2449
    %v2545 = vunpack.c.l.b16 %v2450
    %v2546 = vunpack.c.h.b16 %v2450
    %v2547 = vunpack.c.l.b16 %v2451
    %v2548 = vunpack.c.h.b16 %v2451
    %v2549 = vunpack.c.l.b16 %v2452
    %v2550 = vunpack.c.h.b16 %v2452
    %v2551 = vunpack.c.l.b16 %v2453
    %v2552 = vunpack.c.h.b16 %v2453
    %v2553 = vunpack.c.l.b16 %v2454
    %v2554 = vunpack.c.h.b16 %v2454
    %v2555 = vunpack.c.l.b16 %v2455
    %v2556 = vunpack.c.h.b16 %v2455
    %v2557 = vunpack.c.l.b16 %v2456
    %v2558 = vunpack.c.h.b16 %v2456
    %v2559 = vunpack.c.l.b16 %v2457
    %v2560 = vunpack.c.h.b16 %v2457
    %v2561 = vunpack.c.l.b16 %v2458
    %v2562 = vunpack.c.h.b16 %v2458
    %v2563 = vunpack.c.l.b16 %v2459
    %v2564 = vunpack.c.h.b16 %v2459
    %v2565 = vunpack.c.l.b16 %v2460
    %v2566 = vunpack.c.h.b16 %v2460
    %v2567 = vunpack.c.l.b16 %v2461
    %v2568 = vunpack.c.h.b16 %v2461
    %v2569 = vunpack.c.l.b16 %v2462
    %v2570 = vunpack.c.h.b16 %v2462
    %v2571 = vpack.c.b16 %v2509, %v2507
    %v2572 = vpack.c.b16 %v2510, %v2508
    %v2573 = vpack.c.b16 %v2513, %v2511
    %v2574 = vpack.c.b16 %v2514, %v2512
    %v2575 = vpack.c.b16 %v2517, %v2515
    %v2576 = vpack.c.b16 %v2518, %v2516
    %v2577 = vpack.c.b16 %v2521, %v2519
    %v2578 = vpack.c.b16 %v2522, %v2520
    %v2579 = vpack.c.b16 %v2525, %v2523
    %v2580 = vpack.c.b16 %v2526, %v2524
    %v2581 = vpack.c.b16 %v2529, %v2527
    %v2582 = vpack.c.b16 %v2530, %v2528
    %v2583 = vpack.c.b16 %v2533, %v2531
    %v2584 = vpack.c.b16 %v2534, %v2532
    %v2585 = vpack.c.b16 %v2537, %v2535
    %v2586 = vpack.c.b16 %v2538, %v2536
    %v2587 = vpack.c.b16 %v2541, %v2539
    %v2588 = vpack.c.b16 %v2542, %v2540
    %v2589 = vpack.c.b16 %v2545, %v2543
    %v2590 = vpack.c.b16 %v2546, %v2544
    %v2591 = vpack.c.b16 %v2549, %v2547
    %v2592 = vpack.c.b16 %v2550, %v2548
    %v2593 = vpack.c.b16 %v2553, %v2551
    %v2594 = vpack.c.b16 %v2554, %v2552
    %v2595 = vpack.c.b16 %v2557, %v2555
    %v2596 = vpack.c.b16 %v2558, %v2556
    %v2597 = vpack.c.b16 %v2561, %v2559
    %v2598 = vpack.c.b16 %v2562, %v2560
    %v2599 = vpack.c.b16 %v2565, %v2563
    %v2600 = vpack.c.b16 %v2566, %v2564
    %v2601 = vpack.c.b16 %v2569, %v2567
    %v2602 = vpack.c.b16 %v2570, %v2568
    %2635 = vmatprep.subr.bf16.mxu0 %v2586
    %2636 = vmatpush1.bf16.msra.mxu0 %v2585
    %2637 = vmatprep.subr.bf16.mxu0 %v2584
    %2638 = vmatpush1.bf16.msra.mxu0 %v2583
    %2639 = vmatprep.subr.bf16.mxu0 %v2582
    %2640 = vmatpush1.bf16.msra.mxu0 %v2581
    %2641 = vmatprep.subr.bf16.mxu0 %v2580
    %2642 = vmatpush1.bf16.msra.mxu0 %v2579
    %2643 = vmatprep.subr.bf16.mxu0 %v2578
    %2644 = vmatpush1.bf16.msra.mxu0 %v2577
    %2645 = vmatprep.subr.bf16.mxu0 %v2576
    %2646 = vmatpush1.bf16.msra.mxu0 %v2575
    %2647 = vmatprep.subr.bf16.mxu0 %v2574
    %2648 = vmatpush1.bf16.msra.mxu0 %v2573
    %2649 = vmatprep.subr.bf16.mxu0 %v2572
    %2650 = vmatpush1.bf16.msra.mxu0 %v2571
    %2651 = vmatprep.subr.bf16.mxu0 %v2602
    %2652 = vmatpush2.bf16.msra.mxu0 %v2601
    %2653 = vmatprep.subr.bf16.mxu0 %v2600
    %2654 = vmatpush2.bf16.msra.mxu0 %v2599
    %2655 = vmatprep.subr.bf16.mxu0 %v2598
    %2656 = vmatpush2.bf16.msra.mxu0 %v2597
    %2657 = vmatprep.subr.bf16.mxu0 %v2596
    %2658 = vmatpush2.bf16.msra.mxu0 %v2595
    %2659 = vmatprep.subr.bf16.mxu0 %v2594
    %2660 = vmatpush2.bf16.msra.mxu0 %v2593
    %2661 = vmatprep.subr.bf16.mxu0 %v2592
    %2662 = vmatpush2.bf16.msra.mxu0 %v2591
    %2663 = vmatprep.subr.bf16.mxu0 %v2590
    %2664 = vmatpush2.bf16.msra.mxu0 %v2589
    %2665 = vmatprep.subr.bf16.mxu0 %v2588
    %2666 = vmatpush2.bf16.msra.mxu0 %v2587
    %2667 = vmatprep.mubr.bf16.mxu0 %v2400
    %2668 = vmatmul.mubr.bf16.gmra.mxu0 %v2399
    %v2669 = vpop.f32.mrf.mxu0
    %v2670 = vadd.f32 %v2468, %v2669
    %v2671 = vpop.f32.mrf.mxu0
    %v2672 = vadd.f32 %v2472, %v2671
    %v2673 = vpop.f32.mrf.mxu0
    %v2674 = vadd.f32 %v2468, %v2673
    %v2675 = vpop.f32.mrf.mxu0
    %v2676 = vadd.f32 %v2472, %v2675
    %2677 = vmatprep.mubr.bf16.mxu0 %v2402
    %2678 = vmatmul.mubr.bf16.gmra.mxu0 %v2401
    %v2679 = vpop.f32.mrf.mxu0
    %v2680 = vadd.f32 %v2468, %v2679
    %v2681 = vpop.f32.mrf.mxu0
    %v2682 = vadd.f32 %v2472, %v2681
    %v2683 = vpop.f32.mrf.mxu0
    %v2684 = vadd.f32 %v2468, %v2683
    %v2685 = vpop.f32.mrf.mxu0
    %v2686 = vadd.f32 %v2472, %v2685
    %2687 = vmatprep.mubr.bf16.mxu0 %v2404
    %2688 = vmatmul.mubr.bf16.gmra.mxu0 %v2403
    %v2689 = vpop.f32.mrf.mxu0
    %v2690 = vadd.f32 %v2468, %v2689
    %v2691 = vpop.f32.mrf.mxu0
    %v2692 = vadd.f32 %v2472, %v2691
    %v2693 = vpop.f32.mrf.mxu0
    %v2694 = vadd.f32 %v2468, %v2693
    %v2695 = vpop.f32.mrf.mxu0
    %v2696 = vadd.f32 %v2472, %v2695
    %2697 = vmatprep.mubr.bf16.mxu0 %v2406
    %2698 = vmatmul.mubr.bf16.gmra.mxu0 %v2405
    %v2699 = vpop.f32.mrf.mxu0
    %v2700 = vadd.f32 %v2468, %v2699
    %v2701 = vpop.f32.mrf.mxu0
    %v2702 = vadd.f32 %v2472, %v2701
    %v2703 = vpop.f32.mrf.mxu0
    %v2704 = vadd.f32 %v2468, %v2703
    %v2705 = vpop.f32.mrf.mxu0
    %v2706 = vadd.f32 %v2472, %v2705
    %2707 = vmatprep.mubr.bf16.mxu0 %v2408
    %2708 = vmatmul.mubr.bf16.gmra.mxu0 %v2407
    %v2709 = vpop.f32.mrf.mxu0
    %v2710 = vadd.f32 %v2468, %v2709
    %v2711 = vpop.f32.mrf.mxu0
    %v2712 = vadd.f32 %v2472, %v2711
    %v2713 = vpop.f32.mrf.mxu0
    %v2714 = vadd.f32 %v2468, %v2713
    %v2715 = vpop.f32.mrf.mxu0
    %v2716 = vadd.f32 %v2472, %v2715
    %2717 = vmatprep.mubr.bf16.mxu0 %v2410
    %2718 = vmatmul.mubr.bf16.gmra.mxu0 %v2409
    %v2719 = vpop.f32.mrf.mxu0
    %v2720 = vadd.f32 %v2468, %v2719
    %v2721 = vpop.f32.mrf.mxu0
    %v2722 = vadd.f32 %v2472, %v2721
    %v2723 = vpop.f32.mrf.mxu0
    %v2724 = vadd.f32 %v2468, %v2723
    %v2725 = vpop.f32.mrf.mxu0
    %v2726 = vadd.f32 %v2472, %v2725
    %2727 = vmatprep.mubr.bf16.mxu0 %v2412
    %2728 = vmatmul.mubr.bf16.gmra.mxu0 %v2411
    %v2729 = vpop.f32.mrf.mxu0
    %v2730 = vadd.f32 %v2468, %v2729
    %v2731 = vpop.f32.mrf.mxu0
    %v2732 = vadd.f32 %v2472, %v2731
    %v2733 = vpop.f32.mrf.mxu0
    %v2734 = vadd.f32 %v2468, %v2733
    %v2735 = vpop.f32.mrf.mxu0
    %v2736 = vadd.f32 %v2472, %v2735
    %2737 = vmatprep.mubr.bf16.mxu0 %v2414
    %2738 = vmatmul.mubr.bf16.gmra.mxu0 %v2413
    %v2739 = vpop.f32.mrf.mxu0
    %v2740 = vadd.f32 %v2468, %v2739
    %v2741 = vpop.f32.mrf.mxu0
    %v2742 = vadd.f32 %v2472, %v2741
    %v2743 = vpop.f32.mrf.mxu0
    %v2744 = vadd.f32 %v2468, %v2743
    %v2745 = vpop.f32.mrf.mxu0
    %v2746 = vadd.f32 %v2472, %v2745
    %2747 = vmatprep.mubr.bf16.mxu0 %v2416
    %2748 = vmatmul.mubr.bf16.gmra.mxu0 %v2415
    %v2749 = vpop.f32.mrf.mxu0
    %v2750 = vadd.f32 %v2468, %v2749
    %v2751 = vpop.f32.mrf.mxu0
    %v2752 = vadd.f32 %v2472, %v2751
    %v2753 = vpop.f32.mrf.mxu0
    %v2754 = vadd.f32 %v2468, %v2753
    %v2755 = vpop.f32.mrf.mxu0
    %v2756 = vadd.f32 %v2472, %v2755
    %2757 = vmatprep.mubr.bf16.mxu0 %v2418
    %2758 = vmatmul.mubr.bf16.gmra.mxu0 %v2417
    %v2759 = vpop.f32.mrf.mxu0
    %v2760 = vadd.f32 %v2468, %v2759
    %v2761 = vpop.f32.mrf.mxu0
    %v2762 = vadd.f32 %v2472, %v2761
    %v2763 = vpop.f32.mrf.mxu0
    %v2764 = vadd.f32 %v2468, %v2763
    %v2765 = vpop.f32.mrf.mxu0
    %v2766 = vadd.f32 %v2472, %v2765
    %2767 = vmatprep.mubr.bf16.mxu0 %v2420
    %2768 = vmatmul.mubr.bf16.gmra.mxu0 %v2419
    %v2769 = vpop.f32.mrf.mxu0
    %v2770 = vadd.f32 %v2468, %v2769
    %v2771 = vpop.f32.mrf.mxu0
    %v2772 = vadd.f32 %v2472, %v2771
    %v2773 = vpop.f32.mrf.mxu0
    %v2774 = vadd.f32 %v2468, %v2773
    %v2775 = vpop.f32.mrf.mxu0
    %v2776 = vadd.f32 %v2472, %v2775
    %2777 = vmatprep.mubr.bf16.mxu0 %v2422
    %2778 = vmatmul.mubr.bf16.gmra.mxu0 %v2421
    %v2779 = vpop.f32.mrf.mxu0
    %v2780 = vadd.f32 %v2468, %v2779
    %v2781 = vpop.f32.mrf.mxu0
    %v2782 = vadd.f32 %v2472, %v2781
    %v2783 = vpop.f32.mrf.mxu0
    %v2784 = vadd.f32 %v2468, %v2783
    %v2785 = vpop.f32.mrf.mxu0
    %v2786 = vadd.f32 %v2472, %v2785
    %2787 = vmatprep.mubr.bf16.mxu0 %v2424
    %2788 = vmatmul.mubr.bf16.gmra.mxu0 %v2423
    %v2789 = vpop.f32.mrf.mxu0
    %v2790 = vadd.f32 %v2468, %v2789
    %v2791 = vpop.f32.mrf.mxu0
    %v2792 = vadd.f32 %v2472, %v2791
    %v2793 = vpop.f32.mrf.mxu0
    %v2794 = vadd.f32 %v2468, %v2793
    %v2795 = vpop.f32.mrf.mxu0
    %v2796 = vadd.f32 %v2472, %v2795
    %2797 = vmatprep.mubr.bf16.mxu0 %v2426
    %2798 = vmatmul.mubr.bf16.gmra.mxu0 %v2425
    %v2799 = vpop.f32.mrf.mxu0
    %v2800 = vadd.f32 %v2468, %v2799
    %v2801 = vpop.f32.mrf.mxu0
    %v2802 = vadd.f32 %v2472, %v2801
    %v2803 = vpop.f32.mrf.mxu0
    %v2804 = vadd.f32 %v2468, %v2803
    %v2805 = vpop.f32.mrf.mxu0
    %v2806 = vadd.f32 %v2472, %v2805
    %2807 = vmatprep.mubr.bf16.mxu0 %v2428
    %2808 = vmatmul.mubr.bf16.gmra.mxu0 %v2427
    %v2809 = vpop.f32.mrf.mxu0
    %v2810 = vadd.f32 %v2468, %v2809
    %v2811 = vpop.f32.mrf.mxu0
    %v2812 = vadd.f32 %v2472, %v2811
    %v2813 = vpop.f32.mrf.mxu0
    %v2814 = vadd.f32 %v2468, %v2813
    %v2815 = vpop.f32.mrf.mxu0
    %v2816 = vadd.f32 %v2472, %v2815
    %2817 = vmatprep.mubr.bf16.mxu0 %v2430
    %2818 = vmatmul.mubr.bf16.gmra.mxu0 %v2429
    %v2819 = vpop.f32.mrf.mxu0
    %v2820 = vadd.f32 %v2468, %v2819
    %v2821 = vpop.f32.mrf.mxu0
    %v2822 = vadd.f32 %v2472, %v2821
    %v2823 = vpop.f32.mrf.mxu0
    %v2824 = vadd.f32 %v2468, %v2823
    %v2825 = vpop.f32.mrf.mxu0
    %v2826 = vadd.f32 %v2472, %v2825
    %2827 = vdwg.mxu0
    %v2828 = vmax.f32 %v2670, 0.0
    %v2829 = vmax.f32 %v2672, 0.0
    %v2830 = vmax.f32 %v2674, 0.0
    %v2831 = vmax.f32 %v2676, 0.0
    %v2832 = vmax.f32 %v2680, 0.0
    %v2833 = vmax.f32 %v2682, 0.0
    %v2834 = vmax.f32 %v2684, 0.0
    %v2835 = vmax.f32 %v2686, 0.0
    %v2836 = vmax.f32 %v2690, 0.0
    %v2837 = vmax.f32 %v2692, 0.0
    %v2838 = vmax.f32 %v2694, 0.0
    %v2839 = vmax.f32 %v2696, 0.0
    %v2840 = vmax.f32 %v2700, 0.0
    %v2841 = vmax.f32 %v2702, 0.0
    %v2842 = vmax.f32 %v2704, 0.0
    %v2843 = vmax.f32 %v2706, 0.0
    %v2844 = vmax.f32 %v2710, 0.0
    %v2845 = vmax.f32 %v2712, 0.0
    %v2846 = vmax.f32 %v2714, 0.0
    %v2847 = vmax.f32 %v2716, 0.0
    %v2848 = vmax.f32 %v2720, 0.0
    %v2849 = vmax.f32 %v2722, 0.0
    %v2850 = vmax.f32 %v2724, 0.0
    %v2851 = vmax.f32 %v2726, 0.0
    %v2852 = vmax.f32 %v2730, 0.0
    %v2853 = vmax.f32 %v2732, 0.0
    %v2854 = vmax.f32 %v2734, 0.0
    %v2855 = vmax.f32 %v2736, 0.0
    %v2856 = vmax.f32 %v2740, 0.0
    %v2857 = vmax.f32 %v2742, 0.0
    %v2858 = vmax.f32 %v2744, 0.0
    %v2859 = vmax.f32 %v2746, 0.0
    %v2860 = vmax.f32 %v2750, 0.0
    %v2861 = vmax.f32 %v2752, 0.0
    %v2862 = vmax.f32 %v2754, 0.0
    %v2863 = vmax.f32 %v2756, 0.0
    %v2864 = vmax.f32 %v2760, 0.0
    %v2865 = vmax.f32 %v2762, 0.0
    %v2866 = vmax.f32 %v2764, 0.0
    %v2867 = vmax.f32 %v2766, 0.0
    %v2868 = vmax.f32 %v2770, 0.0
    %v2869 = vmax.f32 %v2772, 0.0
    %v2870 = vmax.f32 %v2774, 0.0
    %v2871 = vmax.f32 %v2776, 0.0
    %v2872 = vmax.f32 %v2780, 0.0
    %v2873 = vmax.f32 %v2782, 0.0
    %v2874 = vmax.f32 %v2784, 0.0
    %v2875 = vmax.f32 %v2786, 0.0
    %v2876 = vmax.f32 %v2790, 0.0
    %v2877 = vmax.f32 %v2792, 0.0
    %v2878 = vmax.f32 %v2794, 0.0
    %v2879 = vmax.f32 %v2796, 0.0
    %v2880 = vmax.f32 %v2800, 0.0
    %v2881 = vmax.f32 %v2802, 0.0
    %v2882 = vmax.f32 %v2804, 0.0
    %v2883 = vmax.f32 %v2806, 0.0
    %v2884 = vmax.f32 %v2810, 0.0
    %v2885 = vmax.f32 %v2812, 0.0
    %v2886 = vmax.f32 %v2814, 0.0
    %v2887 = vmax.f32 %v2816, 0.0
    %v2888 = vmax.f32 %v2820, 0.0
    %v2889 = vmax.f32 %v2822, 0.0
    %v2890 = vmax.f32 %v2824, 0.0
    %v2891 = vmax.f32 %v2826, 0.0
    %v2892 = vadd.f32 %v2828, %v953
    %v2893 = vadd.f32 %v2829, %v954
    %v2894 = vadd.f32 %v2830, %v955
    %v2895 = vadd.f32 %v2831, %v956
    %v2896 = vadd.f32 %v2832, %v957
    %v2897 = vadd.f32 %v2833, %v958
    %v2898 = vadd.f32 %v2834, %v959
    %v2899 = vadd.f32 %v2835, %v960
    %v2900 = vadd.f32 %v2836, %v961
    %v2901 = vadd.f32 %v2837, %v962
    %v2902 = vadd.f32 %v2838, %v963
    %v2903 = vadd.f32 %v2839, %v964
    %v2904 = vadd.f32 %v2840, %v965
    %v2905 = vadd.f32 %v2841, %v966
    %v2906 = vadd.f32 %v2842, %v967
    %v2907 = vadd.f32 %v2843, %v968
    %v2908 = vadd.f32 %v2844, %v969
    %v2909 = vadd.f32 %v2845, %v970
    %v2910 = vadd.f32 %v2846, %v971
    %v2911 = vadd.f32 %v2847, %v972
    %v2912 = vadd.f32 %v2848, %v973
    %v2913 = vadd.f32 %v2849, %v974
    %v2914 = vadd.f32 %v2850, %v975
    %v2915 = vadd.f32 %v2851, %v976
    %v2916 = vadd.f32 %v2852, %v977
    %v2917 = vadd.f32 %v2853, %v978
    %v2918 = vadd.f32 %v2854, %v979
    %v2919 = vadd.f32 %v2855, %v980
    %v2920 = vadd.f32 %v2856, %v981
    %v2921 = vadd.f32 %v2857, %v982
    %v2922 = vadd.f32 %v2858, %v983
    %v2923 = vadd.f32 %v2859, %v984
    %v2924 = vadd.f32 %v2860, %v985
    %v2925 = vadd.f32 %v2861, %v986
    %v2926 = vadd.f32 %v2862, %v987
    %v2927 = vadd.f32 %v2863, %v988
    %v2928 = vadd.f32 %v2864, %v989
    %v2929 = vadd.f32 %v2865, %v990
    %v2930 = vadd.f32 %v2866, %v991
    %v2931 = vadd.f32 %v2867, %v992
    %v2932 = vadd.f32 %v2868, %v993
    %v2933 = vadd.f32 %v2869, %v994
    %v2934 = vadd.f32 %v2870, %v995
    %v2935 = vadd.f32 %v2871, %v996
    %v2936 = vadd.f32 %v2872, %v997
    %v2937 = vadd.f32 %v2873, %v998
    %v2938 = vadd.f32 %v2874, %v999
    %v2939 = vadd.f32 %v2875, %v1000
    %v2940 = vadd.f32 %v2876, %v1001
    %v2941 = vadd.f32 %v2877, %v1002
    %v2942 = vadd.f32 %v2878, %v1003
    %v2943 = vadd.f32 %v2879, %v1004
    %v2944 = vadd.f32 %v2880, %v1005
    %v2945 = vadd.f32 %v2881, %v1006
    %v2946 = vadd.f32 %v2882, %v1007
    %v2947 = vadd.f32 %v2883, %v1008
    %v2948 = vadd.f32 %v2884, %v1009
    %v2949 = vadd.f32 %v2885, %v1010
    %v2950 = vadd.f32 %v2886, %v1011
    %v2951 = vadd.f32 %v2887, %v1012
    %v2952 = vadd.f32 %v2888, %v1013
    %v2953 = vadd.f32 %v2889, %v1014
    %v2954 = vadd.f32 %v2890, %v1015
    %v2955 = vadd.f32 %v2891, %v1016
    %v2956 = vpack.c.bf16 %v2894, %v2892
    %v2957 = vpack.c.bf16 %v2895, %v2893
    %v2958 = vpack.c.bf16 %v2898, %v2896
    %v2959 = vpack.c.bf16 %v2899, %v2897
    %v2960 = vpack.c.bf16 %v2902, %v2900
    %v2961 = vpack.c.bf16 %v2903, %v2901
    %v2962 = vpack.c.bf16 %v2906, %v2904
    %v2963 = vpack.c.bf16 %v2907, %v2905
    %v2964 = vpack.c.bf16 %v2910, %v2908
    %v2965 = vpack.c.bf16 %v2911, %v2909
    %v2966 = vpack.c.bf16 %v2914, %v2912
    %v2967 = vpack.c.bf16 %v2915, %v2913
    %v2968 = vpack.c.bf16 %v2918, %v2916
    %v2969 = vpack.c.bf16 %v2919, %v2917
    %v2970 = vpack.c.bf16 %v2922, %v2920
    %v2971 = vpack.c.bf16 %v2923, %v2921
    %v2972 = vpack.c.bf16 %v2926, %v2924
    %v2973 = vpack.c.bf16 %v2927, %v2925
    %v2974 = vpack.c.bf16 %v2930, %v2928
    %v2975 = vpack.c.bf16 %v2931, %v2929
    %v2976 = vpack.c.bf16 %v2934, %v2932
    %v2977 = vpack.c.bf16 %v2935, %v2933
    %v2978 = vpack.c.bf16 %v2938, %v2936
    %v2979 = vpack.c.bf16 %v2939, %v2937
    %v2980 = vpack.c.bf16 %v2942, %v2940
    %v2981 = vpack.c.bf16 %v2943, %v2941
    %v2982 = vpack.c.bf16 %v2946, %v2944
    %v2983 = vpack.c.bf16 %v2947, %v2945
    %v2984 = vpack.c.bf16 %v2950, %v2948
    %v2985 = vpack.c.bf16 %v2951, %v2949
    %v2986 = vpack.c.bf16 %v2954, %v2952
    %v2987 = vpack.c.bf16 %v2955, %v2953
    %v2988 = vld [vmem:[%s12] sm:$0xf]
    %v2989 = vld [vmem:[%s12 + $0x4] sm:$0xf]
    %v2990 = vld [vmem:[%s12 + $0x8] sm:$0xf]
    %v2991 = vld [vmem:[%s12 + $0xc] sm:$0xf]
    %v2992 = vld [vmem:[%s12 + $0x10] sm:$0xf]
    %v2993 = vld [vmem:[%s12 + $0x14] sm:$0xf]
    %v2994 = vld [vmem:[%s12 + $0x18] sm:$0xf]
    %v2995 = vld [vmem:[%s12 + $0x1c] sm:$0xf]
    %v2996 = vld [vmem:[%s12 + $0x20] sm:$0xf]
    %v2997 = vld [vmem:[%s12 + $0x24] sm:$0xf]
    %v2998 = vld [vmem:[%s12 + $0x28] sm:$0xf]
    %v2999 = vld [vmem:[%s12 + $0x2c] sm:$0xf]
    %v3000 = vld [vmem:[%s12 + $0x30] sm:$0xf]
    %v3001 = vld [vmem:[%s12 + $0x34] sm:$0xf]
    %v3002 = vld [vmem:[%s12 + $0x38] sm:$0xf]
    %v3003 = vld [vmem:[%s12 + $0x3c] sm:$0xf]
    %v3004 = vld [vmem:[%s12 + $0x40] sm:$0xf]
    %v3005 = vld [vmem:[%s12 + $0x44] sm:$0xf]
    %v3006 = vld [vmem:[%s12 + $0x48] sm:$0xf]
    %v3007 = vld [vmem:[%s12 + $0x4c] sm:$0xf]
    %v3008 = vld [vmem:[%s12 + $0x50] sm:$0xf]
    %v3009 = vld [vmem:[%s12 + $0x54] sm:$0xf]
    %v3010 = vld [vmem:[%s12 + $0x58] sm:$0xf]
    %v3011 = vld [vmem:[%s12 + $0x5c] sm:$0xf]
    %v3012 = vld [vmem:[%s12 + $0x60] sm:$0xf]
    %v3013 = vld [vmem:[%s12 + $0x64] sm:$0xf]
    %v3014 = vld [vmem:[%s12 + $0x68] sm:$0xf]
    %v3015 = vld [vmem:[%s12 + $0x6c] sm:$0xf]
    %v3016 = vld [vmem:[%s12 + $0x70] sm:$0xf]
    %v3017 = vld [vmem:[%s12 + $0x74] sm:$0xf]
    %v3018 = vld [vmem:[%s12 + $0x78] sm:$0xf]
    %v3019 = vld [vmem:[%s12 + $0x7c] sm:$0xf]
    %v3020 = vld [vmem:[%s13] sm:$0x1]
    %v3022 = vlaneseq
    %v3023 = vshrl.u32 %v3022, 7
    %v3024 = vsub.s32 0, %v3023
    %v3025 = vrot.slane %v3020, %v3024
    %v3059 = vunpack.c.l.b16 %v2988
    %v3060 = vunpack.c.l.b16 %v2989
    %v3061 = vunpack.c.l.b16 %v2990
    %v3062 = vunpack.c.l.b16 %v2991
    %v3063 = vunpack.c.l.b16 %v2992
    %v3064 = vunpack.c.l.b16 %v2993
    %v3065 = vunpack.c.l.b16 %v2994
    %v3066 = vunpack.c.l.b16 %v2995
    %v3067 = vunpack.c.l.b16 %v2996
    %v3068 = vunpack.c.l.b16 %v2997
    %v3069 = vunpack.c.l.b16 %v2998
    %v3070 = vunpack.c.l.b16 %v2999
    %v3071 = vunpack.c.l.b16 %v3000
    %v3072 = vunpack.c.l.b16 %v3001
    %v3073 = vunpack.c.l.b16 %v3002
    %v3074 = vunpack.c.l.b16 %v3003
    %v3075 = vunpack.c.l.b16 %v3004
    %v3076 = vunpack.c.l.b16 %v3005
    %v3077 = vunpack.c.l.b16 %v3006
    %v3078 = vunpack.c.l.b16 %v3007
    %v3079 = vunpack.c.l.b16 %v3008
    %v3080 = vunpack.c.l.b16 %v3009
    %v3081 = vunpack.c.l.b16 %v3010
    %v3082 = vunpack.c.l.b16 %v3011
    %v3083 = vunpack.c.l.b16 %v3012
    %v3084 = vunpack.c.l.b16 %v3013
    %v3085 = vunpack.c.l.b16 %v3014
    %v3086 = vunpack.c.l.b16 %v3015
    %v3087 = vunpack.c.l.b16 %v3016
    %v3088 = vunpack.c.l.b16 %v3017
    %v3089 = vunpack.c.l.b16 %v3018
    %v3090 = vunpack.c.l.b16 %v3019
    %v3091 = vpack.c.b16 %v3060, %v3059
    %v3092 = vpack.c.b16 %v3062, %v3061
    %v3093 = vpack.c.b16 %v3064, %v3063
    %v3094 = vpack.c.b16 %v3066, %v3065
    %v3095 = vpack.c.b16 %v3068, %v3067
    %v3096 = vpack.c.b16 %v3070, %v3069
    %v3097 = vpack.c.b16 %v3072, %v3071
    %v3098 = vpack.c.b16 %v3074, %v3073
    %v3099 = vpack.c.b16 %v3076, %v3075
    %v3100 = vpack.c.b16 %v3078, %v3077
    %v3101 = vpack.c.b16 %v3080, %v3079
    %v3102 = vpack.c.b16 %v3082, %v3081
    %v3103 = vpack.c.b16 %v3084, %v3083
    %v3104 = vpack.c.b16 %v3086, %v3085
    %v3105 = vpack.c.b16 %v3088, %v3087
    %v3106 = vpack.c.b16 %v3090, %v3089
    %3123 = vmatprep.subr.bf16.mxu0 0
    %3124 = vmatpush1.bf16.msra.mxu0 %v3098
    %3125 = vmatprep.subr.bf16.mxu0 0
    %3126 = vmatpush1.bf16.msra.mxu0 %v3097
    %3127 = vmatprep.subr.bf16.mxu0 0
    %3128 = vmatpush1.bf16.msra.mxu0 %v3096
    %3129 = vmatprep.subr.bf16.mxu0 0
    %3130 = vmatpush1.bf16.msra.mxu0 %v3095
    %3131 = vmatprep.subr.bf16.mxu0 0
    %3132 = vmatpush1.bf16.msra.mxu0 %v3094
    %3133 = vmatprep.subr.bf16.mxu0 0
    %3134 = vmatpush1.bf16.msra.mxu0 %v3093
    %3135 = vmatprep.subr.bf16.mxu0 0
    %3136 = vmatpush1.bf16.msra.mxu0 %v3092
    %3137 = vmatprep.subr.bf16.mxu0 0
    %3138 = vmatpush1.bf16.msra.mxu0 %v3091
    %3139 = vmatprep.subr.bf16.mxu0 0
    %3140 = vmatpush2.bf16.msra.mxu0 %v3106
    %3141 = vmatprep.subr.bf16.mxu0 0
    %3142 = vmatpush2.bf16.msra.mxu0 %v3105
    %3143 = vmatprep.subr.bf16.mxu0 0
    %3144 = vmatpush2.bf16.msra.mxu0 %v3104
    %3145 = vmatprep.subr.bf16.mxu0 0
    %3146 = vmatpush2.bf16.msra.mxu0 %v3103
    %3147 = vmatprep.subr.bf16.mxu0 0
    %3148 = vmatpush2.bf16.msra.mxu0 %v3102
    %3149 = vmatprep.subr.bf16.mxu0 0
    %3150 = vmatpush2.bf16.msra.mxu0 %v3101
    %3151 = vmatprep.subr.bf16.mxu0 0
    %3152 = vmatpush2.bf16.msra.mxu0 %v3100
    %3153 = vmatprep.subr.bf16.mxu0 0
    %3154 = vmatpush2.bf16.msra.mxu0 %v3099
    %3155 = vmatprep.mubr.bf16.mxu0 %v2957
    %3156 = vmatmul.mubr.bf16.gmra.mxu0 %v2956
    %v3157 = vpop.f32.mrf.mxu0
    %v3158 = vadd.f32 %v3025, %v3157
    %v3159 = vpop.f32.mrf.mxu0
    %v3160 = vpop.f32.mrf.mxu0
    %v3161 = vadd.f32 %v3025, %v3160
    %v3162 = vpop.f32.mrf.mxu0
    %3163 = vmatprep.mubr.bf16.mxu0 %v2959
    %3164 = vmatmul.mubr.bf16.gmra.mxu0 %v2958
    %v3165 = vpop.f32.mrf.mxu0
    %v3166 = vadd.f32 %v3025, %v3165
    %v3167 = vpop.f32.mrf.mxu0
    %v3168 = vpop.f32.mrf.mxu0
    %v3169 = vadd.f32 %v3025, %v3168
    %v3170 = vpop.f32.mrf.mxu0
    %3171 = vmatprep.mubr.bf16.mxu0 %v2961
    %3172 = vmatmul.mubr.bf16.gmra.mxu0 %v2960
    %v3173 = vpop.f32.mrf.mxu0
    %v3174 = vadd.f32 %v3025, %v3173
    %v3175 = vpop.f32.mrf.mxu0
    %v3176 = vpop.f32.mrf.mxu0
    %v3177 = vadd.f32 %v3025, %v3176
    %v3178 = vpop.f32.mrf.mxu0
    %3179 = vmatprep.mubr.bf16.mxu0 %v2963
    %3180 = vmatmul.mubr.bf16.gmra.mxu0 %v2962
    %v3181 = vpop.f32.mrf.mxu0
    %v3182 = vadd.f32 %v3025, %v3181
    %v3183 = vpop.f32.mrf.mxu0
    %v3184 = vpop.f32.mrf.mxu0
    %v3185 = vadd.f32 %v3025, %v3184
    %v3186 = vpop.f32.mrf.mxu0
    %3187 = vmatprep.mubr.bf16.mxu0 %v2965
    %3188 = vmatmul.mubr.bf16.gmra.mxu0 %v2964
    %v3189 = vpop.f32.mrf.mxu0
    %v3190 = vadd.f32 %v3025, %v3189
    %v3191 = vpop.f32.mrf.mxu0
    %v3192 = vpop.f32.mrf.mxu0
    %v3193 = vadd.f32 %v3025, %v3192
    %v3194 = vpop.f32.mrf.mxu0
    %3195 = vmatprep.mubr.bf16.mxu0 %v2967
    %3196 = vmatmul.mubr.bf16.gmra.mxu0 %v2966
    %v3197 = vpop.f32.mrf.mxu0
    %v3198 = vadd.f32 %v3025, %v3197
    %v3199 = vpop.f32.mrf.mxu0
    %v3200 = vpop.f32.mrf.mxu0
    %v3201 = vadd.f32 %v3025, %v3200
    %v3202 = vpop.f32.mrf.mxu0
    %3203 = vmatprep.mubr.bf16.mxu0 %v2969
    %3204 = vmatmul.mubr.bf16.gmra.mxu0 %v2968
    %v3205 = vpop.f32.mrf.mxu0
    %v3206 = vadd.f32 %v3025, %v3205
    %v3207 = vpop.f32.mrf.mxu0
    %v3208 = vpop.f32.mrf.mxu0
    %v3209 = vadd.f32 %v3025, %v3208
    %v3210 = vpop.f32.mrf.mxu0
    %3211 = vmatprep.mubr.bf16.mxu0 %v2971
    %3212 = vmatmul.mubr.bf16.gmra.mxu0 %v2970
    %v3213 = vpop.f32.mrf.mxu0
    %v3214 = vadd.f32 %v3025, %v3213
    %v3215 = vpop.f32.mrf.mxu0
    %v3216 = vpop.f32.mrf.mxu0
    %v3217 = vadd.f32 %v3025, %v3216
    %v3218 = vpop.f32.mrf.mxu0
    %3219 = vmatprep.mubr.bf16.mxu0 %v2973
    %3220 = vmatmul.mubr.bf16.gmra.mxu0 %v2972
    %v3221 = vpop.f32.mrf.mxu0
    %v3222 = vadd.f32 %v3025, %v3221
    %v3223 = vpop.f32.mrf.mxu0
    %v3224 = vpop.f32.mrf.mxu0
    %v3225 = vadd.f32 %v3025, %v3224
    %v3226 = vpop.f32.mrf.mxu0
    %3227 = vmatprep.mubr.bf16.mxu0 %v2975
    %3228 = vmatmul.mubr.bf16.gmra.mxu0 %v2974
    %v3229 = vpop.f32.mrf.mxu0
    %v3230 = vadd.f32 %v3025, %v3229
    %v3231 = vpop.f32.mrf.mxu0
    %v3232 = vpop.f32.mrf.mxu0
    %v3233 = vadd.f32 %v3025, %v3232
    %v3234 = vpop.f32.mrf.mxu0
    %3235 = vmatprep.mubr.bf16.mxu0 %v2977
    %3236 = vmatmul.mubr.bf16.gmra.mxu0 %v2976
    %v3237 = vpop.f32.mrf.mxu0
    %v3238 = vadd.f32 %v3025, %v3237
    %v3239 = vpop.f32.mrf.mxu0
    %v3240 = vpop.f32.mrf.mxu0
    %v3241 = vadd.f32 %v3025, %v3240
    %v3242 = vpop.f32.mrf.mxu0
    %3243 = vmatprep.mubr.bf16.mxu0 %v2979
    %3244 = vmatmul.mubr.bf16.gmra.mxu0 %v2978
    %v3245 = vpop.f32.mrf.mxu0
    %v3246 = vadd.f32 %v3025, %v3245
    %v3247 = vpop.f32.mrf.mxu0
    %v3248 = vpop.f32.mrf.mxu0
    %v3249 = vadd.f32 %v3025, %v3248
    %v3250 = vpop.f32.mrf.mxu0
    %3251 = vmatprep.mubr.bf16.mxu0 %v2981
    %3252 = vmatmul.mubr.bf16.gmra.mxu0 %v2980
    %v3253 = vpop.f32.mrf.mxu0
    %v3254 = vadd.f32 %v3025, %v3253
    %v3255 = vpop.f32.mrf.mxu0
    %v3256 = vpop.f32.mrf.mxu0
    %v3257 = vadd.f32 %v3025, %v3256
    %v3258 = vpop.f32.mrf.mxu0
    %3259 = vmatprep.mubr.bf16.mxu0 %v2983
    %3260 = vmatmul.mubr.bf16.gmra.mxu0 %v2982
    %v3261 = vpop.f32.mrf.mxu0
    %v3262 = vadd.f32 %v3025, %v3261
    %v3263 = vpop.f32.mrf.mxu0
    %v3264 = vpop.f32.mrf.mxu0
    %v3265 = vadd.f32 %v3025, %v3264
    %v3266 = vpop.f32.mrf.mxu0
    %3267 = vmatprep.mubr.bf16.mxu0 %v2985
    %3268 = vmatmul.mubr.bf16.gmra.mxu0 %v2984
    %v3269 = vpop.f32.mrf.mxu0
    %v3270 = vadd.f32 %v3025, %v3269
    %v3271 = vpop.f32.mrf.mxu0
    %v3272 = vpop.f32.mrf.mxu0
    %v3273 = vadd.f32 %v3025, %v3272
    %v3274 = vpop.f32.mrf.mxu0
    %3275 = vmatprep.mubr.bf16.mxu0 %v2987
    %3276 = vmatmul.mubr.bf16.gmra.mxu0 %v2986
    %v3277 = vpop.f32.mrf.mxu0
    %v3278 = vadd.f32 %v3025, %v3277
    %v3279 = vpop.f32.mrf.mxu0
    %v3280 = vpop.f32.mrf.mxu0
    %v3281 = vadd.f32 %v3025, %v3280
    %v3282 = vpop.f32.mrf.mxu0
    %3283 = vdwg.mxu0
    %3284 = vst.msk [vmem:[%s14] sm:$0xff] %vm152, %v3158
    %3285 = vst.msk [vmem:[%s14 + $0x8] sm:$0xff] %vm152, %v3161
    %3286 = vst.msk [vmem:[%s14 + $0x10] sm:$0xff] %vm152, %v3166
    %3287 = vst.msk [vmem:[%s14 + $0x18] sm:$0xff] %vm152, %v3169
    %3288 = vst.msk [vmem:[%s14 + $0x20] sm:$0xff] %vm152, %v3174
    %3289 = vst.msk [vmem:[%s14 + $0x28] sm:$0xff] %vm152, %v3177
    %3290 = vst.msk [vmem:[%s14 + $0x30] sm:$0xff] %vm152, %v3182
    %3291 = vst.msk [vmem:[%s14 + $0x38] sm:$0xff] %vm152, %v3185
    %3292 = vst.msk [vmem:[%s14 + $0x40] sm:$0xff] %vm152, %v3190
    %3293 = vst.msk [vmem:[%s14 + $0x48] sm:$0xff] %vm152, %v3193
    %3294 = vst.msk [vmem:[%s14 + $0x50] sm:$0xff] %vm152, %v3198
    %3295 = vst.msk [vmem:[%s14 + $0x58] sm:$0xff] %vm152, %v3201
    %3296 = vst.msk [vmem:[%s14 + $0x60] sm:$0xff] %vm152, %v3206
    %3297 = vst.msk [vmem:[%s14 + $0x68] sm:$0xff] %vm152, %v3209
    %3298 = vst.msk [vmem:[%s14 + $0x70] sm:$0xff] %vm152, %v3214
    %3299 = vst.msk [vmem:[%s14 + $0x78] sm:$0xff] %vm152, %v3217
    %3300 = vst.msk [vmem:[%s14 + $0x80] sm:$0xff] %vm152, %v3222
    %3301 = vst.msk [vmem:[%s14 + $0x88] sm:$0xff] %vm152, %v3225
    %3302 = vst.msk [vmem:[%s14 + $0x90] sm:$0xff] %vm152, %v3230
    %3303 = vst.msk [vmem:[%s14 + $0x98] sm:$0xff] %vm152, %v3233
    %3304 = vst.msk [vmem:[%s14 + $0xa0] sm:$0xff] %vm152, %v3238
    %3305 = vst.msk [vmem:[%s14 + $0xa8] sm:$0xff] %vm152, %v3241
    %3306 = vst.msk [vmem:[%s14 + $0xb0] sm:$0xff] %vm152, %v3246
    %3307 = vst.msk [vmem:[%s14 + $0xb8] sm:$0xff] %vm152, %v3249
    %3308 = vst.msk [vmem:[%s14 + $0xc0] sm:$0xff] %vm152, %v3254
    %3309 = vst.msk [vmem:[%s14 + $0xc8] sm:$0xff] %vm152, %v3257
    %3310 = vst.msk [vmem:[%s14 + $0xd0] sm:$0xff] %vm152, %v3262
    %3311 = vst.msk [vmem:[%s14 + $0xd8] sm:$0xff] %vm152, %v3265
    %3312 = vst.msk [vmem:[%s14 + $0xe0] sm:$0xff] %vm152, %v3270
    %3313 = vst.msk [vmem:[%s14 + $0xe8] sm:$0xff] %vm152, %v3273
    %3314 = vst.msk [vmem:[%s14 + $0xf0] sm:$0xff] %vm152, %v3278
    %3315 = vst.msk [vmem:[%s14 + $0xf8] sm:$0xff] %vm152, %v3281
    // Predicated region
    $region70: #{inverse_atlasnet.1} parent=1 // pred_check
      _
    $region71: #{inverse_atlasnet.1} parent=1 // pred_check_branch
      %3317 = sbr.rel (0) target = $region73
    $region72: #{inverse_atlasnet.1} parent=1 // pred_region
      _
    $region73: #{inverse_atlasnet.1} parent=1 // pred_fallthru
      _
    // Predicated region
    $region74: #{inverse_atlasnet.1} parent=1 // pred_check
      _
    $region75: #{inverse_atlasnet.1} parent=1 // pred_check_branch
      %3319 = sbr.rel (0) target = $region77
    $region76: #{inverse_atlasnet.1} parent=1 // pred_region
      _
    $region77: #{inverse_atlasnet.1} parent=1 // pred_fallthru
      _
    %3320 = vsyncpa [#allocation3], 1
    %3321 = vsyncpa [#allocation5], 1

</llo_original>
